<compile_context>
chip_gen: v7x
topology: tpu7x:2x2x1
jax: 0.10.0
libtpu: 0.0.40
codegen_flags: <defaults>
</compile_context>

<pallas_src>
import functools
import math

import jax
import jax.numpy as jnp
from jax import lax
from jax.experimental import pallas as pl
from jax.experimental.pallas import tpu as pltpu

LANE_PAD = 128  # lane-dense width for the classifier logits output


# ----------------------------- fused kernel -----------------------------

def _ner_kernel(x_ref, mask_ref,
                embg_ref, embb_ref,
                wqkv_ref, bqkv_ref, wo_ref, bo_ref, l1g_ref, l1b_ref,
                wf1_ref, bf1_ref, wf2_ref, bf2_ref, l2g_ref, l2b_ref,
                cw1_ref, cb1_ref, cw2_ref, cb2_ref,
                out_ref, h_ref, ctx_ref, *, hidden, nh, dh, bt, seq, eps):
    """Grid = (batch_tiles, layer).  h_ref (VMEM scratch, [bt*S, H]) carries the
    hidden state across the layer axis; ctx_ref ([bt, S, H]) collects per-head
    attention context; the classifier head runs on the last layer step."""
    layer = pl.program_id(1)
    n_layers = pl.num_programs(1)
    rows = bt * seq

    def layer_norm(v, g, b):
        # One traversal: var = E[x^2] - E[x]^2; gamma*rsqrt folded into one scale.
        mu = jnp.mean(v, axis=-1, keepdims=True)
        ms = jnp.mean(v * v, axis=-1, keepdims=True)
        k = lax.rsqrt(ms - mu * mu + eps) * g
        return v * k + (b - mu * k)

    # Layer 0: embedding LayerNorm (fused, replaces a separate pallas_call).
    @pl.when(layer == 0)
    def _():
        h_ref[...] = layer_norm(x_ref[...].reshape(rows, hidden),
                                embg_ref[...], embb_ref[...])

    x = h_ref[...]                                        # [bt*S, H] f32

    # --- fused QKV projection (one MXU op, N = 3H); softmax scale is already
    #     folded into the Q columns of wqkv/bqkv on the host ---
    qkv = jnp.dot(x.astype(jnp.bfloat16), wqkv_ref[0],
                  preferred_element_type=jnp.float32) + bqkv_ref[0]
    q = qkv[:, :hidden].reshape(bt, seq, hidden)
    k = qkv[:, hidden:2 * hidden].reshape(bt, seq, hidden)
    v = qkv[:, 2 * hidden:].reshape(bt, seq, hidden)

    amask = mask_ref[...]                                 # [bt, 1, S] additive key mask

    # --- multi-head self-attention: heads unrolled, batched over bt via
    #     dot_general batch dims; bf16 MXU operands, f32 accumulation ---
    for h in range(nh):
        sl = slice(h * dh, (h + 1) * dh)
        qh = q[:, :, sl].astype(jnp.bfloat16)
        kh = k[:, :, sl].astype(jnp.bfloat16)
        vh = v[:, :, sl].astype(jnp.bfloat16)
        s = jnp.einsum('bqd,bkd->bqk', qh, kh,
                       preferred_element_type=jnp.float32)
        s = s + amask                                     # broadcast over queries
        s = s - jnp.max(s, axis=-1, keepdims=True)
        p = jnp.exp(s)
        p = p * pl.reciprocal(jnp.sum(p, axis=-1, keepdims=True), approx=True)
        ctx_ref[:, :, sl] = jnp.einsum('bqk,bkd->bqd', p.astype(jnp.bfloat16), vh,
                                       preferred_element_type=jnp.float32)
    ctx = ctx_ref[...].reshape(rows, hidden)              # [bt*S, H]

    # --- attention output projection + residual + LayerNorm ---
    attn = jnp.dot(ctx.astype(jnp.bfloat16), wo_ref[0],
                   preferred_element_type=jnp.float32) + bo_ref[0]
    h1 = layer_norm(attn + x, l1g_ref[0], l1b_ref[0])

    # --- FFN (exact-erf GELU, matches PyTorch reference) + residual + LN ---
    f = jnp.dot(h1.astype(jnp.bfloat16), wf1_ref[0],
                preferred_element_type=jnp.float32) + bf1_ref[0]
    f = 0.5 * f * (1.0 + lax.erf(f * (1.0 / math.sqrt(2.0))))
    f2 = jnp.dot(f.astype(jnp.bfloat16), wf2_ref[0],
                 preferred_element_type=jnp.float32) + bf2_ref[0]
    h2 = layer_norm(f2 + h1, l2g_ref[0], l2b_ref[0])

    h_ref[...] = h2

    # --- CLS head on final layer: dense -> tanh -> output_proj (lane-padded) ---
    @pl.when(layer == n_layers - 1)
    def _():
        t = jnp.dot(h2.astype(jnp.bfloat16), cw1_ref[...],
                    preferred_element_type=jnp.float32) + cb1_ref[...]
        t = jnp.tanh(t)
        logits = jnp.dot(t.astype(jnp.bfloat16), cw2_ref[...],
                         preferred_element_type=jnp.float32) + cb2_ref[...]
        out_ref[...] = logits.reshape(bt, seq, LANE_PAD)  # lane-dense store


# ----------------------------- model config / params -----------------------------

class Config:
    vocab_size = 64
    hidden_size = 32
    num_hidden_layers = 2
    num_attention_heads = 4
    intermediate_size = 64
    max_position_embeddings = 20
    layer_norm_eps = 1e-5
    pad_token_id = 1
    num_labels = 5


def init_params(key, cfg):
    state = [key]

    def nxt():
        state[0], sub = jax.random.split(state[0])
        return sub

    def init(shape):
        return (0.02 * jax.random.normal(nxt(), shape)).astype(jnp.float32)

    def dense(din, dout):
        return {"w": init((din, dout)), "b": init((dout,))}

    H, I = cfg.hidden_size, cfg.intermediate_size
    params = {
        "word_emb": init((cfg.vocab_size, H)).at[cfg.pad_token_id].set(0.0),
        "pos_emb": init((cfg.max_position_embeddings, H)).at[cfg.pad_token_id].set(0.0),
        "type_emb": init((1, H)),
        "emb_ln_g": jnp.ones((H,), jnp.float32),
        "emb_ln_b": jnp.zeros((H,), jnp.float32),
        "layers": [],
        "cls_dense": dense(H, H),
        "cls_out": dense(H, cfg.num_labels),
    }
    for _ in range(cfg.num_hidden_layers):
        params["layers"].append({
            "q": dense(H, H), "k": dense(H, H), "v": dense(H, H),
            "attn_out": dense(H, H),
            "attn_ln_g": jnp.ones((H,), jnp.float32),
            "attn_ln_b": jnp.zeros((H,), jnp.float32),
            "ffn_in": dense(H, I), "ffn_out": dense(I, H),
            "ffn_ln_g": jnp.ones((H,), jnp.float32),
            "ffn_ln_b": jnp.zeros((H,), jnp.float32),
        })
    return params


# ----------------------------- forward -----------------------------

def ner_model_forward(params, input_ids, attention_mask, cfg, batch_tile=None):
    B, S = input_ids.shape
    H = cfg.hidden_size
    I = cfg.intermediate_size
    nh = cfg.num_attention_heads
    dh = H // nh
    L = cfg.num_hidden_layers
    NL = cfg.num_labels

    # Batch tile: sequences processed together per grid step (weight reuse).
    bt = B if batch_tile is None else batch_tile
    assert B % bt == 0
    nb = B // bt

    # --- RoBERTa embeddings (data-dependent gathers stay in JAX) ---
    not_pad = (input_ids != cfg.pad_token_id).astype(jnp.int32)
    position_ids = jnp.cumsum(not_pad, axis=1) * not_pad + cfg.pad_token_id
    x = (jnp.take(params["word_emb"], input_ids, axis=0)
         + jnp.take(params["pos_emb"], position_ids, axis=0)
         + params["type_emb"][0][None, None, :]).astype(jnp.float32)

    # Extended additive attention mask: (1 - mask) * finfo.min, shape [B, 1, S]
    am = attention_mask.astype(jnp.float32)
    add_mask = ((1.0 - am) * jnp.finfo(jnp.float32).min)[:, None, :]

    # --- pack per-layer weights (stacked on a leading layer axis) ---
    def stack(get):
        return jnp.stack([get(lyr) for lyr in params["layers"]], axis=0)

    scale = 1.0 / math.sqrt(dh)
    # Fold the softmax 1/sqrt(dh) scale into the Q columns of the fused QKV.
    wqkv = stack(lambda l: jnp.concatenate(
        [l["q"]["w"] * scale, l["k"]["w"], l["v"]["w"]], axis=1)).astype(jnp.bfloat16)
    bqkv = stack(lambda l: jnp.concatenate(
        [l["q"]["b"] * scale, l["k"]["b"], l["v"]["b"]], axis=0))[:, None, :]
    wo = stack(lambda l: l["attn_out"]["w"]).astype(jnp.bfloat16)
    bo = stack(lambda l: l["attn_out"]["b"])[:, None, :]
    l1g = stack(lambda l: l["attn_ln_g"])[:, None, :]
    l1b = stack(lambda l: l["attn_ln_b"])[:, None, :]
    wf1 = stack(lambda l: l["ffn_in"]["w"]).astype(jnp.bfloat16)
    bf1 = stack(lambda l: l["ffn_in"]["b"])[:, None, :]
    wf2 = stack(lambda l: l["ffn_out"]["w"]).astype(jnp.bfloat16)
    bf2 = stack(lambda l: l["ffn_out"]["b"])[:, None, :]
    l2g = stack(lambda l: l["ffn_ln_g"])[:, None, :]
    l2b = stack(lambda l: l["ffn_ln_b"])[:, None, :]

    embg = params["emb_ln_g"][None, :]
    embb = params["emb_ln_b"][None, :]
    cw1 = params["cls_dense"]["w"].astype(jnp.bfloat16)
    cb1 = params["cls_dense"]["b"][None, :]
    # zero-pad the classifier projection to 128 lanes -> lane-dense output store
    cw2 = (jnp.zeros((H, LANE_PAD), jnp.float32)
           .at[:, :NL].set(params["cls_out"]["w"])).astype(jnp.bfloat16)
    cb2 = jnp.zeros((1, LANE_PAD), jnp.float32).at[0, :NL].set(params["cls_out"]["b"])

    kernel = functools.partial(_ner_kernel, hidden=H, nh=nh, dh=dh,
                               bt=bt, seq=S, eps=cfg.layer_norm_eps)

    def per_batch3(b, l):
        return (b, 0, 0)

    def per_layer3(b, l):
        return (l, 0, 0)

    def const2(b, l):
        return (0, 0)

    in_specs = [
        pl.BlockSpec((bt, S, H), per_batch3),       # x (embedding sum)
        pl.BlockSpec((bt, 1, S), per_batch3),       # additive mask
        pl.BlockSpec((1, H), const2),               # emb LN gamma
        pl.BlockSpec((1, H), const2),               # emb LN beta
        pl.BlockSpec((1, H, 3 * H), per_layer3),    # wqkv (Q columns pre-scaled)
        pl.BlockSpec((1, 1, 3 * H), per_layer3),    # bqkv
        pl.BlockSpec((1, H, H), per_layer3),        # wo
        pl.BlockSpec((1, 1, H), per_layer3),        # bo
        pl.BlockSpec((1, 1, H), per_layer3),        # attn LN gamma
        pl.BlockSpec((1, 1, H), per_layer3),        # attn LN beta
        pl.BlockSpec((1, H, I), per_layer3),        # ffn_in w
        pl.BlockSpec((1, 1, I), per_layer3),        # ffn_in b
        pl.BlockSpec((1, I, H), per_layer3),        # ffn_out w
        pl.BlockSpec((1, 1, H), per_layer3),        # ffn_out b
        pl.BlockSpec((1, 1, H), per_layer3),        # ffn LN gamma
        pl.BlockSpec((1, 1, H), per_layer3),        # ffn LN beta
        pl.BlockSpec((H, H), const2),               # cls dense w
        pl.BlockSpec((1, H), const2),               # cls dense b
        pl.BlockSpec((H, LANE_PAD), const2),        # cls out w (padded)
        pl.BlockSpec((1, LANE_PAD), const2),        # cls out b (padded)
    ]

    logits_pad = pl.pallas_call(
        kernel,
        out_shape=jax.ShapeDtypeStruct((B, S, LANE_PAD), jnp.float32),
        grid_spec=pltpu.PrefetchScalarGridSpec(
            num_scalar_prefetch=0,
            grid=(nb, L),
            in_specs=in_specs,
            out_specs=pl.BlockSpec((bt, S, LANE_PAD), per_batch3),
            scratch_shapes=[pltpu.VMEM((bt * S, H), jnp.float32),   # hidden state
                            pltpu.VMEM((bt, S, H), jnp.float32)],   # attn context
        ),
        compiler_params=pltpu.CompilerParams(
            dimension_semantics=("parallel", "arbitrary"),
            vmem_limit_bytes=64 << 20),
    )(x, add_mask, embg, embb,
      wqkv, bqkv, wo, bo, l1g, l1b,
      wf1, bf1, wf2, bf2, l2g, l2b,
      cw1, cb1, cw2, cb2)

    return logits_pad[:, :, :NL]


if __name__ == "__main__":
    cfg = Config()
    key = jax.random.PRNGKey(0)
    pkey, ikey = jax.random.split(key)
    params = init_params(pkey, cfg)

    B, S = 2, 8
    input_ids = jax.random.randint(ikey, (B, S), 2, cfg.vocab_size)
    attention_mask = jnp.ones((B, S), jnp.int32)
    # pad the tail of the second sequence
    input_ids = input_ids.at[1, 6:].set(cfg.pad_token_id)
    attention_mask = attention_mask.at[1, 6:].set(0)

    fwd = jax.jit(lambda p, ids, am: ner_model_forward(p, ids, am, cfg))
    logits = fwd(params, input_ids, attention_mask)
    jax.block_until_ready(logits)
    assert logits.shape == (B, S, cfg.num_labels)
    assert bool(jnp.all(jnp.isfinite(logits)))
    print("KERNEL_OK")
</pallas_src>

<mosaic_0001>
module attributes {stable_mosaic.version = 11 : i64} {
  func.func @_ner_kernel(%arg0: i32, %arg1: i32, %arg2: memref<2x8x32xf32, #tpu.memory_space<vmem>>, %arg3: memref<2x1x8xf32, #tpu.memory_space<vmem>>, %arg4: memref<1x32xf32, #tpu.memory_space<vmem>>, %arg5: memref<1x32xf32, #tpu.memory_space<vmem>>, %arg6: memref<1x32x96xbf16, #tpu.memory_space<vmem>>, %arg7: memref<1x1x96xf32, #tpu.memory_space<vmem>>, %arg8: memref<1x32x32xbf16, #tpu.memory_space<vmem>>, %arg9: memref<1x1x32xf32, #tpu.memory_space<vmem>>, %arg10: memref<1x1x32xf32, #tpu.memory_space<vmem>>, %arg11: memref<1x1x32xf32, #tpu.memory_space<vmem>>, %arg12: memref<1x32x64xbf16, #tpu.memory_space<vmem>>, %arg13: memref<1x1x64xf32, #tpu.memory_space<vmem>>, %arg14: memref<1x64x32xbf16, #tpu.memory_space<vmem>>, %arg15: memref<1x1x32xf32, #tpu.memory_space<vmem>>, %arg16: memref<1x1x32xf32, #tpu.memory_space<vmem>>, %arg17: memref<1x1x32xf32, #tpu.memory_space<vmem>>, %arg18: memref<32x32xbf16, #tpu.memory_space<vmem>>, %arg19: memref<1x32xf32, #tpu.memory_space<vmem>>, %arg20: memref<32x128xbf16, #tpu.memory_space<vmem>>, %arg21: memref<1x128xf32, #tpu.memory_space<vmem>>, %arg22: memref<2x8x128xf32, #tpu.memory_space<vmem>>, %arg23: memref<16x32xf32, #tpu.memory_space<vmem>>, %arg24: memref<2x8x32xf32, #tpu.memory_space<vmem>>) attributes {dimension_semantics = [#tpu.dimension_semantics<parallel>, #tpu.dimension_semantics<arbitrary>], iteration_bounds = array<i64: 1, 2>, scalar_prefetch = 0 : i64, scratch_operands = 2 : i64, tpu.core_type = #tpu.core_type<tc>, window_params = [{transform_indices = @transform_0, window_bounds = array<i64: 2, 8, 32>}, {transform_indices = @transform_1, window_bounds = array<i64: 2, 1, 8>}, {pipeline_mode = #tpu.pipeline_mode<synchronous>, transform_indices = @transform_2, window_bounds = array<i64: 1, 32>}, {pipeline_mode = #tpu.pipeline_mode<synchronous>, transform_indices = @transform_3, window_bounds = array<i64: 1, 32>}, {transform_indices = @transform_4, window_bounds = array<i64: 1, 32, 96>}, {transform_indices = @transform_5, window_bounds = array<i64: 1, 1, 96>}, {transform_indices = @transform_6, window_bounds = array<i64: 1, 32, 32>}, {transform_indices = @transform_7, window_bounds = array<i64: 1, 1, 32>}, {transform_indices = @transform_8, window_bounds = array<i64: 1, 1, 32>}, {transform_indices = @transform_9, window_bounds = array<i64: 1, 1, 32>}, {transform_indices = @transform_10, window_bounds = array<i64: 1, 32, 64>}, {transform_indices = @transform_11, window_bounds = array<i64: 1, 1, 64>}, {transform_indices = @transform_12, window_bounds = array<i64: 1, 64, 32>}, {transform_indices = @transform_13, window_bounds = array<i64: 1, 1, 32>}, {transform_indices = @transform_14, window_bounds = array<i64: 1, 1, 32>}, {transform_indices = @transform_15, window_bounds = array<i64: 1, 1, 32>}, {pipeline_mode = #tpu.pipeline_mode<synchronous>, transform_indices = @transform_16, window_bounds = array<i64: 32, 32>}, {pipeline_mode = #tpu.pipeline_mode<synchronous>, transform_indices = @transform_17, window_bounds = array<i64: 1, 32>}, {pipeline_mode = #tpu.pipeline_mode<synchronous>, transform_indices = @transform_18, window_bounds = array<i64: 32, 128>}, {pipeline_mode = #tpu.pipeline_mode<synchronous>, transform_indices = @transform_19, window_bounds = array<i64: 1, 128>}, {transform_indices = @transform_20, window_bounds = array<i64: 2, 8, 128>}]} {
    %c0_i32 = arith.constant 0 : i32
    %0 = arith.cmpi eq, %arg1, %c0_i32 : i32
    %1 = arith.extui %0 : i1 to i32
    %c0_i32_0 = arith.constant 0 : i32
    %2 = arith.cmpi ne, %1, %c0_i32_0 : i32
    scf.if %2 {
      %c0_88 = arith.constant 0 : index
      %c0_89 = arith.constant 0 : index
      %c0_90 = arith.constant 0 : index
      %201 = vector.load %arg2[%c0_88, %c0_89, %c0_90] : memref<2x8x32xf32, #tpu.memory_space<vmem>>, vector<2x8x32xf32>
      %202 = vector.shape_cast %201 : vector<2x8x32xf32> to vector<16x32xf32>
      %c0_91 = arith.constant 0 : index
      %c0_92 = arith.constant 0 : index
      %203 = vector.load %arg4[%c0_91, %c0_92] : memref<1x32xf32, #tpu.memory_space<vmem>>, vector<1x32xf32>
      %c0_93 = arith.constant 0 : index
      %c0_94 = arith.constant 0 : index
      %204 = vector.load %arg5[%c0_93, %c0_94] : memref<1x32xf32, #tpu.memory_space<vmem>>, vector<1x32xf32>
      %cst_95 = arith.constant dense<0.000000e+00> : vector<16xf32>
      %205 = vector.multi_reduction <add>, %202, %cst_95 [1] : vector<16x32xf32> to vector<16xf32>
      %206 = vector.shape_cast %205 : vector<16xf32> to vector<16x1xf32>
      %cst_96 = arith.constant 3.200000e+01 : f32
      %207 = vector.broadcast %cst_96 : f32 to vector<16x1xf32>
      %208 = arith.divf %206, %207 : vector<16x1xf32>
      %209 = arith.mulf %202, %202 : vector<16x32xf32>
      %cst_97 = arith.constant dense<0.000000e+00> : vector<16xf32>
      %210 = vector.multi_reduction <add>, %209, %cst_97 [1] : vector<16x32xf32> to vector<16xf32>
      %211 = vector.shape_cast %210 : vector<16xf32> to vector<16x1xf32>
      %cst_98 = arith.constant 3.200000e+01 : f32
      %212 = vector.broadcast %cst_98 : f32 to vector<16x1xf32>
      %213 = arith.divf %211, %212 : vector<16x1xf32>
      %214 = arith.mulf %208, %208 : vector<16x1xf32>
      %215 = arith.subf %213, %214 : vector<16x1xf32>
      %cst_99 = arith.constant 9.99999974E-6 : f32
      %216 = vector.broadcast %cst_99 : f32 to vector<16x1xf32>
      %217 = arith.addf %215, %216 : vector<16x1xf32>
      %218 = math.rsqrt %217 : vector<16x1xf32>
      %219 = vector.broadcast %218 : vector<16x1xf32> to vector<16x32xf32>
      %220 = vector.broadcast %203 : vector<1x32xf32> to vector<16x32xf32>
      %221 = arith.mulf %219, %220 : vector<16x32xf32>
      %222 = arith.mulf %202, %221 : vector<16x32xf32>
      %223 = vector.broadcast %208 : vector<16x1xf32> to vector<16x32xf32>
      %224 = arith.mulf %223, %221 : vector<16x32xf32>
      %225 = vector.broadcast %204 : vector<1x32xf32> to vector<16x32xf32>
      %226 = arith.subf %225, %224 : vector<16x32xf32>
      %227 = arith.addf %222, %226 : vector<16x32xf32>
      %c0_100 = arith.constant 0 : index
      %c0_101 = arith.constant 0 : index
      %228 = vector.load %arg23[%c0_100, %c0_101] : memref<16x32xf32, #tpu.memory_space<vmem>>, vector<16x32xf32>
      tpu.vector_store %arg23[%c0_100, %c0_101], %227 {strides = array<i32>} : memref<16x32xf32, #tpu.memory_space<vmem>>, vector<16x32xf32>,
    } else {
    }
    %c0 = arith.constant 0 : index
    %c0_1 = arith.constant 0 : index
    %3 = vector.load %arg23[%c0, %c0_1] : memref<16x32xf32, #tpu.memory_space<vmem>>, vector<16x32xf32>
    %4 = arith.truncf %3 : vector<16x32xf32> to vector<16x32xbf16>
    %c0_2 = arith.constant 0 : index
    %c0_3 = arith.constant 0 : index
    %c0_4 = arith.constant 0 : index
    %5 = vector.load %arg6[%c0_2, %c0_3, %c0_4] : memref<1x32x96xbf16, #tpu.memory_space<vmem>>, vector<1x32x96xbf16>
    %6 = vector.shape_cast %5 : vector<1x32x96xbf16> to vector<32x96xbf16>
    %cst = arith.constant dense<0.000000e+00> : vector<16x96xf32>
    %7 = tpu.matmul %4, %6, %cst {dimension_numbers = #tpu.dot_dimension_numbers<[1], [0], [0], [1], [0, 0, 1, 1], [], []>} : vector<16x32xbf16>, vector<32x96xbf16>, vector<16x96xf32> -> vector<16x96xf32>
    %c0_5 = arith.constant 0 : index
    %c0_6 = arith.constant 0 : index
    %c0_7 = arith.constant 0 : index
    %8 = vector.load %arg7[%c0_5, %c0_6, %c0_7] : memref<1x1x96xf32, #tpu.memory_space<vmem>>, vector<1x1x96xf32>
    %9 = vector.shape_cast %8 : vector<1x1x96xf32> to vector<1x96xf32>
    %10 = vector.broadcast %9 : vector<1x96xf32> to vector<16x96xf32>
    %11 = arith.addf %7, %10 : vector<16x96xf32>
    %12 = vector.extract_strided_slice %11 {offsets = [0, 0], sizes = [16, 32], strides = [1, 1]} : vector<16x96xf32> to vector<16x32xf32>
    %13 = vector.shape_cast %12 : vector<16x32xf32> to vector<2x8x32xf32>
    %14 = vector.extract_strided_slice %11 {offsets = [0, 32], sizes = [16, 32], strides = [1, 1]} : vector<16x96xf32> to vector<16x32xf32>
    %15 = vector.shape_cast %14 : vector<16x32xf32> to vector<2x8x32xf32>
    %16 = vector.extract_strided_slice %11 {offsets = [0, 64], sizes = [16, 32], strides = [1, 1]} : vector<16x96xf32> to vector<16x32xf32>
    %17 = vector.shape_cast %16 : vector<16x32xf32> to vector<2x8x32xf32>
    %c0_8 = arith.constant 0 : index
    %c0_9 = arith.constant 0 : index
    %c0_10 = arith.constant 0 : index
    %18 = vector.load %arg3[%c0_8, %c0_9, %c0_10] : memref<2x1x8xf32, #tpu.memory_space<vmem>>, vector<2x1x8xf32>
    %19 = vector.extract_strided_slice %13 {offsets = [0, 0, 0], sizes = [2, 8, 8], strides = [1, 1, 1]} : vector<2x8x32xf32> to vector<2x8x8xf32>
    %20 = arith.truncf %19 : vector<2x8x8xf32> to vector<2x8x8xbf16>
    %21 = vector.extract_strided_slice %15 {offsets = [0, 0, 0], sizes = [2, 8, 8], strides = [1, 1, 1]} : vector<2x8x32xf32> to vector<2x8x8xf32>
    %22 = arith.truncf %21 : vector<2x8x8xf32> to vector<2x8x8xbf16>
    %23 = vector.extract_strided_slice %17 {offsets = [0, 0, 0], sizes = [2, 8, 8], strides = [1, 1, 1]} : vector<2x8x32xf32> to vector<2x8x8xf32>
    %24 = arith.truncf %23 : vector<2x8x8xf32> to vector<2x8x8xbf16>
    "tpu.trace_start"() <{level = 10 : i32, message = "bqd,bkd->bqk"}> : () -> ()
    %cst_11 = arith.constant dense<0.000000e+00> : vector<2x8x8xf32>
    %25 = tpu.matmul %20, %22, %cst_11 {dimension_numbers = #tpu.dot_dimension_numbers<[2], [2], [1], [1], [0, 0, 0, 1, 1, 1], [0], [0]>} : vector<2x8x8xbf16>, vector<2x8x8xbf16>, vector<2x8x8xf32> -> vector<2x8x8xf32>
    "tpu.trace_stop"() : () -> ()
    %26 = vector.broadcast %18 : vector<2x1x8xf32> to vector<2x8x8xf32>
    %27 = arith.addf %25, %26 : vector<2x8x8xf32>
    %cst_12 = arith.constant dense<0xFF800000> : vector<2x8xf32>
    %28 = vector.multi_reduction <maximumf>, %27, %cst_12 [2] : vector<2x8x8xf32> to vector<2x8xf32>
    %29 = vector.shape_cast %28 : vector<2x8xf32> to vector<2x8x1xf32>
    %30 = vector.broadcast %29 : vector<2x8x1xf32> to vector<2x8x8xf32>
    %31 = arith.subf %27, %30 : vector<2x8x8xf32>
    %32 = math.exp %31 : vector<2x8x8xf32>
    %cst_13 = arith.constant dense<0.000000e+00> : vector<2x8xf32>
    %33 = vector.multi_reduction <add>, %32, %cst_13 [2] : vector<2x8x8xf32> to vector<2x8xf32>
    %34 = vector.shape_cast %33 : vector<2x8xf32> to vector<2x8x1xf32>
    %35 = tpu.reciprocal %34 {approx = true} : vector<2x8x1xf32> -> vector<2x8x1xf32>
    %36 = vector.broadcast %35 : vector<2x8x1xf32> to vector<2x8x8xf32>
    %37 = arith.mulf %32, %36 : vector<2x8x8xf32>
    %38 = arith.truncf %37 : vector<2x8x8xf32> to vector<2x8x8xbf16>
    "tpu.trace_start"() <{level = 10 : i32, message = "bqk,bkd->bqd"}> : () -> ()
    %cst_14 = arith.constant dense<0.000000e+00> : vector<2x8x8xf32>
    %39 = tpu.matmul %38, %24, %cst_14 {dimension_numbers = #tpu.dot_dimension_numbers<[2], [1], [1], [2], [0, 0, 0, 1, 1, 2], [0], [0]>} : vector<2x8x8xbf16>, vector<2x8x8xbf16>, vector<2x8x8xf32> -> vector<2x8x8xf32>
    "tpu.trace_stop"() : () -> ()
    %c0_15 = arith.constant 0 : index
    %c0_16 = arith.constant 0 : index
    %c0_17 = arith.constant 0 : index
    %40 = vector.load %arg24[%c0_15, %c0_16, %c0_17] : memref<2x8x32xf32, #tpu.memory_space<vmem>>, vector<2x8x8xf32>
    tpu.vector_store %arg24[%c0_15, %c0_16, %c0_17], %39 {strides = array<i32>} : memref<2x8x32xf32, #tpu.memory_space<vmem>>, vector<2x8x8xf32>,
    %41 = vector.extract_strided_slice %13 {offsets = [0, 0, 8], sizes = [2, 8, 8], strides = [1, 1, 1]} : vector<2x8x32xf32> to vector<2x8x8xf32>
    %42 = arith.truncf %41 : vector<2x8x8xf32> to vector<2x8x8xbf16>
    %43 = vector.extract_strided_slice %15 {offsets = [0, 0, 8], sizes = [2, 8, 8], strides = [1, 1, 1]} : vector<2x8x32xf32> to vector<2x8x8xf32>
    %44 = arith.truncf %43 : vector<2x8x8xf32> to vector<2x8x8xbf16>
    %45 = vector.extract_strided_slice %17 {offsets = [0, 0, 8], sizes = [2, 8, 8], strides = [1, 1, 1]} : vector<2x8x32xf32> to vector<2x8x8xf32>
    %46 = arith.truncf %45 : vector<2x8x8xf32> to vector<2x8x8xbf16>
    "tpu.trace_start"() <{level = 10 : i32, message = "bqd,bkd->bqk"}> : () -> ()
    %cst_18 = arith.constant dense<0.000000e+00> : vector<2x8x8xf32>
    %47 = tpu.matmul %42, %44, %cst_18 {dimension_numbers = #tpu.dot_dimension_numbers<[2], [2], [1], [1], [0, 0, 0, 1, 1, 1], [0], [0]>} : vector<2x8x8xbf16>, vector<2x8x8xbf16>, vector<2x8x8xf32> -> vector<2x8x8xf32>
    "tpu.trace_stop"() : () -> ()
    %48 = vector.broadcast %18 : vector<2x1x8xf32> to vector<2x8x8xf32>
    %49 = arith.addf %47, %48 : vector<2x8x8xf32>
    %cst_19 = arith.constant dense<0xFF800000> : vector<2x8xf32>
    %50 = vector.multi_reduction <maximumf>, %49, %cst_19 [2] : vector<2x8x8xf32> to vector<2x8xf32>
    %51 = vector.shape_cast %50 : vector<2x8xf32> to vector<2x8x1xf32>
    %52 = vector.broadcast %51 : vector<2x8x1xf32> to vector<2x8x8xf32>
    %53 = arith.subf %49, %52 : vector<2x8x8xf32>
    %54 = math.exp %53 : vector<2x8x8xf32>
    %cst_20 = arith.constant dense<0.000000e+00> : vector<2x8xf32>
    %55 = vector.multi_reduction <add>, %54, %cst_20 [2] : vector<2x8x8xf32> to vector<2x8xf32>
    %56 = vector.shape_cast %55 : vector<2x8xf32> to vector<2x8x1xf32>
    %57 = tpu.reciprocal %56 {approx = true} : vector<2x8x1xf32> -> vector<2x8x1xf32>
    %58 = vector.broadcast %57 : vector<2x8x1xf32> to vector<2x8x8xf32>
    %59 = arith.mulf %54, %58 : vector<2x8x8xf32>
    %60 = arith.truncf %59 : vector<2x8x8xf32> to vector<2x8x8xbf16>
    "tpu.trace_start"() <{level = 10 : i32, message = "bqk,bkd->bqd"}> : () -> ()
    %cst_21 = arith.constant dense<0.000000e+00> : vector<2x8x8xf32>
    %61 = tpu.matmul %60, %46, %cst_21 {dimension_numbers = #tpu.dot_dimension_numbers<[2], [1], [1], [2], [0, 0, 0, 1, 1, 2], [0], [0]>} : vector<2x8x8xbf16>, vector<2x8x8xbf16>, vector<2x8x8xf32> -> vector<2x8x8xf32>
    "tpu.trace_stop"() : () -> ()
    %c0_22 = arith.constant 0 : index
    %c0_23 = arith.constant 0 : index
    %c8 = arith.constant 8 : index
    %62 = vector.load %arg24[%c0_22, %c0_23, %c8] : memref<2x8x32xf32, #tpu.memory_space<vmem>>, vector<2x8x8xf32>
    tpu.vector_store %arg24[%c0_22, %c0_23, %c8], %61 {strides = array<i32>} : memref<2x8x32xf32, #tpu.memory_space<vmem>>, vector<2x8x8xf32>,
    %63 = vector.extract_strided_slice %13 {offsets = [0, 0, 16], sizes = [2, 8, 8], strides = [1, 1, 1]} : vector<2x8x32xf32> to vector<2x8x8xf32>
    %64 = arith.truncf %63 : vector<2x8x8xf32> to vector<2x8x8xbf16>
    %65 = vector.extract_strided_slice %15 {offsets = [0, 0, 16], sizes = [2, 8, 8], strides = [1, 1, 1]} : vector<2x8x32xf32> to vector<2x8x8xf32>
    %66 = arith.truncf %65 : vector<2x8x8xf32> to vector<2x8x8xbf16>
    %67 = vector.extract_strided_slice %17 {offsets = [0, 0, 16], sizes = [2, 8, 8], strides = [1, 1, 1]} : vector<2x8x32xf32> to vector<2x8x8xf32>
    %68 = arith.truncf %67 : vector<2x8x8xf32> to vector<2x8x8xbf16>
    "tpu.trace_start"() <{level = 10 : i32, message = "bqd,bkd->bqk"}> : () -> ()
    %cst_24 = arith.constant dense<0.000000e+00> : vector<2x8x8xf32>
    %69 = tpu.matmul %64, %66, %cst_24 {dimension_numbers = #tpu.dot_dimension_numbers<[2], [2], [1], [1], [0, 0, 0, 1, 1, 1], [0], [0]>} : vector<2x8x8xbf16>, vector<2x8x8xbf16>, vector<2x8x8xf32> -> vector<2x8x8xf32>
    "tpu.trace_stop"() : () -> ()
    %70 = vector.broadcast %18 : vector<2x1x8xf32> to vector<2x8x8xf32>
    %71 = arith.addf %69, %70 : vector<2x8x8xf32>
    %cst_25 = arith.constant dense<0xFF800000> : vector<2x8xf32>
    %72 = vector.multi_reduction <maximumf>, %71, %cst_25 [2] : vector<2x8x8xf32> to vector<2x8xf32>
    %73 = vector.shape_cast %72 : vector<2x8xf32> to vector<2x8x1xf32>
    %74 = vector.broadcast %73 : vector<2x8x1xf32> to vector<2x8x8xf32>
    %75 = arith.subf %71, %74 : vector<2x8x8xf32>
    %76 = math.exp %75 : vector<2x8x8xf32>
    %cst_26 = arith.constant dense<0.000000e+00> : vector<2x8xf32>
    %77 = vector.multi_reduction <add>, %76, %cst_26 [2] : vector<2x8x8xf32> to vector<2x8xf32>
    %78 = vector.shape_cast %77 : vector<2x8xf32> to vector<2x8x1xf32>
    %79 = tpu.reciprocal %78 {approx = true} : vector<2x8x1xf32> -> vector<2x8x1xf32>
    %80 = vector.broadcast %79 : vector<2x8x1xf32> to vector<2x8x8xf32>
    %81 = arith.mulf %76, %80 : vector<2x8x8xf32>
    %82 = arith.truncf %81 : vector<2x8x8xf32> to vector<2x8x8xbf16>
    "tpu.trace_start"() <{level = 10 : i32, message = "bqk,bkd->bqd"}> : () -> ()
    %cst_27 = arith.constant dense<0.000000e+00> : vector<2x8x8xf32>
    %83 = tpu.matmul %82, %68, %cst_27 {dimension_numbers = #tpu.dot_dimension_numbers<[2], [1], [1], [2], [0, 0, 0, 1, 1, 2], [0], [0]>} : vector<2x8x8xbf16>, vector<2x8x8xbf16>, vector<2x8x8xf32> -> vector<2x8x8xf32>
    "tpu.trace_stop"() : () -> ()
    %c0_28 = arith.constant 0 : index
    %c0_29 = arith.constant 0 : index
    %c16 = arith.constant 16 : index
    %84 = vector.load %arg24[%c0_28, %c0_29, %c16] : memref<2x8x32xf32, #tpu.memory_space<vmem>>, vector<2x8x8xf32>
    tpu.vector_store %arg24[%c0_28, %c0_29, %c16], %83 {strides = array<i32>} : memref<2x8x32xf32, #tpu.memory_space<vmem>>, vector<2x8x8xf32>,
    %85 = vector.extract_strided_slice %13 {offsets = [0, 0, 24], sizes = [2, 8, 8], strides = [1, 1, 1]} : vector<2x8x32xf32> to vector<2x8x8xf32>
    %86 = arith.truncf %85 : vector<2x8x8xf32> to vector<2x8x8xbf16>
    %87 = vector.extract_strided_slice %15 {offsets = [0, 0, 24], sizes = [2, 8, 8], strides = [1, 1, 1]} : vector<2x8x32xf32> to vector<2x8x8xf32>
    %88 = arith.truncf %87 : vector<2x8x8xf32> to vector<2x8x8xbf16>
    %89 = vector.extract_strided_slice %17 {offsets = [0, 0, 24], sizes = [2, 8, 8], strides = [1, 1, 1]} : vector<2x8x32xf32> to vector<2x8x8xf32>
    %90 = arith.truncf %89 : vector<2x8x8xf32> to vector<2x8x8xbf16>
    "tpu.trace_start"() <{level = 10 : i32, message = "bqd,bkd->bqk"}> : () -> ()
    %cst_30 = arith.constant dense<0.000000e+00> : vector<2x8x8xf32>
    %91 = tpu.matmul %86, %88, %cst_30 {dimension_numbers = #tpu.dot_dimension_numbers<[2], [2], [1], [1], [0, 0, 0, 1, 1, 1], [0], [0]>} : vector<2x8x8xbf16>, vector<2x8x8xbf16>, vector<2x8x8xf32> -> vector<2x8x8xf32>
    "tpu.trace_stop"() : () -> ()
    %92 = vector.broadcast %18 : vector<2x1x8xf32> to vector<2x8x8xf32>
    %93 = arith.addf %91, %92 : vector<2x8x8xf32>
    %cst_31 = arith.constant dense<0xFF800000> : vector<2x8xf32>
    %94 = vector.multi_reduction <maximumf>, %93, %cst_31 [2] : vector<2x8x8xf32> to vector<2x8xf32>
    %95 = vector.shape_cast %94 : vector<2x8xf32> to vector<2x8x1xf32>
    %96 = vector.broadcast %95 : vector<2x8x1xf32> to vector<2x8x8xf32>
    %97 = arith.subf %93, %96 : vector<2x8x8xf32>
    %98 = math.exp %97 : vector<2x8x8xf32>
    %cst_32 = arith.constant dense<0.000000e+00> : vector<2x8xf32>
    %99 = vector.multi_reduction <add>, %98, %cst_32 [2] : vector<2x8x8xf32> to vector<2x8xf32>
    %100 = vector.shape_cast %99 : vector<2x8xf32> to vector<2x8x1xf32>
    %101 = tpu.reciprocal %100 {approx = true} : vector<2x8x1xf32> -> vector<2x8x1xf32>
    %102 = vector.broadcast %101 : vector<2x8x1xf32> to vector<2x8x8xf32>
    %103 = arith.mulf %98, %102 : vector<2x8x8xf32>
    %104 = arith.truncf %103 : vector<2x8x8xf32> to vector<2x8x8xbf16>
    "tpu.trace_start"() <{level = 10 : i32, message = "bqk,bkd->bqd"}> : () -> ()
    %cst_33 = arith.constant dense<0.000000e+00> : vector<2x8x8xf32>
    %105 = tpu.matmul %104, %90, %cst_33 {dimension_numbers = #tpu.dot_dimension_numbers<[2], [1], [1], [2], [0, 0, 0, 1, 1, 2], [0], [0]>} : vector<2x8x8xbf16>, vector<2x8x8xbf16>, vector<2x8x8xf32> -> vector<2x8x8xf32>
    "tpu.trace_stop"() : () -> ()
    %c0_34 = arith.constant 0 : index
    %c0_35 = arith.constant 0 : index
    %c24 = arith.constant 24 : index
    %106 = vector.load %arg24[%c0_34, %c0_35, %c24] : memref<2x8x32xf32, #tpu.memory_space<vmem>>, vector<2x8x8xf32>
    tpu.vector_store %arg24[%c0_34, %c0_35, %c24], %105 {strides = array<i32>} : memref<2x8x32xf32, #tpu.memory_space<vmem>>, vector<2x8x8xf32>,
    %c0_36 = arith.constant 0 : index
    %c0_37 = arith.constant 0 : index
    %c0_38 = arith.constant 0 : index
    %107 = vector.load %arg24[%c0_36, %c0_37, %c0_38] : memref<2x8x32xf32, #tpu.memory_space<vmem>>, vector<2x8x32xf32>
    %108 = vector.shape_cast %107 : vector<2x8x32xf32> to vector<16x32xf32>
    %109 = arith.truncf %108 : vector<16x32xf32> to vector<16x32xbf16>
    %c0_39 = arith.constant 0 : index
    %c0_40 = arith.constant 0 : index
    %c0_41 = arith.constant 0 : index
    %110 = vector.load %arg8[%c0_39, %c0_40, %c0_41] : memref<1x32x32xbf16, #tpu.memory_space<vmem>>, vector<1x32x32xbf16>
    %111 = vector.shape_cast %110 : vector<1x32x32xbf16> to vector<32x32xbf16>
    %cst_42 = arith.constant dense<0.000000e+00> : vector<16x32xf32>
    %112 = tpu.matmul %109, %111, %cst_42 {dimension_numbers = #tpu.dot_dimension_numbers<[1], [0], [0], [1], [0, 0, 1, 1], [], []>} : vector<16x32xbf16>, vector<32x32xbf16>, vector<16x32xf32> -> vector<16x32xf32>
    %c0_43 = arith.constant 0 : index
    %c0_44 = arith.constant 0 : index
    %c0_45 = arith.constant 0 : index
    %113 = vector.load %arg9[%c0_43, %c0_44, %c0_45] : memref<1x1x32xf32, #tpu.memory_space<vmem>>, vector<1x1x32xf32>
    %114 = vector.shape_cast %113 : vector<1x1x32xf32> to vector<1x32xf32>
    %115 = vector.broadcast %114 : vector<1x32xf32> to vector<16x32xf32>
    %116 = arith.addf %112, %115 : vector<16x32xf32>
    %117 = arith.addf %116, %3 : vector<16x32xf32>
    %c0_46 = arith.constant 0 : index
    %c0_47 = arith.constant 0 : index
    %c0_48 = arith.constant 0 : index
    %118 = vector.load %arg10[%c0_46, %c0_47, %c0_48] : memref<1x1x32xf32, #tpu.memory_space<vmem>>, vector<1x1x32xf32>
    %119 = vector.shape_cast %118 : vector<1x1x32xf32> to vector<1x32xf32>
    %c0_49 = arith.constant 0 : index
    %c0_50 = arith.constant 0 : index
    %c0_51 = arith.constant 0 : index
    %120 = vector.load %arg11[%c0_49, %c0_50, %c0_51] : memref<1x1x32xf32, #tpu.memory_space<vmem>>, vector<1x1x32xf32>
    %121 = vector.shape_cast %120 : vector<1x1x32xf32> to vector<1x32xf32>
    %cst_52 = arith.constant dense<0.000000e+00> : vector<16xf32>
    %122 = vector.multi_reduction <add>, %117, %cst_52 [1] : vector<16x32xf32> to vector<16xf32>
    %123 = vector.shape_cast %122 : vector<16xf32> to vector<16x1xf32>
    %cst_53 = arith.constant 3.200000e+01 : f32
    %124 = vector.broadcast %cst_53 : f32 to vector<16x1xf32>
    %125 = arith.divf %123, %124 : vector<16x1xf32>
    %126 = arith.mulf %117, %117 : vector<16x32xf32>
    %cst_54 = arith.constant dense<0.000000e+00> : vector<16xf32>
    %127 = vector.multi_reduction <add>, %126, %cst_54 [1] : vector<16x32xf32> to vector<16xf32>
    %128 = vector.shape_cast %127 : vector<16xf32> to vector<16x1xf32>
    %cst_55 = arith.constant 3.200000e+01 : f32
    %129 = vector.broadcast %cst_55 : f32 to vector<16x1xf32>
    %130 = arith.divf %128, %129 : vector<16x1xf32>
    %131 = arith.mulf %125, %125 : vector<16x1xf32>
    %132 = arith.subf %130, %131 : vector<16x1xf32>
    %cst_56 = arith.constant 9.99999974E-6 : f32
    %133 = vector.broadcast %cst_56 : f32 to vector<16x1xf32>
    %134 = arith.addf %132, %133 : vector<16x1xf32>
    %135 = math.rsqrt %134 : vector<16x1xf32>
    %136 = vector.broadcast %135 : vector<16x1xf32> to vector<16x32xf32>
    %137 = vector.broadcast %119 : vector<1x32xf32> to vector<16x32xf32>
    %138 = arith.mulf %136, %137 : vector<16x32xf32>
    %139 = arith.mulf %117, %138 : vector<16x32xf32>
    %140 = vector.broadcast %125 : vector<16x1xf32> to vector<16x32xf32>
    %141 = arith.mulf %140, %138 : vector<16x32xf32>
    %142 = vector.broadcast %121 : vector<1x32xf32> to vector<16x32xf32>
    %143 = arith.subf %142, %141 : vector<16x32xf32>
    %144 = arith.addf %139, %143 : vector<16x32xf32>
    %145 = arith.truncf %144 : vector<16x32xf32> to vector<16x32xbf16>
    %c0_57 = arith.constant 0 : index
    %c0_58 = arith.constant 0 : index
    %c0_59 = arith.constant 0 : index
    %146 = vector.load %arg12[%c0_57, %c0_58, %c0_59] : memref<1x32x64xbf16, #tpu.memory_space<vmem>>, vector<1x32x64xbf16>
    %147 = vector.shape_cast %146 : vector<1x32x64xbf16> to vector<32x64xbf16>
    %cst_60 = arith.constant dense<0.000000e+00> : vector<16x64xf32>
    %148 = tpu.matmul %145, %147, %cst_60 {dimension_numbers = #tpu.dot_dimension_numbers<[1], [0], [0], [1], [0, 0, 1, 1], [], []>} : vector<16x32xbf16>, vector<32x64xbf16>, vector<16x64xf32> -> vector<16x64xf32>
    %c0_61 = arith.constant 0 : index
    %c0_62 = arith.constant 0 : index
    %c0_63 = arith.constant 0 : index
    %149 = vector.load %arg13[%c0_61, %c0_62, %c0_63] : memref<1x1x64xf32, #tpu.memory_space<vmem>>, vector<1x1x64xf32>
    %150 = vector.shape_cast %149 : vector<1x1x64xf32> to vector<1x64xf32>
    %151 = vector.broadcast %150 : vector<1x64xf32> to vector<16x64xf32>
    %152 = arith.addf %148, %151 : vector<16x64xf32>
    %cst_64 = arith.constant 5.000000e-01 : f32
    %153 = vector.broadcast %cst_64 : f32 to vector<16x64xf32>
    %154 = arith.mulf %153, %152 : vector<16x64xf32>
    %cst_65 = arith.constant 0.707106769 : f32
    %155 = vector.broadcast %cst_65 : f32 to vector<16x64xf32>
    %156 = arith.mulf %152, %155 : vector<16x64xf32>
    %157 = math.erf %156 : vector<16x64xf32>
    %cst_66 = arith.constant 1.000000e+00 : f32
    %158 = vector.broadcast %cst_66 : f32 to vector<16x64xf32>
    %159 = arith.addf %158, %157 : vector<16x64xf32>
    %160 = arith.mulf %154, %159 : vector<16x64xf32>
    %161 = arith.truncf %160 : vector<16x64xf32> to vector<16x64xbf16>
    %c0_67 = arith.constant 0 : index
    %c0_68 = arith.constant 0 : index
    %c0_69 = arith.constant 0 : index
    %162 = vector.load %arg14[%c0_67, %c0_68, %c0_69] : memref<1x64x32xbf16, #tpu.memory_space<vmem>>, vector<1x64x32xbf16>
    %163 = vector.shape_cast %162 : vector<1x64x32xbf16> to vector<64x32xbf16>
    %cst_70 = arith.constant dense<0.000000e+00> : vector<16x32xf32>
    %164 = tpu.matmul %161, %163, %cst_70 {dimension_numbers = #tpu.dot_dimension_numbers<[1], [0], [0], [1], [0, 0, 1, 1], [], []>} : vector<16x64xbf16>, vector<64x32xbf16>, vector<16x32xf32> -> vector<16x32xf32>
    %c0_71 = arith.constant 0 : index
    %c0_72 = arith.constant 0 : index
    %c0_73 = arith.constant 0 : index
    %165 = vector.load %arg15[%c0_71, %c0_72, %c0_73] : memref<1x1x32xf32, #tpu.memory_space<vmem>>, vector<1x1x32xf32>
    %166 = vector.shape_cast %165 : vector<1x1x32xf32> to vector<1x32xf32>
    %167 = vector.broadcast %166 : vector<1x32xf32> to vector<16x32xf32>
    %168 = arith.addf %164, %167 : vector<16x32xf32>
    %169 = arith.addf %168, %144 : vector<16x32xf32>
    %c0_74 = arith.constant 0 : index
    %c0_75 = arith.constant 0 : index
    %c0_76 = arith.constant 0 : index
    %170 = vector.load %arg16[%c0_74, %c0_75, %c0_76] : memref<1x1x32xf32, #tpu.memory_space<vmem>>, vector<1x1x32xf32>
    %171 = vector.shape_cast %170 : vector<1x1x32xf32> to vector<1x32xf32>
    %c0_77 = arith.constant 0 : index
    %c0_78 = arith.constant 0 : index
    %c0_79 = arith.constant 0 : index
    %172 = vector.load %arg17[%c0_77, %c0_78, %c0_79] : memref<1x1x32xf32, #tpu.memory_space<vmem>>, vector<1x1x32xf32>
    %173 = vector.shape_cast %172 : vector<1x1x32xf32> to vector<1x32xf32>
    %cst_80 = arith.constant dense<0.000000e+00> : vector<16xf32>
    %174 = vector.multi_reduction <add>, %169, %cst_80 [1] : vector<16x32xf32> to vector<16xf32>
    %175 = vector.shape_cast %174 : vector<16xf32> to vector<16x1xf32>
    %cst_81 = arith.constant 3.200000e+01 : f32
    %176 = vector.broadcast %cst_81 : f32 to vector<16x1xf32>
    %177 = arith.divf %175, %176 : vector<16x1xf32>
    %178 = arith.mulf %169, %169 : vector<16x32xf32>
    %cst_82 = arith.constant dense<0.000000e+00> : vector<16xf32>
    %179 = vector.multi_reduction <add>, %178, %cst_82 [1] : vector<16x32xf32> to vector<16xf32>
    %180 = vector.shape_cast %179 : vector<16xf32> to vector<16x1xf32>
    %cst_83 = arith.constant 3.200000e+01 : f32
    %181 = vector.broadcast %cst_83 : f32 to vector<16x1xf32>
    %182 = arith.divf %180, %181 : vector<16x1xf32>
    %183 = arith.mulf %177, %177 : vector<16x1xf32>
    %184 = arith.subf %182, %183 : vector<16x1xf32>
    %cst_84 = arith.constant 9.99999974E-6 : f32
    %185 = vector.broadcast %cst_84 : f32 to vector<16x1xf32>
    %186 = arith.addf %184, %185 : vector<16x1xf32>
    %187 = math.rsqrt %186 : vector<16x1xf32>
    %188 = vector.broadcast %187 : vector<16x1xf32> to vector<16x32xf32>
    %189 = vector.broadcast %171 : vector<1x32xf32> to vector<16x32xf32>
    %190 = arith.mulf %188, %189 : vector<16x32xf32>
    %191 = arith.mulf %169, %190 : vector<16x32xf32>
    %192 = vector.broadcast %177 : vector<16x1xf32> to vector<16x32xf32>
    %193 = arith.mulf %192, %190 : vector<16x32xf32>
    %194 = vector.broadcast %173 : vector<1x32xf32> to vector<16x32xf32>
    %195 = arith.subf %194, %193 : vector<16x32xf32>
    %196 = arith.addf %191, %195 : vector<16x32xf32>
    %c0_85 = arith.constant 0 : index
    %c0_86 = arith.constant 0 : index
    %197 = vector.load %arg23[%c0_85, %c0_86] : memref<16x32xf32, #tpu.memory_space<vmem>>, vector<16x32xf32>
    tpu.vector_store %arg23[%c0_85, %c0_86], %196 {strides = array<i32>} : memref<16x32xf32, #tpu.memory_space<vmem>>, vector<16x32xf32>,
    %c1_i32 = arith.constant 1 : i32
    %198 = arith.cmpi eq, %arg1, %c1_i32 : i32
    %199 = arith.extui %198 : i1 to i32
    %c0_i32_87 = arith.constant 0 : i32
    %200 = arith.cmpi ne, %199, %c0_i32_87 : i32
    scf.if %200 {
      %201 = arith.truncf %196 : vector<16x32xf32> to vector<16x32xbf16>
      %c0_88 = arith.constant 0 : index
      %c0_89 = arith.constant 0 : index
      %202 = vector.load %arg18[%c0_88, %c0_89] : memref<32x32xbf16, #tpu.memory_space<vmem>>, vector<32x32xbf16>
      %cst_90 = arith.constant dense<0.000000e+00> : vector<16x32xf32>
      %203 = tpu.matmul %201, %202, %cst_90 {dimension_numbers = #tpu.dot_dimension_numbers<[1], [0], [0], [1], [0, 0, 1, 1], [], []>} : vector<16x32xbf16>, vector<32x32xbf16>, vector<16x32xf32> -> vector<16x32xf32>
      %c0_91 = arith.constant 0 : index
      %c0_92 = arith.constant 0 : index
      %204 = vector.load %arg19[%c0_91, %c0_92] : memref<1x32xf32, #tpu.memory_space<vmem>>, vector<1x32xf32>
      %205 = vector.broadcast %204 : vector<1x32xf32> to vector<16x32xf32>
      %206 = arith.addf %203, %205 : vector<16x32xf32>
      %207 = math.tanh %206 : vector<16x32xf32>
      %208 = arith.truncf %207 : vector<16x32xf32> to vector<16x32xbf16>
      %c0_93 = arith.constant 0 : index
      %c0_94 = arith.constant 0 : index
      %209 = vector.load %arg20[%c0_93, %c0_94] : memref<32x128xbf16, #tpu.memory_space<vmem>>, vector<32x128xbf16>
      %cst_95 = arith.constant dense<0.000000e+00> : vector<16x128xf32>
      %210 = tpu.matmul %208, %209, %cst_95 {dimension_numbers = #tpu.dot_dimension_numbers<[1], [0], [0], [1], [0, 0, 1, 1], [], []>} : vector<16x32xbf16>, vector<32x128xbf16>, vector<16x128xf32> -> vector<16x128xf32>
      %c0_96 = arith.constant 0 : index
      %c0_97 = arith.constant 0 : index
      %211 = vector.load %arg21[%c0_96, %c0_97] : memref<1x128xf32, #tpu.memory_space<vmem>>, vector<1x128xf32>
      %212 = vector.broadcast %211 : vector<1x128xf32> to vector<16x128xf32>
      %213 = arith.addf %210, %212 : vector<16x128xf32>
      %214 = vector.shape_cast %213 : vector<16x128xf32> to vector<2x8x128xf32>
      %c0_98 = arith.constant 0 : index
      %c0_99 = arith.constant 0 : index
      %c0_100 = arith.constant 0 : index
      %215 = vector.load %arg22[%c0_98, %c0_99, %c0_100] : memref<2x8x128xf32, #tpu.memory_space<vmem>>, vector<2x8x128xf32>
      tpu.vector_store %arg22[%c0_98, %c0_99, %c0_100], %214 {strides = array<i32>} : memref<2x8x128xf32, #tpu.memory_space<vmem>>, vector<2x8x128xf32>,
    } else {
    }
    return
  }
  func.func @transform_0(%arg0: i32, %arg1: i32) -> (i32, i32, i32) {
    %c0_i32 = arith.constant 0 : i32
    %c0_i32_0 = arith.constant 0 : i32
    %c0_i32_1 = arith.constant 0 : i32
    return %arg0, %c0_i32, %c0_i32_0 : i32, i32, i32
  }
  func.func @transform_1(%arg0: i32, %arg1: i32) -> (i32, i32, i32) {
    %c0_i32 = arith.constant 0 : i32
    %c0_i32_0 = arith.constant 0 : i32
    %c0_i32_1 = arith.constant 0 : i32
    return %arg0, %c0_i32, %c0_i32_0 : i32, i32, i32
  }
  func.func @transform_2(%arg0: i32, %arg1: i32) -> (i32, i32) {
    %c0_i32 = arith.constant 0 : i32
    %c0_i32_0 = arith.constant 0 : i32
    %c0_i32_1 = arith.constant 0 : i32
    return %c0_i32, %c0_i32_0 : i32, i32
  }
  func.func @transform_3(%arg0: i32, %arg1: i32) -> (i32, i32) {
    %c0_i32 = arith.constant 0 : i32
    %c0_i32_0 = arith.constant 0 : i32
    %c0_i32_1 = arith.constant 0 : i32
    return %c0_i32, %c0_i32_0 : i32, i32
  }
  func.func @transform_4(%arg0: i32, %arg1: i32) -> (i32, i32, i32) {
    %c0_i32 = arith.constant 0 : i32
    %c0_i32_0 = arith.constant 0 : i32
    %c0_i32_1 = arith.constant 0 : i32
    return %arg1, %c0_i32, %c0_i32_0 : i32, i32, i32
  }
  func.func @transform_5(%arg0: i32, %arg1: i32) -> (i32, i32, i32) {
    %c0_i32 = arith.constant 0 : i32
    %c0_i32_0 = arith.constant 0 : i32
    %c0_i32_1 = arith.constant 0 : i32
    return %arg1, %c0_i32, %c0_i32_0 : i32, i32, i32
  }
  func.func @transform_6(%arg0: i32, %arg1: i32) -> (i32, i32, i32) {
    %c0_i32 = arith.constant 0 : i32
    %c0_i32_0 = arith.constant 0 : i32
    %c0_i32_1 = arith.constant 0 : i32
    return %arg1, %c0_i32, %c0_i32_0 : i32, i32, i32
  }
  func.func @transform_7(%arg0: i32, %arg1: i32) -> (i32, i32, i32) {
    %c0_i32 = arith.constant 0 : i32
    %c0_i32_0 = arith.constant 0 : i32
    %c0_i32_1 = arith.constant 0 : i32
    return %arg1, %c0_i32, %c0_i32_0 : i32, i32, i32
  }
  func.func @transform_8(%arg0: i32, %arg1: i32) -> (i32, i32, i32) {
    %c0_i32 = arith.constant 0 : i32
    %c0_i32_0 = arith.constant 0 : i32
    %c0_i32_1 = arith.constant 0 : i32
    return %arg1, %c0_i32, %c0_i32_0 : i32, i32, i32
  }
  func.func @transform_9(%arg0: i32, %arg1: i32) -> (i32, i32, i32) {
    %c0_i32 = arith.constant 0 : i32
    %c0_i32_0 = arith.constant 0 : i32
    %c0_i32_1 = arith.constant 0 : i32
    return %arg1, %c0_i32, %c0_i32_0 : i32, i32, i32
  }
  func.func @transform_10(%arg0: i32, %arg1: i32) -> (i32, i32, i32) {
    %c0_i32 = arith.constant 0 : i32
    %c0_i32_0 = arith.constant 0 : i32
    %c0_i32_1 = arith.constant 0 : i32
    return %arg1, %c0_i32, %c0_i32_0 : i32, i32, i32
  }
  func.func @transform_11(%arg0: i32, %arg1: i32) -> (i32, i32, i32) {
    %c0_i32 = arith.constant 0 : i32
    %c0_i32_0 = arith.constant 0 : i32
    %c0_i32_1 = arith.constant 0 : i32
    return %arg1, %c0_i32, %c0_i32_0 : i32, i32, i32
  }
  func.func @transform_12(%arg0: i32, %arg1: i32) -> (i32, i32, i32) {
    %c0_i32 = arith.constant 0 : i32
    %c0_i32_0 = arith.constant 0 : i32
    %c0_i32_1 = arith.constant 0 : i32
    return %arg1, %c0_i32, %c0_i32_0 : i32, i32, i32
  }
  func.func @transform_13(%arg0: i32, %arg1: i32) -> (i32, i32, i32) {
    %c0_i32 = arith.constant 0 : i32
    %c0_i32_0 = arith.constant 0 : i32
    %c0_i32_1 = arith.constant 0 : i32
    return %arg1, %c0_i32, %c0_i32_0 : i32, i32, i32
  }
  func.func @transform_14(%arg0: i32, %arg1: i32) -> (i32, i32, i32) {
    %c0_i32 = arith.constant 0 : i32
    %c0_i32_0 = arith.constant 0 : i32
    %c0_i32_1 = arith.constant 0 : i32
    return %arg1, %c0_i32, %c0_i32_0 : i32, i32, i32
  }
  func.func @transform_15(%arg0: i32, %arg1: i32) -> (i32, i32, i32) {
    %c0_i32 = arith.constant 0 : i32
    %c0_i32_0 = arith.constant 0 : i32
    %c0_i32_1 = arith.constant 0 : i32
    return %arg1, %c0_i32, %c0_i32_0 : i32, i32, i32
  }
  func.func @transform_16(%arg0: i32, %arg1: i32) -> (i32, i32) {
    %c0_i32 = arith.constant 0 : i32
    %c0_i32_0 = arith.constant 0 : i32
    %c0_i32_1 = arith.constant 0 : i32
    return %c0_i32, %c0_i32_0 : i32, i32
  }
  func.func @transform_17(%arg0: i32, %arg1: i32) -> (i32, i32) {
    %c0_i32 = arith.constant 0 : i32
    %c0_i32_0 = arith.constant 0 : i32
    %c0_i32_1 = arith.constant 0 : i32
    return %c0_i32, %c0_i32_0 : i32, i32
  }
  func.func @transform_18(%arg0: i32, %arg1: i32) -> (i32, i32) {
    %c0_i32 = arith.constant 0 : i32
    %c0_i32_0 = arith.constant 0 : i32
    %c0_i32_1 = arith.constant 0 : i32
    return %c0_i32, %c0_i32_0 : i32, i32
  }
  func.func @transform_19(%arg0: i32, %arg1: i32) -> (i32, i32) {
    %c0_i32 = arith.constant 0 : i32
    %c0_i32_0 = arith.constant 0 : i32
    %c0_i32_1 = arith.constant 0 : i32
    return %c0_i32, %c0_i32_0 : i32, i32
  }
  func.func @transform_20(%arg0: i32, %arg1: i32) -> (i32, i32, i32) {
    %c0_i32 = arith.constant 0 : i32
    %c0_i32_0 = arith.constant 0 : i32
    %c0_i32_1 = arith.constant 0 : i32
    return %arg0, %c0_i32, %c0_i32_0 : i32, i32, i32
  }
}

</mosaic_0001>

<llo_original>
// kernel: _lambda_.1
$region0: #{_lambda_.1}
  #allocation0 [shape = 'u32[]', space=smem, size = 0x4, offset = 0x4, fixed_abs, tag = 'smem constant byte address 0x4 - core index']
  #allocation1 [shape = 'u32[144,128]{1,0:T(1,128)}', space=vmem, size = 0x12000, scoped, tag = 'internal scratch']
  #allocation2 [shape = 'f32[16,32]{1,0:T(8,128)}', space=vmem, size = 0x2000, scoped, tag = 'scratch operand']
  #allocation3 [shape = 'f32[2,8,32]{2,1,0:T(8,128)}', space=vmem, size = 0x2000, scoped, tag = 'scratch operand']
  %s0 = inlined_call_operand.hbm [shape: f32[2,8,32], index: 0, kind: input, shape index: {}]
  %s1 = inlined_call_operand.hbm [shape: f32[2,1,8], index: 1, kind: input, shape index: {}]
  %s2 = inlined_call_operand.hbm [shape: f32[1,32], index: 2, kind: input, shape index: {}]
  %s3 = inlined_call_operand.hbm [shape: f32[1,32], index: 3, kind: input, shape index: {}]
  %s4 = inlined_call_operand.hbm [shape: bf16[2,32,96], index: 4, kind: input, shape index: {}]
  %s5 = inlined_call_operand.hbm [shape: f32[2,1,96], index: 5, kind: input, shape index: {}]
  %s6 = inlined_call_operand.hbm [shape: bf16[2,32,32], index: 6, kind: input, shape index: {}]
  %s7 = inlined_call_operand.hbm [shape: f32[2,1,32], index: 7, kind: input, shape index: {}]
  %s8 = inlined_call_operand.hbm [shape: f32[2,1,32], index: 8, kind: input, shape index: {}]
  %s9 = inlined_call_operand.hbm [shape: f32[2,1,32], index: 9, kind: input, shape index: {}]
  %s10 = inlined_call_operand.hbm [shape: bf16[2,32,64], index: 10, kind: input, shape index: {}]
  %s11 = inlined_call_operand.hbm [shape: f32[2,1,64], index: 11, kind: input, shape index: {}]
  %s12 = inlined_call_operand.hbm [shape: bf16[2,64,32], index: 12, kind: input, shape index: {}]
  %s13 = inlined_call_operand.hbm [shape: f32[2,1,32], index: 13, kind: input, shape index: {}]
  %s14 = inlined_call_operand.hbm [shape: f32[2,1,32], index: 14, kind: input, shape index: {}]
  %s15 = inlined_call_operand.hbm [shape: f32[2,1,32], index: 15, kind: input, shape index: {}]
  %s16 = inlined_call_operand.hbm [shape: bf16[32,32], index: 16, kind: input, shape index: {}]
  %s17 = inlined_call_operand.hbm [shape: f32[1,32], index: 17, kind: input, shape index: {}]
  %s18 = inlined_call_operand.hbm [shape: bf16[32,128], index: 18, kind: input, shape index: {}]
  %s19 = inlined_call_operand.hbm [shape: f32[1,128], index: 19, kind: input, shape index: {}]
  %s20 = inlined_call_operand.hbm [shape: f32[2,8,128], index: 20, kind: output, shape index: {}]
  %s21 = sld [smem:[#allocation0]]
  $region201: #{_lambda_.1} parent=0
    _
  %s23 = ssub.s32 1, %s21
  %s24 = scalar_select 0, %s23, %s21
  $region1: #{_lambda_.1} parent=0
    #allocation4 [shape = 'u8[8192]{0}', space=vmem, size = 0x2000, scoped, tag = 'input window, operand 0, single buffered']
    #allocation5 [shape = 's32[2]{0}', space=sflag, size = 0x8, scoped, tag = 'scoped memory for _lambda_.1']
    #allocation6 [shape = 's32[2]{0}', space=sflag, size = 0x8, scoped, tag = 'scoped memory for _lambda_.1']
    #allocation7 [shape = 'u8[1024]{0}', space=vmem, size = 0x400, scoped, tag = 'input window, operand 1, single buffered']
    #allocation8 [shape = 's32[1]{0}', space=sflag, size = 0x4, scoped, tag = 'scoped memory for _lambda_.1']
    #allocation9 [shape = 'u8[512]{0}', space=vmem, size = 0x400, scoped, tag = 'input window, operand 2, single buffered']
    #allocation10 [shape = 'u8[512]{0}', space=vmem, size = 0x400, scoped, tag = 'input window, operand 3, single buffered']
    #allocation11 [shape = 's32[1]{0}', space=sflag, size = 0x4, scoped, tag = 'scoped memory for _lambda_.1']
    #allocation12 [shape = 'u8[16384]{0}', space=vmem, size = 0x4000, scoped, tag = 'input window, operand 4']
    #allocation13 [shape = 'u8[1024]{0}', space=vmem, size = 0x400, scoped, tag = 'input window, operand 5']
    #allocation14 [shape = 'u8[16384]{0}', space=vmem, size = 0x4000, scoped, tag = 'input window, operand 6']
    #allocation15 [shape = 'u8[1024]{0}', space=vmem, size = 0x400, scoped, tag = 'input window, operand 7']
    #allocation16 [shape = 'u8[1024]{0}', space=vmem, size = 0x400, scoped, tag = 'input window, operand 8']
    #allocation17 [shape = 'u8[1024]{0}', space=vmem, size = 0x400, scoped, tag = 'input window, operand 9']
    #allocation18 [shape = 'u8[16384]{0}', space=vmem, size = 0x4000, scoped, tag = 'input window, operand 10']
    #allocation19 [shape = 'u8[1024]{0}', space=vmem, size = 0x400, scoped, tag = 'input window, operand 11']
    #allocation20 [shape = 'u8[32768]{0}', space=vmem, size = 0x8000, scoped, tag = 'input window, operand 12']
    #allocation21 [shape = 'u8[1024]{0}', space=vmem, size = 0x400, scoped, tag = 'input window, operand 13']
    #allocation22 [shape = 'u8[1024]{0}', space=vmem, size = 0x400, scoped, tag = 'input window, operand 14']
    #allocation23 [shape = 'u8[1024]{0}', space=vmem, size = 0x400, scoped, tag = 'input window, operand 15']
    #allocation24 [shape = 'u8[8192]{0}', space=vmem, size = 0x2000, scoped, tag = 'input window, operand 16, single buffered']
    #allocation25 [shape = 'u8[512]{0}', space=vmem, size = 0x400, scoped, tag = 'input window, operand 17, single buffered']
    #allocation26 [shape = 'u8[8192]{0}', space=vmem, size = 0x2000, scoped, tag = 'input window, operand 18, single buffered']
    #allocation27 [shape = 's32[1]{0}', space=sflag, size = 0x4, scoped, tag = 'scoped memory for _lambda_.1']
    #allocation28 [shape = 'u8[512]{0}', space=vmem, size = 0x400, scoped, tag = 'input window, operand 19, single buffered']
    #allocation29 [shape = 'u8[8192]{0}', space=vmem, size = 0x2000, scoped, tag = 'output window, operand 0, single buffered']
    %25 = vsyncpa [#allocation5], 0
    %26 = vsyncpa [#allocation8], 0
    %27 = vsyncpa [#allocation11], 0
    %28 = vsyncpa [#allocation27], 0
    %29 = vsyncpa [#allocation6], 0
    loop: start=0, step=1, limit=4
    $region2: #{_lambda_.1} parent=1 // loop_pre_header
      _
    $region3: #{_lambda_.1} parent=1 // loop_header
      %s31 = sphi 0, %s35
      %p32 = scmp.ge.s32.totalorder %s31, 4
      %s38 = sphi 0, %s50
      %s39 = sphi 0, %s46
      %s40 = sphi 0, %s38
      %s41 = sphi 0, %s39
      %s42 = sphi 0, %s40
      %s43 = sphi 0, %s41
      %s53 = sphi 0, %s55
      %s56 = sphi 0, %s53
      %s57 = sphi 0, %s56
      %s73 = sphi 0, %s57
      %s79 = sphi 0, %s81
      %s82 = sphi 0, %s79
      %s83 = sphi 0, %s82
      %s99 = sphi 0, %s83
      %s103 = sphi 0, %s103
      %s105 = sphi 0, %s103
      %s106 = sphi 0, %s105
      %s120 = sphi 0, %s106
      %s124 = sphi 0, %s124
      %s126 = sphi 0, %s124
      %s127 = sphi 0, %s126
      %s141 = sphi 0, %s127
      %s147 = sphi 0, %s149
      %s150 = sphi 0, %s147
      %s151 = sphi 0, %s150
      %s167 = sphi 0, %s151
      %s173 = sphi 0, %s175
      %s176 = sphi 0, %s173
      %s177 = sphi 0, %s176
      %s193 = sphi 0, %s177
      %s199 = sphi 0, %s201
      %s202 = sphi 0, %s199
      %s203 = sphi 0, %s202
      %s219 = sphi 0, %s203
      %s225 = sphi 0, %s227
      %s228 = sphi 0, %s225
      %s229 = sphi 0, %s228
      %s245 = sphi 0, %s229
      %s251 = sphi 0, %s253
      %s254 = sphi 0, %s251
      %s255 = sphi 0, %s254
      %s271 = sphi 0, %s255
      %s277 = sphi 0, %s279
      %s280 = sphi 0, %s277
      %s281 = sphi 0, %s280
      %s297 = sphi 0, %s281
      %s303 = sphi 0, %s305
      %s306 = sphi 0, %s303
      %s307 = sphi 0, %s306
      %s323 = sphi 0, %s307
      %s329 = sphi 0, %s331
      %s332 = sphi 0, %s329
      %s333 = sphi 0, %s332
      %s349 = sphi 0, %s333
      %s355 = sphi 0, %s357
      %s358 = sphi 0, %s355
      %s359 = sphi 0, %s358
      %s375 = sphi 0, %s359
      %s381 = sphi 0, %s383
      %s384 = sphi 0, %s381
      %s385 = sphi 0, %s384
      %s401 = sphi 0, %s385
      %s407 = sphi 0, %s409
      %s410 = sphi 0, %s407
      %s411 = sphi 0, %s410
      %s427 = sphi 0, %s411
      %s433 = sphi 0, %s435
      %s436 = sphi 0, %s433
      %s437 = sphi 0, %s436
      %s453 = sphi 0, %s437
      %s457 = sphi 0, %s457
      %s459 = sphi 0, %s457
      %s460 = sphi 0, %s459
      %s474 = sphi 0, %s460
      %s478 = sphi 0, %s478
      %s480 = sphi 0, %s478
      %s481 = sphi 0, %s480
      %s495 = sphi 0, %s481
      %s499 = sphi 0, %s499
      %s501 = sphi 0, %s499
      %s502 = sphi 0, %s501
      %s516 = sphi 0, %s502
      %s520 = sphi 0, %s520
      %s522 = sphi 0, %s520
      %s523 = sphi 0, %s522
      %s537 = sphi 0, %s523
      %s543 = sphi 0, %s545
      %s546 = sphi 0, %s543
      %s547 = sphi 0, %s546
      %s563 = sphi 0, %s547
    $region4: #{_lambda_.1} parent=1 // loop_header_branch
      %34 = sbr.rel (%p32) target = $region8
    $region5: #{_lambda_.1} parent=1 // loop_body
      %s36 = ssub.s32 %s31, 1
      %s37 = ssub.s32 %s31, 2
      %s44 = sadd.s32 1, %s39
      %p45 = scmp.ge.s32.totalorder %s44, 2
      %s46 = scalar_select %p45, 0, %s44
      %s47 = sadd.s32 1, %s38
      %s48 = scalar_select %p45, %s47, %s38
      %p49 = scmp.ge.s32.totalorder %s48, 1
      %s50 = scalar_select %p49, 0, %s48
      %s51 = ssub.s32 %s38, %s50
      %p52 = scmp.eq.s32.totalorder %s51, 0
      %s54 = sadd.s32 %s53, 1
      %s55 = scalar_select %p52, %s53, %s54
      %p58 = pneg %p52
      %p59 = scmp.eq.s32.totalorder %s31, 1
      %p60 = por %p58, %p59
      %p61 = scmp.ne.s32.totalorder %s53, %s56
      %p62 = scmp.eq.s32.totalorder %s31, 0
      %p63 = por %p61, %p62
      %p64 = scmp.ne.s32.totalorder %s53, %s56
      %p65 = scmp.eq.s32.totalorder %s36, 1
      %p66 = por %p64, %p65
      %p67 = scmp.ne.s32.totalorder %s56, %s57
      %p68 = scmp.eq.s32.totalorder %s36, 0
      %p69 = por %p67, %p68
      %p70 = scmp.ne.s32.totalorder %s56, %s57
      %p71 = scmp.eq.s32.totalorder %s37, 1
      %p72 = por %p70, %p71
      %p74 = scmp.ne.s32.totalorder %s57, %s73
      %p75 = scmp.eq.s32.totalorder %s37, 0
      %p76 = por %p74, %p75
      %s77 = ssub.s32 %s38, %s50
      %p78 = scmp.eq.s32.totalorder %s77, 0
      %s80 = sadd.s32 %s79, 1
      %s81 = scalar_select %p78, %s79, %s80
      %p84 = pneg %p78
      %p85 = scmp.eq.s32.totalorder %s31, 1
      %p86 = por %p84, %p85
      %p87 = scmp.ne.s32.totalorder %s79, %s82
      %p88 = scmp.eq.s32.totalorder %s31, 0
      %p89 = por %p87, %p88
      %p90 = scmp.ne.s32.totalorder %s79, %s82
      %p91 = scmp.eq.s32.totalorder %s36, 1
      %p92 = por %p90, %p91
      %p93 = scmp.ne.s32.totalorder %s82, %s83
      %p94 = scmp.eq.s32.totalorder %s36, 0
      %p95 = por %p93, %p94
      %p96 = scmp.ne.s32.totalorder %s82, %s83
      %p97 = scmp.eq.s32.totalorder %s37, 1
      %p98 = por %p96, %p97
      %p100 = scmp.ne.s32.totalorder %s83, %s99
      %p101 = scmp.eq.s32.totalorder %s37, 0
      %p102 = por %p100, %p101
      %s104 = sadd.s32 %s103, 1
      %p107 = scmp.eq.s32.totalorder %s31, 1
      %p108 = scmp.ne.s32.totalorder %s103, %s105
      %p109 = scmp.eq.s32.totalorder %s31, 0
      %p110 = por %p108, %p109
      %p111 = scmp.ne.s32.totalorder %s103, %s105
      %p112 = scmp.eq.s32.totalorder %s36, 1
      %p113 = por %p111, %p112
      %p114 = scmp.ne.s32.totalorder %s105, %s106
      %p115 = scmp.eq.s32.totalorder %s36, 0
      %p116 = por %p114, %p115
      %p117 = scmp.ne.s32.totalorder %s105, %s106
      %p118 = scmp.eq.s32.totalorder %s37, 1
      %p119 = por %p117, %p118
      %p121 = scmp.ne.s32.totalorder %s106, %s120
      %p122 = scmp.eq.s32.totalorder %s37, 0
      %p123 = por %p121, %p122
      %s125 = sadd.s32 %s124, 1
      %p128 = scmp.eq.s32.totalorder %s31, 1
      %p129 = scmp.ne.s32.totalorder %s124, %s126
      %p130 = scmp.eq.s32.totalorder %s31, 0
      %p131 = por %p129, %p130
      %p132 = scmp.ne.s32.totalorder %s124, %s126
      %p133 = scmp.eq.s32.totalorder %s36, 1
      %p134 = por %p132, %p133
      %p135 = scmp.ne.s32.totalorder %s126, %s127
      %p136 = scmp.eq.s32.totalorder %s36, 0
      %p137 = por %p135, %p136
      %p138 = scmp.ne.s32.totalorder %s126, %s127
      %p139 = scmp.eq.s32.totalorder %s37, 1
      %p140 = por %p138, %p139
      %p142 = scmp.ne.s32.totalorder %s127, %s141
      %p143 = scmp.eq.s32.totalorder %s37, 0
      %p144 = por %p142, %p143
      %s145 = ssub.s32 %s39, %s46
      %p146 = scmp.eq.s32.totalorder %s145, 0
      %s148 = sadd.s32 %s147, 1
      %s149 = scalar_select %p146, %s147, %s148
      %p152 = pneg %p146
      %p153 = scmp.eq.s32.totalorder %s31, 1
      %p154 = por %p152, %p153
      %p155 = scmp.ne.s32.totalorder %s147, %s150
      %p156 = scmp.eq.s32.totalorder %s31, 0
      %p157 = por %p155, %p156
      %p158 = scmp.ne.s32.totalorder %s147, %s150
      %p159 = scmp.eq.s32.totalorder %s36, 1
      %p160 = por %p158, %p159
      %p161 = scmp.ne.s32.totalorder %s150, %s151
      %p162 = scmp.eq.s32.totalorder %s36, 0
      %p163 = por %p161, %p162
      %p164 = scmp.ne.s32.totalorder %s150, %s151
      %p165 = scmp.eq.s32.totalorder %s37, 1
      %p166 = por %p164, %p165
      %p168 = scmp.ne.s32.totalorder %s151, %s167
      %p169 = scmp.eq.s32.totalorder %s37, 0
      %p170 = por %p168, %p169
      %s171 = ssub.s32 %s39, %s46
      %p172 = scmp.eq.s32.totalorder %s171, 0
      %s174 = sadd.s32 %s173, 1
      %s175 = scalar_select %p172, %s173, %s174
      %p178 = pneg %p172
      %p179 = scmp.eq.s32.totalorder %s31, 1
      %p180 = por %p178, %p179
      %p181 = scmp.ne.s32.totalorder %s173, %s176
      %p182 = scmp.eq.s32.totalorder %s31, 0
      %p183 = por %p181, %p182
      %p184 = scmp.ne.s32.totalorder %s173, %s176
      %p185 = scmp.eq.s32.totalorder %s36, 1
      %p186 = por %p184, %p185
      %p187 = scmp.ne.s32.totalorder %s176, %s177
      %p188 = scmp.eq.s32.totalorder %s36, 0
      %p189 = por %p187, %p188
      %p190 = scmp.ne.s32.totalorder %s176, %s177
      %p191 = scmp.eq.s32.totalorder %s37, 1
      %p192 = por %p190, %p191
      %p194 = scmp.ne.s32.totalorder %s177, %s193
      %p195 = scmp.eq.s32.totalorder %s37, 0
      %p196 = por %p194, %p195
      %s197 = ssub.s32 %s39, %s46
      %p198 = scmp.eq.s32.totalorder %s197, 0
      %s200 = sadd.s32 %s199, 1
      %s201 = scalar_select %p198, %s199, %s200
      %p204 = pneg %p198
      %p205 = scmp.eq.s32.totalorder %s31, 1
      %p206 = por %p204, %p205
      %p207 = scmp.ne.s32.totalorder %s199, %s202
      %p208 = scmp.eq.s32.totalorder %s31, 0
      %p209 = por %p207, %p208
      %p210 = scmp.ne.s32.totalorder %s199, %s202
      %p211 = scmp.eq.s32.totalorder %s36, 1
      %p212 = por %p210, %p211
      %p213 = scmp.ne.s32.totalorder %s202, %s203
      %p214 = scmp.eq.s32.totalorder %s36, 0
      %p215 = por %p213, %p214
      %p216 = scmp.ne.s32.totalorder %s202, %s203
      %p217 = scmp.eq.s32.totalorder %s37, 1
      %p218 = por %p216, %p217
      %p220 = scmp.ne.s32.totalorder %s203, %s219
      %p221 = scmp.eq.s32.totalorder %s37, 0
      %p222 = por %p220, %p221
      %s223 = ssub.s32 %s39, %s46
      %p224 = scmp.eq.s32.totalorder %s223, 0
      %s226 = sadd.s32 %s225, 1
      %s227 = scalar_select %p224, %s225, %s226
      %p230 = pneg %p224
      %p231 = scmp.eq.s32.totalorder %s31, 1
      %p232 = por %p230, %p231
      %p233 = scmp.ne.s32.totalorder %s225, %s228
      %p234 = scmp.eq.s32.totalorder %s31, 0
      %p235 = por %p233, %p234
      %p236 = scmp.ne.s32.totalorder %s225, %s228
      %p237 = scmp.eq.s32.totalorder %s36, 1
      %p238 = por %p236, %p237
      %p239 = scmp.ne.s32.totalorder %s228, %s229
      %p240 = scmp.eq.s32.totalorder %s36, 0
      %p241 = por %p239, %p240
      %p242 = scmp.ne.s32.totalorder %s228, %s229
      %p243 = scmp.eq.s32.totalorder %s37, 1
      %p244 = por %p242, %p243
      %p246 = scmp.ne.s32.totalorder %s229, %s245
      %p247 = scmp.eq.s32.totalorder %s37, 0
      %p248 = por %p246, %p247
      %s249 = ssub.s32 %s39, %s46
      %p250 = scmp.eq.s32.totalorder %s249, 0
      %s252 = sadd.s32 %s251, 1
      %s253 = scalar_select %p250, %s251, %s252
      %p256 = pneg %p250
      %p257 = scmp.eq.s32.totalorder %s31, 1
      %p258 = por %p256, %p257
      %p259 = scmp.ne.s32.totalorder %s251, %s254
      %p260 = scmp.eq.s32.totalorder %s31, 0
      %p261 = por %p259, %p260
      %p262 = scmp.ne.s32.totalorder %s251, %s254
      %p263 = scmp.eq.s32.totalorder %s36, 1
      %p264 = por %p262, %p263
      %p265 = scmp.ne.s32.totalorder %s254, %s255
      %p266 = scmp.eq.s32.totalorder %s36, 0
      %p267 = por %p265, %p266
      %p268 = scmp.ne.s32.totalorder %s254, %s255
      %p269 = scmp.eq.s32.totalorder %s37, 1
      %p270 = por %p268, %p269
      %p272 = scmp.ne.s32.totalorder %s255, %s271
      %p273 = scmp.eq.s32.totalorder %s37, 0
      %p274 = por %p272, %p273
      %s275 = ssub.s32 %s39, %s46
      %p276 = scmp.eq.s32.totalorder %s275, 0
      %s278 = sadd.s32 %s277, 1
      %s279 = scalar_select %p276, %s277, %s278
      %p282 = pneg %p276
      %p283 = scmp.eq.s32.totalorder %s31, 1
      %p284 = por %p282, %p283
      %p285 = scmp.ne.s32.totalorder %s277, %s280
      %p286 = scmp.eq.s32.totalorder %s31, 0
      %p287 = por %p285, %p286
      %p288 = scmp.ne.s32.totalorder %s277, %s280
      %p289 = scmp.eq.s32.totalorder %s36, 1
      %p290 = por %p288, %p289
      %p291 = scmp.ne.s32.totalorder %s280, %s281
      %p292 = scmp.eq.s32.totalorder %s36, 0
      %p293 = por %p291, %p292
      %p294 = scmp.ne.s32.totalorder %s280, %s281
      %p295 = scmp.eq.s32.totalorder %s37, 1
      %p296 = por %p294, %p295
      %p298 = scmp.ne.s32.totalorder %s281, %s297
      %p299 = scmp.eq.s32.totalorder %s37, 0
      %p300 = por %p298, %p299
      %s301 = ssub.s32 %s39, %s46
      %p302 = scmp.eq.s32.totalorder %s301, 0
      %s304 = sadd.s32 %s303, 1
      %s305 = scalar_select %p302, %s303, %s304
      %p308 = pneg %p302
      %p309 = scmp.eq.s32.totalorder %s31, 1
      %p310 = por %p308, %p309
      %p311 = scmp.ne.s32.totalorder %s303, %s306
      %p312 = scmp.eq.s32.totalorder %s31, 0
      %p313 = por %p311, %p312
      %p314 = scmp.ne.s32.totalorder %s303, %s306
      %p315 = scmp.eq.s32.totalorder %s36, 1
      %p316 = por %p314, %p315
      %p317 = scmp.ne.s32.totalorder %s306, %s307
      %p318 = scmp.eq.s32.totalorder %s36, 0
      %p319 = por %p317, %p318
      %p320 = scmp.ne.s32.totalorder %s306, %s307
      %p321 = scmp.eq.s32.totalorder %s37, 1
      %p322 = por %p320, %p321
      %p324 = scmp.ne.s32.totalorder %s307, %s323
      %p325 = scmp.eq.s32.totalorder %s37, 0
      %p326 = por %p324, %p325
      %s327 = ssub.s32 %s39, %s46
      %p328 = scmp.eq.s32.totalorder %s327, 0
      %s330 = sadd.s32 %s329, 1
      %s331 = scalar_select %p328, %s329, %s330
      %p334 = pneg %p328
      %p335 = scmp.eq.s32.totalorder %s31, 1
      %p336 = por %p334, %p335
      %p337 = scmp.ne.s32.totalorder %s329, %s332
      %p338 = scmp.eq.s32.totalorder %s31, 0
      %p339 = por %p337, %p338
      %p340 = scmp.ne.s32.totalorder %s329, %s332
      %p341 = scmp.eq.s32.totalorder %s36, 1
      %p342 = por %p340, %p341
      %p343 = scmp.ne.s32.totalorder %s332, %s333
      %p344 = scmp.eq.s32.totalorder %s36, 0
      %p345 = por %p343, %p344
      %p346 = scmp.ne.s32.totalorder %s332, %s333
      %p347 = scmp.eq.s32.totalorder %s37, 1
      %p348 = por %p346, %p347
      %p350 = scmp.ne.s32.totalorder %s333, %s349
      %p351 = scmp.eq.s32.totalorder %s37, 0
      %p352 = por %p350, %p351
      %s353 = ssub.s32 %s39, %s46
      %p354 = scmp.eq.s32.totalorder %s353, 0
      %s356 = sadd.s32 %s355, 1
      %s357 = scalar_select %p354, %s355, %s356
      %p360 = pneg %p354
      %p361 = scmp.eq.s32.totalorder %s31, 1
      %p362 = por %p360, %p361
      %p363 = scmp.ne.s32.totalorder %s355, %s358
      %p364 = scmp.eq.s32.totalorder %s31, 0
      %p365 = por %p363, %p364
      %p366 = scmp.ne.s32.totalorder %s355, %s358
      %p367 = scmp.eq.s32.totalorder %s36, 1
      %p368 = por %p366, %p367
      %p369 = scmp.ne.s32.totalorder %s358, %s359
      %p370 = scmp.eq.s32.totalorder %s36, 0
      %p371 = por %p369, %p370
      %p372 = scmp.ne.s32.totalorder %s358, %s359
      %p373 = scmp.eq.s32.totalorder %s37, 1
      %p374 = por %p372, %p373
      %p376 = scmp.ne.s32.totalorder %s359, %s375
      %p377 = scmp.eq.s32.totalorder %s37, 0
      %p378 = por %p376, %p377
      %s379 = ssub.s32 %s39, %s46
      %p380 = scmp.eq.s32.totalorder %s379, 0
      %s382 = sadd.s32 %s381, 1
      %s383 = scalar_select %p380, %s381, %s382
      %p386 = pneg %p380
      %p387 = scmp.eq.s32.totalorder %s31, 1
      %p388 = por %p386, %p387
      %p389 = scmp.ne.s32.totalorder %s381, %s384
      %p390 = scmp.eq.s32.totalorder %s31, 0
      %p391 = por %p389, %p390
      %p392 = scmp.ne.s32.totalorder %s381, %s384
      %p393 = scmp.eq.s32.totalorder %s36, 1
      %p394 = por %p392, %p393
      %p395 = scmp.ne.s32.totalorder %s384, %s385
      %p396 = scmp.eq.s32.totalorder %s36, 0
      %p397 = por %p395, %p396
      %p398 = scmp.ne.s32.totalorder %s384, %s385
      %p399 = scmp.eq.s32.totalorder %s37, 1
      %p400 = por %p398, %p399
      %p402 = scmp.ne.s32.totalorder %s385, %s401
      %p403 = scmp.eq.s32.totalorder %s37, 0
      %p404 = por %p402, %p403
      %s405 = ssub.s32 %s39, %s46
      %p406 = scmp.eq.s32.totalorder %s405, 0
      %s408 = sadd.s32 %s407, 1
      %s409 = scalar_select %p406, %s407, %s408
      %p412 = pneg %p406
      %p413 = scmp.eq.s32.totalorder %s31, 1
      %p414 = por %p412, %p413
      %p415 = scmp.ne.s32.totalorder %s407, %s410
      %p416 = scmp.eq.s32.totalorder %s31, 0
      %p417 = por %p415, %p416
      %p418 = scmp.ne.s32.totalorder %s407, %s410
      %p419 = scmp.eq.s32.totalorder %s36, 1
      %p420 = por %p418, %p419
      %p421 = scmp.ne.s32.totalorder %s410, %s411
      %p422 = scmp.eq.s32.totalorder %s36, 0
      %p423 = por %p421, %p422
      %p424 = scmp.ne.s32.totalorder %s410, %s411
      %p425 = scmp.eq.s32.totalorder %s37, 1
      %p426 = por %p424, %p425
      %p428 = scmp.ne.s32.totalorder %s411, %s427
      %p429 = scmp.eq.s32.totalorder %s37, 0
      %p430 = por %p428, %p429
      %s431 = ssub.s32 %s39, %s46
      %p432 = scmp.eq.s32.totalorder %s431, 0
      %s434 = sadd.s32 %s433, 1
      %s435 = scalar_select %p432, %s433, %s434
      %p438 = pneg %p432
      %p439 = scmp.eq.s32.totalorder %s31, 1
      %p440 = por %p438, %p439
      %p441 = scmp.ne.s32.totalorder %s433, %s436
      %p442 = scmp.eq.s32.totalorder %s31, 0
      %p443 = por %p441, %p442
      %p444 = scmp.ne.s32.totalorder %s433, %s436
      %p445 = scmp.eq.s32.totalorder %s36, 1
      %p446 = por %p444, %p445
      %p447 = scmp.ne.s32.totalorder %s436, %s437
      %p448 = scmp.eq.s32.totalorder %s36, 0
      %p449 = por %p447, %p448
      %p450 = scmp.ne.s32.totalorder %s436, %s437
      %p451 = scmp.eq.s32.totalorder %s37, 1
      %p452 = por %p450, %p451
      %p454 = scmp.ne.s32.totalorder %s437, %s453
      %p455 = scmp.eq.s32.totalorder %s37, 0
      %p456 = por %p454, %p455
      %s458 = sadd.s32 %s457, 1
      %p461 = scmp.eq.s32.totalorder %s31, 1
      %p462 = scmp.ne.s32.totalorder %s457, %s459
      %p463 = scmp.eq.s32.totalorder %s31, 0
      %p464 = por %p462, %p463
      %p465 = scmp.ne.s32.totalorder %s457, %s459
      %p466 = scmp.eq.s32.totalorder %s36, 1
      %p467 = por %p465, %p466
      %p468 = scmp.ne.s32.totalorder %s459, %s460
      %p469 = scmp.eq.s32.totalorder %s36, 0
      %p470 = por %p468, %p469
      %p471 = scmp.ne.s32.totalorder %s459, %s460
      %p472 = scmp.eq.s32.totalorder %s37, 1
      %p473 = por %p471, %p472
      %p475 = scmp.ne.s32.totalorder %s460, %s474
      %p476 = scmp.eq.s32.totalorder %s37, 0
      %p477 = por %p475, %p476
      %s479 = sadd.s32 %s478, 1
      %p482 = scmp.eq.s32.totalorder %s31, 1
      %p483 = scmp.ne.s32.totalorder %s478, %s480
      %p484 = scmp.eq.s32.totalorder %s31, 0
      %p485 = por %p483, %p484
      %p486 = scmp.ne.s32.totalorder %s478, %s480
      %p487 = scmp.eq.s32.totalorder %s36, 1
      %p488 = por %p486, %p487
      %p489 = scmp.ne.s32.totalorder %s480, %s481
      %p490 = scmp.eq.s32.totalorder %s36, 0
      %p491 = por %p489, %p490
      %p492 = scmp.ne.s32.totalorder %s480, %s481
      %p493 = scmp.eq.s32.totalorder %s37, 1
      %p494 = por %p492, %p493
      %p496 = scmp.ne.s32.totalorder %s481, %s495
      %p497 = scmp.eq.s32.totalorder %s37, 0
      %p498 = por %p496, %p497
      %s500 = sadd.s32 %s499, 1
      %p503 = scmp.eq.s32.totalorder %s31, 1
      %p504 = scmp.ne.s32.totalorder %s499, %s501
      %p505 = scmp.eq.s32.totalorder %s31, 0
      %p506 = por %p504, %p505
      %p507 = scmp.ne.s32.totalorder %s499, %s501
      %p508 = scmp.eq.s32.totalorder %s36, 1
      %p509 = por %p507, %p508
      %p510 = scmp.ne.s32.totalorder %s501, %s502
      %p511 = scmp.eq.s32.totalorder %s36, 0
      %p512 = por %p510, %p511
      %p513 = scmp.ne.s32.totalorder %s501, %s502
      %p514 = scmp.eq.s32.totalorder %s37, 1
      %p515 = por %p513, %p514
      %p517 = scmp.ne.s32.totalorder %s502, %s516
      %p518 = scmp.eq.s32.totalorder %s37, 0
      %p519 = por %p517, %p518
      %s521 = sadd.s32 %s520, 1
      %p524 = scmp.eq.s32.totalorder %s31, 1
      %p525 = scmp.ne.s32.totalorder %s520, %s522
      %p526 = scmp.eq.s32.totalorder %s31, 0
      %p527 = por %p525, %p526
      %p528 = scmp.ne.s32.totalorder %s520, %s522
      %p529 = scmp.eq.s32.totalorder %s36, 1
      %p530 = por %p528, %p529
      %p531 = scmp.ne.s32.totalorder %s522, %s523
      %p532 = scmp.eq.s32.totalorder %s36, 0
      %p533 = por %p531, %p532
      %p534 = scmp.ne.s32.totalorder %s522, %s523
      %p535 = scmp.eq.s32.totalorder %s37, 1
      %p536 = por %p534, %p535
      %p538 = scmp.ne.s32.totalorder %s523, %s537
      %p539 = scmp.eq.s32.totalorder %s37, 0
      %p540 = por %p538, %p539
      %s541 = ssub.s32 %s38, %s50
      %p542 = scmp.eq.s32.totalorder %s541, 0
      %s544 = sadd.s32 %s543, 1
      %s545 = scalar_select %p542, %s543, %s544
      %p548 = pneg %p542
      %p549 = scmp.eq.s32.totalorder %s31, 1
      %p550 = por %p548, %p549
      %p551 = scmp.ne.s32.totalorder %s543, %s546
      %p552 = scmp.eq.s32.totalorder %s31, 0
      %p553 = por %p551, %p552
      %p554 = scmp.ne.s32.totalorder %s543, %s546
      %p555 = scmp.eq.s32.totalorder %s36, 1
      %p556 = por %p554, %p555
      %p557 = scmp.ne.s32.totalorder %s546, %s547
      %p558 = scmp.eq.s32.totalorder %s36, 0
      %p559 = por %p557, %p558
      %p560 = scmp.ne.s32.totalorder %s546, %s547
      %p561 = scmp.eq.s32.totalorder %s37, 1
      %p562 = por %p560, %p561
      %p564 = scmp.ne.s32.totalorder %s547, %s563
      %p565 = scmp.eq.s32.totalorder %s37, 0
      %p566 = por %p564, %p565
      %p567 = scmp.le.s32.totalorder 1, %s31
      %p568 = scmp.lt.s32.totalorder %s31, 3
      %p569 = pnand %p567, %p568
      %p570 = pneg %p569
      // Predicated region
      $region9: #{_lambda_.1} parent=5 // pred_check
        _
      $region10: #{_lambda_.1} parent=5 // pred_check_branch
        %572 = sbr.rel (%p569) target = $region12
      $region11: #{_lambda_.1} parent=5 // pred_region
        %s573 = ssub.s32 %s31, 1
        // Predicated region
        $region13: #{_lambda_.1} parent=11 // pred_check
          %p574 = pneg %p69
        $region14: #{_lambda_.1} parent=11 // pred_check_branch
          %576 = sbr.rel (%p574) target = $region16
        $region15: #{_lambda_.1} parent=11 // pred_region
          %s577 = smul.u32 2, %s40
          %s579 = ssub.s32 256, 256
          %580 = vsyncadd [#allocation5], %s579
          %s581 = smul.addr %s577, 128
          %s582 = scalar_lea.hbm %s0, %s581
          %s583 = sshll.u32 [#allocation4], 4
          %s584 = int_to_ptr.vmem [resolvable:$true] %s583
          %589 = dma.hbm_to_vmem [thread:$0]  %s582, 256, %s584, [#allocation5], 128, 128, 8
        $region16: #{_lambda_.1} parent=11 // pred_fallthru
          _
        // Predicated region
        $region17: #{_lambda_.1} parent=11 // pred_check
          %p590 = pneg %p95
        $region18: #{_lambda_.1} parent=11 // pred_check_branch
          %592 = sbr.rel (%p590) target = $region20
        $region19: #{_lambda_.1} parent=11 // pred_region
          %s593 = smul.u32 2, %s40
          %s595 = ssub.s32 32, 32
          %596 = vsyncadd [#allocation8], %s595
          %s597 = smul.addr %s593, 16
          %s598 = scalar_lea.hbm %s1, %s597
          %s599 = sshll.u32 [#allocation7], 4
          %s600 = int_to_ptr.vmem [resolvable:$true] %s599
          %605 = dma.hbm_to_vmem [thread:$0]  %s598, 32, %s600, [#allocation8], 16, 16, 1
        $region20: #{_lambda_.1} parent=11 // pred_fallthru
          _
        // Predicated region
        $region21: #{_lambda_.1} parent=11 // pred_check
          %p606 = pneg %p116
        $region22: #{_lambda_.1} parent=11 // pred_check_branch
          %608 = sbr.rel (%p606) target = $region24
        $region23: #{_lambda_.1} parent=11 // pred_region
          %s610 = ssub.s32 16, 16
          %611 = vsyncadd [#allocation8], %s610
          %s613 = sshll.u32 [#allocation9], 4
          %s614 = int_to_ptr.vmem [resolvable:$true] %s613
          %616 = dma.hbm_to_vmem [thread:$0]  %s2, 16, %s614, [#allocation8]
        $region24: #{_lambda_.1} parent=11 // pred_fallthru
          _
        // Predicated region
        $region25: #{_lambda_.1} parent=11 // pred_check
          %p617 = pneg %p137
        $region26: #{_lambda_.1} parent=11 // pred_check_branch
          %619 = sbr.rel (%p617) target = $region28
        $region27: #{_lambda_.1} parent=11 // pred_region
          %s621 = ssub.s32 16, 16
          %622 = vsyncadd [#allocation11], %s621
          %s624 = sshll.u32 [#allocation10], 4
          %s625 = int_to_ptr.vmem [resolvable:$true] %s624
          %627 = dma.hbm_to_vmem [thread:$0]  %s3, 16, %s625, [#allocation11]
        $region28: #{_lambda_.1} parent=11 // pred_fallthru
          _
        // Predicated region
        $region29: #{_lambda_.1} parent=11 // pred_check
          %p628 = pneg %p470
        $region30: #{_lambda_.1} parent=11 // pred_check_branch
          %630 = sbr.rel (%p628) target = $region32
        $region31: #{_lambda_.1} parent=11 // pred_region
          %s632 = ssub.s32 256, 256
          %633 = vsyncadd [#allocation8], %s632
          %s634 = sshll.u32 [#allocation24], 4
          %s635 = int_to_ptr.vmem [resolvable:$true] %s634
          %640 = dma.hbm_to_vmem [thread:$0]  %s16, 256, %s635, [#allocation8], 64, 64, 4
        $region32: #{_lambda_.1} parent=11 // pred_fallthru
          _
        // Predicated region
        $region33: #{_lambda_.1} parent=11 // pred_check
          %p641 = pneg %p491
        $region34: #{_lambda_.1} parent=11 // pred_check_branch
          %643 = sbr.rel (%p641) target = $region36
        $region35: #{_lambda_.1} parent=11 // pred_region
          %s645 = ssub.s32 16, 16
          %646 = vsyncadd [#allocation11], %s645
          %s648 = sshll.u32 [#allocation25], 4
          %s649 = int_to_ptr.vmem [resolvable:$true] %s648
          %651 = dma.hbm_to_vmem [thread:$0]  %s17, 16, %s649, [#allocation11]
        $region36: #{_lambda_.1} parent=11 // pred_fallthru
          _
        // Predicated region
        $region37: #{_lambda_.1} parent=11 // pred_check
          %p652 = pneg %p512
        $region38: #{_lambda_.1} parent=11 // pred_check_branch
          %654 = sbr.rel (%p652) target = $region40
        $region39: #{_lambda_.1} parent=11 // pred_region
          %s656 = ssub.s32 256, 256
          %657 = vsyncadd [#allocation27], %s656
          %s658 = sshll.u32 [#allocation26], 4
          %s659 = int_to_ptr.vmem [resolvable:$true] %s658
          %664 = dma.hbm_to_vmem [thread:$0]  %s18, 256, %s659, [#allocation27], 64, 64, 4
        $region40: #{_lambda_.1} parent=11 // pred_fallthru
          _
        // Predicated region
        $region41: #{_lambda_.1} parent=11 // pred_check
          %p665 = pneg %p533
        $region42: #{_lambda_.1} parent=11 // pred_check_branch
          %667 = sbr.rel (%p665) target = $region44
        $region43: #{_lambda_.1} parent=11 // pred_region
          %s669 = ssub.s32 16, 16
          %670 = vsyncadd [#allocation27], %s669
          %s672 = sshll.u32 [#allocation28], 4
          %s673 = int_to_ptr.vmem [resolvable:$true] %s672
          %675 = dma.hbm_to_vmem [thread:$0]  %s19, 16, %s673, [#allocation27]
        $region44: #{_lambda_.1} parent=11 // pred_fallthru
          _
      $region12: #{_lambda_.1} parent=5 // pred_fallthru
        _
      %p676 = scmp.lt.s32.totalorder %s31, 2
      // Predicated region
      $region45: #{_lambda_.1} parent=5 // pred_check
        %p677 = pneg %p676
      $region46: #{_lambda_.1} parent=5 // pred_check_branch
        %679 = sbr.rel (%p677) target = $region48
      $region47: #{_lambda_.1} parent=5 // pred_region
        // Predicated region
        $region49: #{_lambda_.1} parent=47 // pred_check
          %p680 = pneg %p157
        $region50: #{_lambda_.1} parent=47 // pred_check_branch
          %682 = sbr.rel (%p680) target = $region52
        $region51: #{_lambda_.1} parent=47 // pred_region
          %s683 = sand.u32 %s31, 1
          %s684 = scalar_lea.sflag [#allocation5], %s683
          %s685 = sand.u32 %s147, 1
          %s686 = smul.addr %s685, 16
          %s687 = scalar_lea.vmem [#allocation12], %s686
          %s689 = ssub.s32 256, 256
          %690 = vsyncadd %s684, %s689
          %s691 = smul.addr %s39, 4
          %s692 = smul.addr %s691, 64
          %s693 = scalar_lea.hbm %s4, %s692
          %s694 = sshll.u32 %s687, 4
          %s695 = int_to_ptr.vmem [resolvable:$true] %s694
          %700 = dma.hbm_to_vmem [thread:$0]  %s693, 256, %s695, %s684, 64, 64, 4
        $region52: #{_lambda_.1} parent=47 // pred_fallthru
          _
        // Predicated region
        $region53: #{_lambda_.1} parent=47 // pred_check
          %p701 = pneg %p183
        $region54: #{_lambda_.1} parent=47 // pred_check_branch
          %703 = sbr.rel (%p701) target = $region56
        $region55: #{_lambda_.1} parent=47 // pred_region
          %s704 = sand.u32 %s31, 1
          %s705 = scalar_lea.sflag [#allocation5], %s704
          %s706 = sand.u32 %s173, 1
          %s707 = scalar_lea.vmem [#allocation13], %s706
          %s709 = ssub.s32 16, 16
          %710 = vsyncadd %s705, %s709
          %s711 = smul.addr %s39, 16
          %s712 = scalar_lea.hbm %s5, %s711
          %s714 = sshll.u32 %s707, 4
          %s715 = int_to_ptr.vmem [resolvable:$true] %s714
          %717 = dma.hbm_to_vmem [thread:$0]  %s712, 16, %s715, %s705
        $region56: #{_lambda_.1} parent=47 // pred_fallthru
          _
        // Predicated region
        $region57: #{_lambda_.1} parent=47 // pred_check
          %p718 = pneg %p209
        $region58: #{_lambda_.1} parent=47 // pred_check_branch
          %720 = sbr.rel (%p718) target = $region60
        $region59: #{_lambda_.1} parent=47 // pred_region
          %s721 = sand.u32 %s31, 1
          %s722 = scalar_lea.sflag [#allocation5], %s721
          %s723 = sand.u32 %s199, 1
          %s724 = smul.addr %s723, 16
          %s725 = scalar_lea.vmem [#allocation14], %s724
          %s727 = ssub.s32 256, 256
          %728 = vsyncadd %s722, %s727
          %s729 = smul.addr %s39, 4
          %s730 = smul.addr %s729, 64
          %s731 = scalar_lea.hbm %s6, %s730
          %s732 = sshll.u32 %s725, 4
          %s733 = int_to_ptr.vmem [resolvable:$true] %s732
          %738 = dma.hbm_to_vmem [thread:$0]  %s731, 256, %s733, %s722, 64, 64, 4
        $region60: #{_lambda_.1} parent=47 // pred_fallthru
          _
        // Predicated region
        $region61: #{_lambda_.1} parent=47 // pred_check
          %p739 = pneg %p235
        $region62: #{_lambda_.1} parent=47 // pred_check_branch
          %741 = sbr.rel (%p739) target = $region64
        $region63: #{_lambda_.1} parent=47 // pred_region
          %s742 = sand.u32 %s31, 1
          %s743 = scalar_lea.sflag [#allocation5], %s742
          %s744 = sand.u32 %s225, 1
          %s745 = scalar_lea.vmem [#allocation15], %s744
          %s747 = ssub.s32 16, 16
          %748 = vsyncadd %s743, %s747
          %s749 = smul.addr %s39, 16
          %s750 = scalar_lea.hbm %s7, %s749
          %s752 = sshll.u32 %s745, 4
          %s753 = int_to_ptr.vmem [resolvable:$true] %s752
          %755 = dma.hbm_to_vmem [thread:$0]  %s750, 16, %s753, %s743
        $region64: #{_lambda_.1} parent=47 // pred_fallthru
          _
        // Predicated region
        $region65: #{_lambda_.1} parent=47 // pred_check
          %p756 = pneg %p261
        $region66: #{_lambda_.1} parent=47 // pred_check_branch
          %758 = sbr.rel (%p756) target = $region68
        $region67: #{_lambda_.1} parent=47 // pred_region
          %s759 = sand.u32 %s31, 1
          %s760 = scalar_lea.sflag [#allocation5], %s759
          %s761 = sand.u32 %s251, 1
          %s762 = scalar_lea.vmem [#allocation16], %s761
          %s764 = ssub.s32 16, 16
          %765 = vsyncadd %s760, %s764
          %s766 = smul.addr %s39, 16
          %s767 = scalar_lea.hbm %s8, %s766
          %s769 = sshll.u32 %s762, 4
          %s770 = int_to_ptr.vmem [resolvable:$true] %s769
          %772 = dma.hbm_to_vmem [thread:$0]  %s767, 16, %s770, %s760
        $region68: #{_lambda_.1} parent=47 // pred_fallthru
          _
        // Predicated region
        $region69: #{_lambda_.1} parent=47 // pred_check
          %p773 = pneg %p287
        $region70: #{_lambda_.1} parent=47 // pred_check_branch
          %775 = sbr.rel (%p773) target = $region72
        $region71: #{_lambda_.1} parent=47 // pred_region
          %s776 = sand.u32 %s31, 1
          %s777 = scalar_lea.sflag [#allocation5], %s776
          %s778 = sand.u32 %s277, 1
          %s779 = scalar_lea.vmem [#allocation17], %s778
          %s781 = ssub.s32 16, 16
          %782 = vsyncadd %s777, %s781
          %s783 = smul.addr %s39, 16
          %s784 = scalar_lea.hbm %s9, %s783
          %s786 = sshll.u32 %s779, 4
          %s787 = int_to_ptr.vmem [resolvable:$true] %s786
          %789 = dma.hbm_to_vmem [thread:$0]  %s784, 16, %s787, %s777
        $region72: #{_lambda_.1} parent=47 // pred_fallthru
          _
        // Predicated region
        $region73: #{_lambda_.1} parent=47 // pred_check
          %p790 = pneg %p313
        $region74: #{_lambda_.1} parent=47 // pred_check_branch
          %792 = sbr.rel (%p790) target = $region76
        $region75: #{_lambda_.1} parent=47 // pred_region
          %s793 = sand.u32 %s31, 1
          %s794 = scalar_lea.sflag [#allocation5], %s793
          %s795 = sand.u32 %s303, 1
          %s796 = smul.addr %s795, 16
          %s797 = scalar_lea.vmem [#allocation18], %s796
          %s799 = ssub.s32 256, 256
          %800 = vsyncadd %s794, %s799
          %s801 = smul.addr %s39, 4
          %s802 = smul.addr %s801, 64
          %s803 = scalar_lea.hbm %s10, %s802
          %s804 = sshll.u32 %s797, 4
          %s805 = int_to_ptr.vmem [resolvable:$true] %s804
          %810 = dma.hbm_to_vmem [thread:$0]  %s803, 256, %s805, %s794, 64, 64, 4
        $region76: #{_lambda_.1} parent=47 // pred_fallthru
          _
        // Predicated region
        $region77: #{_lambda_.1} parent=47 // pred_check
          %p811 = pneg %p339
        $region78: #{_lambda_.1} parent=47 // pred_check_branch
          %813 = sbr.rel (%p811) target = $region80
        $region79: #{_lambda_.1} parent=47 // pred_region
          %s814 = sand.u32 %s31, 1
          %s815 = scalar_lea.sflag [#allocation5], %s814
          %s816 = sand.u32 %s329, 1
          %s817 = scalar_lea.vmem [#allocation19], %s816
          %s819 = ssub.s32 16, 16
          %820 = vsyncadd %s815, %s819
          %s821 = smul.addr %s39, 16
          %s822 = scalar_lea.hbm %s11, %s821
          %s824 = sshll.u32 %s817, 4
          %s825 = int_to_ptr.vmem [resolvable:$true] %s824
          %827 = dma.hbm_to_vmem [thread:$0]  %s822, 16, %s825, %s815
        $region80: #{_lambda_.1} parent=47 // pred_fallthru
          _
        // Predicated region
        $region81: #{_lambda_.1} parent=47 // pred_check
          %p828 = pneg %p365
        $region82: #{_lambda_.1} parent=47 // pred_check_branch
          %830 = sbr.rel (%p828) target = $region84
        $region83: #{_lambda_.1} parent=47 // pred_region
          %s831 = sand.u32 %s31, 1
          %s832 = scalar_lea.sflag [#allocation5], %s831
          %s833 = sand.u32 %s355, 1
          %s834 = smul.addr %s833, 32
          %s835 = scalar_lea.vmem [#allocation20], %s834
          %s837 = ssub.s32 512, 512
          %838 = vsyncadd %s832, %s837
          %s839 = smul.addr %s39, 8
          %s840 = smul.addr %s839, 64
          %s841 = scalar_lea.hbm %s12, %s840
          %s842 = sshll.u32 %s835, 4
          %s843 = int_to_ptr.vmem [resolvable:$true] %s842
          %848 = dma.hbm_to_vmem [thread:$0]  %s841, 512, %s843, %s832, 64, 64, 4
        $region84: #{_lambda_.1} parent=47 // pred_fallthru
          _
        // Predicated region
        $region85: #{_lambda_.1} parent=47 // pred_check
          %p849 = pneg %p391
        $region86: #{_lambda_.1} parent=47 // pred_check_branch
          %851 = sbr.rel (%p849) target = $region88
        $region87: #{_lambda_.1} parent=47 // pred_region
          %s852 = sand.u32 %s31, 1
          %s853 = scalar_lea.sflag [#allocation5], %s852
          %s854 = sand.u32 %s381, 1
          %s855 = scalar_lea.vmem [#allocation21], %s854
          %s857 = ssub.s32 16, 16
          %858 = vsyncadd %s853, %s857
          %s859 = smul.addr %s39, 16
          %s860 = scalar_lea.hbm %s13, %s859
          %s862 = sshll.u32 %s855, 4
          %s863 = int_to_ptr.vmem [resolvable:$true] %s862
          %865 = dma.hbm_to_vmem [thread:$0]  %s860, 16, %s863, %s853
        $region88: #{_lambda_.1} parent=47 // pred_fallthru
          _
        // Predicated region
        $region89: #{_lambda_.1} parent=47 // pred_check
          %p866 = pneg %p417
        $region90: #{_lambda_.1} parent=47 // pred_check_branch
          %868 = sbr.rel (%p866) target = $region92
        $region91: #{_lambda_.1} parent=47 // pred_region
          %s869 = sand.u32 %s31, 1
          %s870 = scalar_lea.sflag [#allocation5], %s869
          %s871 = sand.u32 %s407, 1
          %s872 = scalar_lea.vmem [#allocation22], %s871
          %s874 = ssub.s32 16, 16
          %875 = vsyncadd %s870, %s874
          %s876 = smul.addr %s39, 16
          %s877 = scalar_lea.hbm %s14, %s876
          %s879 = sshll.u32 %s872, 4
          %s880 = int_to_ptr.vmem [resolvable:$true] %s879
          %882 = dma.hbm_to_vmem [thread:$0]  %s877, 16, %s880, %s870
        $region92: #{_lambda_.1} parent=47 // pred_fallthru
          _
        // Predicated region
        $region93: #{_lambda_.1} parent=47 // pred_check
          %p883 = pneg %p443
        $region94: #{_lambda_.1} parent=47 // pred_check_branch
          %885 = sbr.rel (%p883) target = $region96
        $region95: #{_lambda_.1} parent=47 // pred_region
          %s886 = sand.u32 %s31, 1
          %s887 = scalar_lea.sflag [#allocation5], %s886
          %s888 = sand.u32 %s433, 1
          %s889 = scalar_lea.vmem [#allocation23], %s888
          %s891 = ssub.s32 16, 16
          %892 = vsyncadd %s887, %s891
          %s893 = smul.addr %s39, 16
          %s894 = scalar_lea.hbm %s15, %s893
          %s896 = sshll.u32 %s889, 4
          %s897 = int_to_ptr.vmem [resolvable:$true] %s896
          %899 = dma.hbm_to_vmem [thread:$0]  %s894, 16, %s897, %s887
        $region96: #{_lambda_.1} parent=47 // pred_fallthru
          _
      $region48: #{_lambda_.1} parent=5 // pred_fallthru
        _
      %p900 = scmp.le.s32.totalorder 1, %s31
      %p901 = scmp.lt.s32.totalorder %s31, 3
      %p902 = pnand %p900, %p901
      %p903 = pneg %p902
      // Predicated region
      $region97: #{_lambda_.1} parent=5 // pred_check
        _
      $region98: #{_lambda_.1} parent=5 // pred_check_branch
        %905 = sbr.rel (%p902) target = $region100
      $region99: #{_lambda_.1} parent=5 // pred_region
        %s906 = ssub.s32 %s31, 1
        // Predicated region
        $region101: #{_lambda_.1} parent=99 // pred_check
          %p907 = pneg %p69
        $region102: #{_lambda_.1} parent=99 // pred_check_branch
          %909 = sbr.rel (%p907) target = $region104
        $region103: #{_lambda_.1} parent=99 // pred_region
          %910 = dma.done [#allocation5], 256
        $region104: #{_lambda_.1} parent=99 // pred_fallthru
          _
        // Predicated region
        $region105: #{_lambda_.1} parent=99 // pred_check
          %p911 = pneg %p95
        $region106: #{_lambda_.1} parent=99 // pred_check_branch
          %913 = sbr.rel (%p911) target = $region108
        $region107: #{_lambda_.1} parent=99 // pred_region
          %914 = dma.done [#allocation8], 32
        $region108: #{_lambda_.1} parent=99 // pred_fallthru
          _
        // Predicated region
        $region109: #{_lambda_.1} parent=99 // pred_check
          %p915 = pneg %p116
        $region110: #{_lambda_.1} parent=99 // pred_check_branch
          %917 = sbr.rel (%p915) target = $region112
        $region111: #{_lambda_.1} parent=99 // pred_region
          %918 = dma.done [#allocation8], 16
        $region112: #{_lambda_.1} parent=99 // pred_fallthru
          _
        // Predicated region
        $region113: #{_lambda_.1} parent=99 // pred_check
          %p919 = pneg %p137
        $region114: #{_lambda_.1} parent=99 // pred_check_branch
          %921 = sbr.rel (%p919) target = $region116
        $region115: #{_lambda_.1} parent=99 // pred_region
          %922 = dma.done [#allocation11], 16
        $region116: #{_lambda_.1} parent=99 // pred_fallthru
          _
        %s923 = sand.u32 %s36, 1
        %s924 = scalar_lea.sflag [#allocation5], %s923
        %s925 = sand.u32 %s150, 1
        %s926 = smul.addr %s925, 16
        %s927 = scalar_lea.vmem [#allocation12], %s926
        // Predicated region
        $region117: #{_lambda_.1} parent=99 // pred_check
          %p928 = pneg %p163
        $region118: #{_lambda_.1} parent=99 // pred_check_branch
          %930 = sbr.rel (%p928) target = $region120
        $region119: #{_lambda_.1} parent=99 // pred_region
          %931 = dma.done %s924, 256
        $region120: #{_lambda_.1} parent=99 // pred_fallthru
          _
        %s932 = sand.u32 %s36, 1
        %s933 = scalar_lea.sflag [#allocation5], %s932
        %s934 = sand.u32 %s176, 1
        %s935 = scalar_lea.vmem [#allocation13], %s934
        // Predicated region
        $region121: #{_lambda_.1} parent=99 // pred_check
          %p936 = pneg %p189
        $region122: #{_lambda_.1} parent=99 // pred_check_branch
          %938 = sbr.rel (%p936) target = $region124
        $region123: #{_lambda_.1} parent=99 // pred_region
          %939 = dma.done %s933, 16
        $region124: #{_lambda_.1} parent=99 // pred_fallthru
          _
        %s940 = sand.u32 %s36, 1
        %s941 = scalar_lea.sflag [#allocation5], %s940
        %s942 = sand.u32 %s202, 1
        %s943 = smul.addr %s942, 16
        %s944 = scalar_lea.vmem [#allocation14], %s943
        // Predicated region
        $region125: #{_lambda_.1} parent=99 // pred_check
          %p945 = pneg %p215
        $region126: #{_lambda_.1} parent=99 // pred_check_branch
          %947 = sbr.rel (%p945) target = $region128
        $region127: #{_lambda_.1} parent=99 // pred_region
          %948 = dma.done %s941, 256
        $region128: #{_lambda_.1} parent=99 // pred_fallthru
          _
        %s949 = sand.u32 %s36, 1
        %s950 = scalar_lea.sflag [#allocation5], %s949
        %s951 = sand.u32 %s228, 1
        %s952 = scalar_lea.vmem [#allocation15], %s951
        // Predicated region
        $region129: #{_lambda_.1} parent=99 // pred_check
          %p953 = pneg %p241
        $region130: #{_lambda_.1} parent=99 // pred_check_branch
          %955 = sbr.rel (%p953) target = $region132
        $region131: #{_lambda_.1} parent=99 // pred_region
          %956 = dma.done %s950, 16
        $region132: #{_lambda_.1} parent=99 // pred_fallthru
          _
        %s957 = sand.u32 %s36, 1
        %s958 = scalar_lea.sflag [#allocation5], %s957
        %s959 = sand.u32 %s254, 1
        %s960 = scalar_lea.vmem [#allocation16], %s959
        // Predicated region
        $region133: #{_lambda_.1} parent=99 // pred_check
          %p961 = pneg %p267
        $region134: #{_lambda_.1} parent=99 // pred_check_branch
          %963 = sbr.rel (%p961) target = $region136
        $region135: #{_lambda_.1} parent=99 // pred_region
          %964 = dma.done %s958, 16
        $region136: #{_lambda_.1} parent=99 // pred_fallthru
          _
        %s965 = sand.u32 %s36, 1
        %s966 = scalar_lea.sflag [#allocation5], %s965
        %s967 = sand.u32 %s280, 1
        %s968 = scalar_lea.vmem [#allocation17], %s967
        // Predicated region
        $region137: #{_lambda_.1} parent=99 // pred_check
          %p969 = pneg %p293
        $region138: #{_lambda_.1} parent=99 // pred_check_branch
          %971 = sbr.rel (%p969) target = $region140
        $region139: #{_lambda_.1} parent=99 // pred_region
          %972 = dma.done %s966, 16
        $region140: #{_lambda_.1} parent=99 // pred_fallthru
          _
        %s973 = sand.u32 %s36, 1
        %s974 = scalar_lea.sflag [#allocation5], %s973
        %s975 = sand.u32 %s306, 1
        %s976 = smul.addr %s975, 16
        %s977 = scalar_lea.vmem [#allocation18], %s976
        // Predicated region
        $region141: #{_lambda_.1} parent=99 // pred_check
          %p978 = pneg %p319
        $region142: #{_lambda_.1} parent=99 // pred_check_branch
          %980 = sbr.rel (%p978) target = $region144
        $region143: #{_lambda_.1} parent=99 // pred_region
          %981 = dma.done %s974, 256
        $region144: #{_lambda_.1} parent=99 // pred_fallthru
          _
        %s982 = sand.u32 %s36, 1
        %s983 = scalar_lea.sflag [#allocation5], %s982
        %s984 = sand.u32 %s332, 1
        %s985 = scalar_lea.vmem [#allocation19], %s984
        // Predicated region
        $region145: #{_lambda_.1} parent=99 // pred_check
          %p986 = pneg %p345
        $region146: #{_lambda_.1} parent=99 // pred_check_branch
          %988 = sbr.rel (%p986) target = $region148
        $region147: #{_lambda_.1} parent=99 // pred_region
          %989 = dma.done %s983, 16
        $region148: #{_lambda_.1} parent=99 // pred_fallthru
          _
        %s990 = sand.u32 %s36, 1
        %s991 = scalar_lea.sflag [#allocation5], %s990
        %s992 = sand.u32 %s358, 1
        %s993 = smul.addr %s992, 32
        %s994 = scalar_lea.vmem [#allocation20], %s993
        // Predicated region
        $region149: #{_lambda_.1} parent=99 // pred_check
          %p995 = pneg %p371
        $region150: #{_lambda_.1} parent=99 // pred_check_branch
          %997 = sbr.rel (%p995) target = $region152
        $region151: #{_lambda_.1} parent=99 // pred_region
          %998 = dma.done %s991, 512
        $region152: #{_lambda_.1} parent=99 // pred_fallthru
          _
        %s999 = sand.u32 %s36, 1
        %s1000 = scalar_lea.sflag [#allocation5], %s999
        %s1001 = sand.u32 %s384, 1
        %s1002 = scalar_lea.vmem [#allocation21], %s1001
        // Predicated region
        $region153: #{_lambda_.1} parent=99 // pred_check
          %p1003 = pneg %p397
        $region154: #{_lambda_.1} parent=99 // pred_check_branch
          %1005 = sbr.rel (%p1003) target = $region156
        $region155: #{_lambda_.1} parent=99 // pred_region
          %1006 = dma.done %s1000, 16
        $region156: #{_lambda_.1} parent=99 // pred_fallthru
          _
        %s1007 = sand.u32 %s36, 1
        %s1008 = scalar_lea.sflag [#allocation5], %s1007
        %s1009 = sand.u32 %s410, 1
        %s1010 = scalar_lea.vmem [#allocation22], %s1009
        // Predicated region
        $region157: #{_lambda_.1} parent=99 // pred_check
          %p1011 = pneg %p423
        $region158: #{_lambda_.1} parent=99 // pred_check_branch
          %1013 = sbr.rel (%p1011) target = $region160
        $region159: #{_lambda_.1} parent=99 // pred_region
          %1014 = dma.done %s1008, 16
        $region160: #{_lambda_.1} parent=99 // pred_fallthru
          _
        %s1015 = sand.u32 %s36, 1
        %s1016 = scalar_lea.sflag [#allocation5], %s1015
        %s1017 = sand.u32 %s436, 1
        %s1018 = scalar_lea.vmem [#allocation23], %s1017
        // Predicated region
        $region161: #{_lambda_.1} parent=99 // pred_check
          %p1019 = pneg %p449
        $region162: #{_lambda_.1} parent=99 // pred_check_branch
          %1021 = sbr.rel (%p1019) target = $region164
        $region163: #{_lambda_.1} parent=99 // pred_region
          %1022 = dma.done %s1016, 16
        $region164: #{_lambda_.1} parent=99 // pred_fallthru
          _
        // Predicated region
        $region165: #{_lambda_.1} parent=99 // pred_check
          %p1023 = pneg %p470
        $region166: #{_lambda_.1} parent=99 // pred_check_branch
          %1025 = sbr.rel (%p1023) target = $region168
        $region167: #{_lambda_.1} parent=99 // pred_region
          %1026 = dma.done [#allocation8], 256
        $region168: #{_lambda_.1} parent=99 // pred_fallthru
          _
        // Predicated region
        $region169: #{_lambda_.1} parent=99 // pred_check
          %p1027 = pneg %p491
        $region170: #{_lambda_.1} parent=99 // pred_check_branch
          %1029 = sbr.rel (%p1027) target = $region172
        $region171: #{_lambda_.1} parent=99 // pred_region
          %1030 = dma.done [#allocation11], 16
        $region172: #{_lambda_.1} parent=99 // pred_fallthru
          _
        // Predicated region
        $region173: #{_lambda_.1} parent=99 // pred_check
          %p1031 = pneg %p512
        $region174: #{_lambda_.1} parent=99 // pred_check_branch
          %1033 = sbr.rel (%p1031) target = $region176
        $region175: #{_lambda_.1} parent=99 // pred_region
          %1034 = dma.done [#allocation27], 256
        $region176: #{_lambda_.1} parent=99 // pred_fallthru
          _
        // Predicated region
        $region177: #{_lambda_.1} parent=99 // pred_check
          %p1035 = pneg %p533
        $region178: #{_lambda_.1} parent=99 // pred_check_branch
          %1037 = sbr.rel (%p1035) target = $region180
        $region179: #{_lambda_.1} parent=99 // pred_region
          %1038 = dma.done [#allocation27], 16
        $region180: #{_lambda_.1} parent=99 // pred_fallthru
          _
        %p1039 = pneg %p69
        %p1040 = pneg %p66
        %p1041 = pneg %p95
        %p1042 = pneg %p92
        %p1043 = pneg %p116
        %p1044 = pneg %p113
        %p1045 = pneg %p137
        %p1046 = pneg %p134
        %s1047 = sand.u32 %s36, 1
        %s1048 = scalar_lea.sflag [#allocation5], %s1047
        %s1049 = sand.u32 %s150, 1
        %s1050 = smul.addr %s1049, 16
        %s1051 = scalar_lea.vmem [#allocation12], %s1050
        %p1052 = pneg %p163
        %p1053 = pneg %p160
        %s1054 = sand.u32 %s36, 1
        %s1055 = scalar_lea.sflag [#allocation5], %s1054
        %s1056 = sand.u32 %s176, 1
        %s1057 = scalar_lea.vmem [#allocation13], %s1056
        %p1058 = pneg %p189
        %p1059 = pneg %p186
        %s1060 = sand.u32 %s36, 1
        %s1061 = scalar_lea.sflag [#allocation5], %s1060
        %s1062 = sand.u32 %s202, 1
        %s1063 = smul.addr %s1062, 16
        %s1064 = scalar_lea.vmem [#allocation14], %s1063
        %p1065 = pneg %p215
        %p1066 = pneg %p212
        %s1067 = sand.u32 %s36, 1
        %s1068 = scalar_lea.sflag [#allocation5], %s1067
        %s1069 = sand.u32 %s228, 1
        %s1070 = scalar_lea.vmem [#allocation15], %s1069
        %p1071 = pneg %p241
        %p1072 = pneg %p238
        %s1073 = sand.u32 %s36, 1
        %s1074 = scalar_lea.sflag [#allocation5], %s1073
        %s1075 = sand.u32 %s254, 1
        %s1076 = scalar_lea.vmem [#allocation16], %s1075
        %p1077 = pneg %p267
        %p1078 = pneg %p264
        %s1079 = sand.u32 %s36, 1
        %s1080 = scalar_lea.sflag [#allocation5], %s1079
        %s1081 = sand.u32 %s280, 1
        %s1082 = scalar_lea.vmem [#allocation17], %s1081
        %p1083 = pneg %p293
        %p1084 = pneg %p290
        %s1085 = sand.u32 %s36, 1
        %s1086 = scalar_lea.sflag [#allocation5], %s1085
        %s1087 = sand.u32 %s306, 1
        %s1088 = smul.addr %s1087, 16
        %s1089 = scalar_lea.vmem [#allocation18], %s1088
        %p1090 = pneg %p319
        %p1091 = pneg %p316
        %s1092 = sand.u32 %s36, 1
        %s1093 = scalar_lea.sflag [#allocation5], %s1092
        %s1094 = sand.u32 %s332, 1
        %s1095 = scalar_lea.vmem [#allocation19], %s1094
        %p1096 = pneg %p345
        %p1097 = pneg %p342
        %s1098 = sand.u32 %s36, 1
        %s1099 = scalar_lea.sflag [#allocation5], %s1098
        %s1100 = sand.u32 %s358, 1
        %s1101 = smul.addr %s1100, 32
        %s1102 = scalar_lea.vmem [#allocation20], %s1101
        %p1103 = pneg %p371
        %p1104 = pneg %p368
        %s1105 = sand.u32 %s36, 1
        %s1106 = scalar_lea.sflag [#allocation5], %s1105
        %s1107 = sand.u32 %s384, 1
        %s1108 = scalar_lea.vmem [#allocation21], %s1107
        %p1109 = pneg %p397
        %p1110 = pneg %p394
        %s1111 = sand.u32 %s36, 1
        %s1112 = scalar_lea.sflag [#allocation5], %s1111
        %s1113 = sand.u32 %s410, 1
        %s1114 = scalar_lea.vmem [#allocation22], %s1113
        %p1115 = pneg %p423
        %p1116 = pneg %p420
        %s1117 = sand.u32 %s36, 1
        %s1118 = scalar_lea.sflag [#allocation5], %s1117
        %s1119 = sand.u32 %s436, 1
        %s1120 = scalar_lea.vmem [#allocation23], %s1119
        %p1121 = pneg %p449
        %p1122 = pneg %p446
        %p1123 = pneg %p470
        %p1124 = pneg %p467
        %p1125 = pneg %p491
        %p1126 = pneg %p488
        %p1127 = pneg %p512
        %p1128 = pneg %p509
        %p1129 = pneg %p533
        %p1130 = pneg %p530
        %p1131 = pneg %p559
        %p1132 = pneg %p556
        %s1133 = smul.u32 2, %s40
        %s1134 = smul.u32 2, %s40
        %s1135 = smul.u32 2, %s40
        %p1137 = scmp.eq.s32.totalorder %s41, 0
        // Predicated region
        $region181: #{_lambda_.1} parent=99 // pred_check
          %p1138 = pneg %p1137
        $region182: #{_lambda_.1} parent=99 // pred_check_branch
          %1140 = sbr.rel (%p1138) target = $region184
        $region183: #{_lambda_.1} parent=99 // pred_region
          %v1141 = vld [vmem:[#allocation4] sm:$0xff]
          %v1142 = vld [vmem:[#allocation4 + $0x8] sm:$0xff]
          %v1143 = vld [vmem:[#allocation9] sm:$0x1]
          %v1144 = vld [vmem:[#allocation10] sm:$0x1]
          %vm1145 = vcmask 261120
          %v1146 = vsel %vm1145, %v1141, 0.0
          %1147 = vadd.xlane.f32.xlu0 %v1146
          %v1148 = vpop.xlane.xlu0 %1147
          %v1149 = vsel %vm1145, %v1142, 0.0
          %1150 = vadd.xlane.f32.xlu0 %v1149
          %v1151 = vpop.xlane.xlu0 %1150
          %v1152 = vrcp.pop 32.0
          %v1153 = vmul.f32 %v1148, %v1152
          %v1154 = vmul.f32 %v1151, %v1152
          %v1155 = vmul.f32 %v1141, %v1141
          %v1156 = vmul.f32 %v1142, %v1142
          %v1157 = vsel %vm1145, %v1155, 0.0
          %1158 = vadd.xlane.f32.xlu0 %v1157
          %v1159 = vpop.xlane.xlu0 %1158
          %v1160 = vsel %vm1145, %v1156, 0.0
          %1161 = vadd.xlane.f32.xlu0 %v1160
          %v1162 = vpop.xlane.xlu0 %1161
          %v1163 = vmul.f32 %v1159, %v1152
          %v1164 = vmul.f32 %v1162, %v1152
          %v1165 = vmul.f32 %v1153, %v1153
          %v1166 = vmul.f32 %v1154, %v1154
          %v1167 = vsub.f32 %v1163, %v1165
          %v1168 = vsub.f32 %v1164, %v1166
          %v1169 = vadd.f32 %v1167, 1e-05
          %v1170 = vadd.f32 %v1168, 1e-05
          %v1171 = vrsqrt.pop %v1169
          %v1172 = vrsqrt.pop %v1170
          %v1174 = vlaneseq
          %v1175 = vshrl.u32 %v1174, 7
          %v1176 = vsub.s32 0, %v1175
          %v1177 = vrot.slane %v1143, %v1176
          %v1179 = vmul.f32 %v1171, %v1177
          %v1180 = vmul.f32 %v1172, %v1177
          %v1181 = vmul.f32 %v1141, %v1179
          %v1182 = vmul.f32 %v1142, %v1180
          %v1183 = vmul.f32 %v1153, %v1179
          %v1184 = vmul.f32 %v1154, %v1180
          %v1186 = vlaneseq
          %v1187 = vshrl.u32 %v1186, 7
          %v1188 = vsub.s32 0, %v1187
          %v1189 = vrot.slane %v1144, %v1188
          %v1191 = vsub.f32 %v1189, %v1183
          %v1192 = vsub.f32 %v1189, %v1184
          %v1193 = vadd.f32 %v1181, %v1191
          %v1194 = vadd.f32 %v1182, %v1192
          %1195 = vst.msk [vmem:[#allocation2] sm:$0xff] %vm1145, %v1193
          %1196 = vst.msk [vmem:[#allocation2 + $0x8] sm:$0xff] %vm1145, %v1194
        $region184: #{_lambda_.1} parent=99 // pred_fallthru
          _
        %v1197 = vld [vmem:[#allocation2] sm:$0xff]
        %v1198 = vld [vmem:[#allocation2 + $0x8] sm:$0xff]
        %v1199 = vpack.c.bf16 %v1198, %v1197
        %v1200 = vld [vmem:[%s927] sm:$0xf]
        %v1201 = vld [vmem:[%s927 + $0x4] sm:$0xf]
        %v1202 = vld [vmem:[%s927 + $0x8] sm:$0xf]
        %v1203 = vld [vmem:[%s927 + $0xc] sm:$0xf]
        %v1204 = vld [vmem:[%s935] sm:$0x1]
        %v1206 = vlaneseq
        %v1207 = vshrl.u32 %v1206, 7
        %v1208 = vsub.s32 0, %v1207
        %v1209 = vrot.slane %v1204, %v1208
        %v1215 = vunpack.c.l.b16 %v1200
        %v1216 = vunpack.c.l.b16 %v1201
        %v1217 = vunpack.c.l.b16 %v1202
        %v1218 = vunpack.c.l.b16 %v1203
        %v1219 = vpack.c.b16 %v1216, %v1215
        %v1220 = vpack.c.b16 %v1218, %v1217
        %vm1223 = vcmask 261120
        %v1225 = vsel %vm1223, %v1199, 0
        %1227 = vmatprep.subr.bf16.mxu0 0
        %1228 = vmatpush1.bf16.msra.mxu0 %v1219
        %1229 = vmatprep.subr.bf16.mxu0 0
        %1230 = vmatpush1.bf16.msra.mxu0 %v1220
        %1231 = vmatprep.subr.bf16.mxu0 0
        %1232 = vmatpush1.bf16.msra.mxu0 0
        %1233 = vmatprep.subr.bf16.mxu0 0
        %1234 = vmatpush1.bf16.msra.mxu0 0
        %1235 = vmatprep.subr.bf16.mxu0 0
        %1236 = vmatpush1.bf16.msra.mxu0 0
        %1237 = vmatprep.subr.bf16.mxu0 0
        %1238 = vmatpush1.bf16.msra.mxu0 0
        %1239 = vmatprep.subr.bf16.mxu0 0
        %1240 = vmatpush1.bf16.msra.mxu0 0
        %1241 = vmatprep.subr.bf16.mxu0 0
        %1242 = vmatpush1.bf16.msra.mxu0 0
        %1243 = vmatprep.subr.bf16.mxu0 0
        %1244 = vmatpush1.bf16.msra.mxu0 0
        %1245 = vmatprep.subr.bf16.mxu0 0
        %1246 = vmatpush1.bf16.msra.mxu0 0
        %1247 = vmatprep.subr.bf16.mxu0 0
        %1248 = vmatpush1.bf16.msra.mxu0 0
        %1249 = vmatprep.subr.bf16.mxu0 0
        %1250 = vmatpush1.bf16.msra.mxu0 0
        %1251 = vmatprep.subr.bf16.mxu0 0
        %1252 = vmatpush1.bf16.msra.mxu0 0
        %1253 = vmatprep.subr.bf16.mxu0 0
        %1254 = vmatpush1.bf16.msra.mxu0 0
        %1255 = vmatprep.subr.bf16.mxu0 0
        %1256 = vmatpush1.bf16.msra.mxu0 0
        %1257 = vmatprep.subr.bf16.mxu0 0
        %1258 = vmatpush1.bf16.msra.mxu0 0
        %1259 = vmatprep.mubr.bf16.mxu0 0
        %1260 = vmatmul.mubr.bf16.gmra.mrb[0].mxu0 %v1225
        %v1261 = vpop.f32.mrb[0].mxu0
        %v1262 = vadd.f32 %v1209, %v1261
        %v1263 = vpop.f32.mrb[0].mxu0
        %v1264 = vpop.f32.mrb[0].mxu0
        %v1265 = vadd.f32 %v1209, %v1264
        %v1266 = vpop.f32.mrb[0].mxu0
        %1267 = vdwg.mxu0
        %v1268 = vld [vmem:[#allocation7] sm:$0x1]
        %v1269 = vld [vmem:[#allocation7 + $0x1] sm:$0x1]
        %v1270 = vpack.c.bf16 %v1262, %v1262
        %v1271 = vpack.c.bf16 %v1265, %v1265
        %v1274 = vlaneseq
        %v1275 = vshrl.u32 %v1274, 7
        %v1276 = vsub.s32 0, %v1275
        %v1277 = vrot.slane %v1268, %v1276
        %v1278 = vlaneseq
        %v1279 = vshrl.u32 %v1278, 7
        %v1280 = vsub.s32 0, %v1279
        %v1281 = vrot.slane %v1269, %v1280
        %1285 = vrot.lane.b32.xlu0 %v1270, 96
        %v1286 = vpop.permute.xlu0 %1285
        %vm1287 = vcmask 64512
        %v1289 = vsel %vm1287, %v1270, 0
        %v1292 = vsel %vm1287, %v1286, 0
        %1294 = vmatprep.subr.bf16.mxu0 0
        %1295 = vmatpush1.bf16.xpose.msra.mxu0 %v1292
        %1296 = vmatprep.subr.bf16.mxu0 0
        %1297 = vmatpush1.bf16.xpose.msra.mxu0 0
        %1298 = vmatprep.subr.bf16.mxu0 0
        %1299 = vmatpush1.bf16.xpose.msra.mxu0 0
        %1300 = vmatprep.subr.bf16.mxu0 0
        %1301 = vmatpush1.bf16.xpose.msra.mxu0 0
        %1302 = vmatprep.subr.bf16.mxu0 0
        %1303 = vmatpush1.bf16.xpose.msra.mxu0 0
        %1304 = vmatprep.subr.bf16.mxu0 0
        %1305 = vmatpush1.bf16.xpose.msra.mxu0 0
        %1306 = vmatprep.subr.bf16.mxu0 0
        %1307 = vmatpush1.bf16.xpose.msra.mxu0 0
        %1308 = vmatprep.subr.bf16.mxu0 0
        %1309 = vmatpush1.bf16.xpose.msra.mxu0 0
        %1310 = vmatprep.subr.bf16.mxu0 0
        %1311 = vmatpush1.bf16.xpose.msra.mxu0 0
        %1312 = vmatprep.subr.bf16.mxu0 0
        %1313 = vmatpush1.bf16.xpose.msra.mxu0 0
        %1314 = vmatprep.subr.bf16.mxu0 0
        %1315 = vmatpush1.bf16.xpose.msra.mxu0 0
        %1316 = vmatprep.subr.bf16.mxu0 0
        %1317 = vmatpush1.bf16.xpose.msra.mxu0 0
        %1318 = vmatprep.subr.bf16.mxu0 0
        %1319 = vmatpush1.bf16.xpose.msra.mxu0 0
        %1320 = vmatprep.subr.bf16.mxu0 0
        %1321 = vmatpush1.bf16.xpose.msra.mxu0 0
        %1322 = vmatprep.subr.bf16.mxu0 0
        %1323 = vmatpush1.bf16.xpose.msra.mxu0 0
        %1324 = vmatprep.subr.bf16.mxu0 0
        %1325 = vmatpush1.bf16.xpose.msra.mxu0 0
        %1326 = vmatprep.mubr.bf16.mxu0 0
        %1327 = vmatmul.mubr.bf16.gmra.mrb[0].mxu0 %v1289
        %v1328 = vpop.f32.mrb[0].mxu0
        %v1329 = vadd.f32 %v1277, %v1328
        %v1330 = vpop.f32.mrb[0].mxu0
        %v1331 = vpop.f32.mrb[0].mxu0
        %v1332 = vpop.f32.mrb[0].mxu0
        %1333 = vdwg.mxu0
        %1335 = vrot.lane.b32.xlu0 %v1271, 96
        %v1336 = vpop.permute.xlu0 %1335
        %v1338 = vsel %vm1287, %v1271, 0
        %v1341 = vsel %vm1287, %v1336, 0
        %1343 = vmatprep.subr.bf16.mxu0 0
        %1344 = vmatpush1.bf16.xpose.msra.mxu0 %v1341
        %1345 = vmatprep.subr.bf16.mxu0 0
        %1346 = vmatpush1.bf16.xpose.msra.mxu0 0
        %1347 = vmatprep.subr.bf16.mxu0 0
        %1348 = vmatpush1.bf16.xpose.msra.mxu0 0
        %1349 = vmatprep.subr.bf16.mxu0 0
        %1350 = vmatpush1.bf16.xpose.msra.mxu0 0
        %1351 = vmatprep.subr.bf16.mxu0 0
        %1352 = vmatpush1.bf16.xpose.msra.mxu0 0
        %1353 = vmatprep.subr.bf16.mxu0 0
        %1354 = vmatpush1.bf16.xpose.msra.mxu0 0
        %1355 = vmatprep.subr.bf16.mxu0 0
        %1356 = vmatpush1.bf16.xpose.msra.mxu0 0
        %1357 = vmatprep.subr.bf16.mxu0 0
        %1358 = vmatpush1.bf16.xpose.msra.mxu0 0
        %1359 = vmatprep.subr.bf16.mxu0 0
        %1360 = vmatpush1.bf16.xpose.msra.mxu0 0
        %1361 = vmatprep.subr.bf16.mxu0 0
        %1362 = vmatpush1.bf16.xpose.msra.mxu0 0
        %1363 = vmatprep.subr.bf16.mxu0 0
        %1364 = vmatpush1.bf16.xpose.msra.mxu0 0
        %1365 = vmatprep.subr.bf16.mxu0 0
        %1366 = vmatpush1.bf16.xpose.msra.mxu0 0
        %1367 = vmatprep.subr.bf16.mxu0 0
        %1368 = vmatpush1.bf16.xpose.msra.mxu0 0
        %1369 = vmatprep.subr.bf16.mxu0 0
        %1370 = vmatpush1.bf16.xpose.msra.mxu0 0
        %1371 = vmatprep.subr.bf16.mxu0 0
        %1372 = vmatpush1.bf16.xpose.msra.mxu0 0
        %1373 = vmatprep.subr.bf16.mxu0 0
        %1374 = vmatpush1.bf16.xpose.msra.mxu0 0
        %1375 = vmatprep.mubr.bf16.mxu0 0
        %1376 = vmatmul.mubr.bf16.gmra.mrb[0].mxu0 %v1338
        %v1377 = vpop.f32.mrb[0].mxu0
        %v1378 = vadd.f32 %v1281, %v1377
        %v1379 = vpop.f32.mrb[0].mxu0
        %v1380 = vpop.f32.mrb[0].mxu0
        %v1381 = vpop.f32.mrb[0].mxu0
        %1382 = vdwg.mxu0
        %v1383 = vsel %vm1287, %v1329, -inf
        %1384 = vmax.xlane.f32.xlu0 %v1383
        %v1385 = vpop.xlane.xlu0 %1384
        %v1386 = vsel %vm1287, %v1378, -inf
        %1387 = vmax.xlane.f32.xlu0 %v1386
        %v1388 = vpop.xlane.xlu0 %1387
        %v1389 = vsub.f32 %v1329, %v1385
        %v1390 = vsub.f32 %v1378, %v1388
        %v1391 = vmul.f32 %v1389, 1.442695
        %v1392 = vpow.pop %v1391
        %v1393 = vmul.f32 %v1390, 1.442695
        %v1394 = vpow.pop %v1393
        %v1395 = vsel %vm1287, %v1392, 0.0
        %1396 = vadd.xlane.f32.xlu0 %v1395
        %v1397 = vpop.xlane.xlu0 %1396
        %v1398 = vsel %vm1287, %v1394, 0.0
        %1399 = vadd.xlane.f32.xlu0 %v1398
        %v1400 = vpop.xlane.xlu0 %1399
        %v1401 = vrcp.pop %v1397
        %v1402 = vrcp.pop %v1400
        %v1403 = vmul.f32 %v1392, %v1401
        %v1404 = vmul.f32 %v1394, %v1402
        %v1405 = vpack.c.bf16 %v1403, %v1403
        %v1406 = vpack.c.bf16 %v1404, %v1404
        %1407 = vrot.lane.b32.xlu0 %v1270, 64
        %v1408 = vpop.permute.xlu0 %1407
        %v1410 = vsel %vm1287, %v1405, 0
        %vm1412 = vcmask 1043456
        %v1414 = vsel %vm1412, %v1408, 0
        %1416 = vmatprep.subr.bf16.mxu0 0
        %1417 = vmatpush1.bf16.msra.mxu0 %v1414
        %1418 = vmatprep.subr.bf16.mxu0 0
        %1419 = vmatpush1.bf16.msra.mxu0 0
        %1420 = vmatprep.subr.bf16.mxu0 0
        %1421 = vmatpush1.bf16.msra.mxu0 0
        %1422 = vmatprep.subr.bf16.mxu0 0
        %1423 = vmatpush1.bf16.msra.mxu0 0
        %1424 = vmatprep.subr.bf16.mxu0 0
        %1425 = vmatpush1.bf16.msra.mxu0 0
        %1426 = vmatprep.subr.bf16.mxu0 0
        %1427 = vmatpush1.bf16.msra.mxu0 0
        %1428 = vmatprep.subr.bf16.mxu0 0
        %1429 = vmatpush1.bf16.msra.mxu0 0
        %1430 = vmatprep.subr.bf16.mxu0 0
        %1431 = vmatpush1.bf16.msra.mxu0 0
        %1432 = vmatprep.subr.bf16.mxu0 0
        %1433 = vmatpush1.bf16.msra.mxu0 0
        %1434 = vmatprep.subr.bf16.mxu0 0
        %1435 = vmatpush1.bf16.msra.mxu0 0
        %1436 = vmatprep.subr.bf16.mxu0 0
        %1437 = vmatpush1.bf16.msra.mxu0 0
        %1438 = vmatprep.subr.bf16.mxu0 0
        %1439 = vmatpush1.bf16.msra.mxu0 0
        %1440 = vmatprep.subr.bf16.mxu0 0
        %1441 = vmatpush1.bf16.msra.mxu0 0
        %1442 = vmatprep.subr.bf16.mxu0 0
        %1443 = vmatpush1.bf16.msra.mxu0 0
        %1444 = vmatprep.subr.bf16.mxu0 0
        %1445 = vmatpush1.bf16.msra.mxu0 0
        %1446 = vmatprep.subr.bf16.mxu0 0
        %1447 = vmatpush1.bf16.msra.mxu0 0
        %1448 = vmatprep.mubr.bf16.mxu0 0
        %1449 = vmatmul.mubr.bf16.gmra.mrb[0].mxu0 %v1410
        %v1450 = vpop.f32.mrb[0].mxu0
        %v1451 = vadd.f32 0.0, %v1450
        %v1452 = vpop.f32.mrb[0].mxu0
        %v1453 = vpop.f32.mrb[0].mxu0
        %v1454 = vpop.f32.mrb[0].mxu0
        %1455 = vdwg.mxu0
        %1456 = vrot.lane.b32.xlu0 %v1271, 64
        %v1457 = vpop.permute.xlu0 %1456
        %v1459 = vsel %vm1287, %v1406, 0
        %v1462 = vsel %vm1412, %v1457, 0
        %1464 = vmatprep.subr.bf16.mxu0 0
        %1465 = vmatpush1.bf16.msra.mxu0 %v1462
        %1466 = vmatprep.subr.bf16.mxu0 0
        %1467 = vmatpush1.bf16.msra.mxu0 0
        %1468 = vmatprep.subr.bf16.mxu0 0
        %1469 = vmatpush1.bf16.msra.mxu0 0
        %1470 = vmatprep.subr.bf16.mxu0 0
        %1471 = vmatpush1.bf16.msra.mxu0 0
        %1472 = vmatprep.subr.bf16.mxu0 0
        %1473 = vmatpush1.bf16.msra.mxu0 0
        %1474 = vmatprep.subr.bf16.mxu0 0
        %1475 = vmatpush1.bf16.msra.mxu0 0
        %1476 = vmatprep.subr.bf16.mxu0 0
        %1477 = vmatpush1.bf16.msra.mxu0 0
        %1478 = vmatprep.subr.bf16.mxu0 0
        %1479 = vmatpush1.bf16.msra.mxu0 0
        %1480 = vmatprep.subr.bf16.mxu0 0
        %1481 = vmatpush1.bf16.msra.mxu0 0
        %1482 = vmatprep.subr.bf16.mxu0 0
        %1483 = vmatpush1.bf16.msra.mxu0 0
        %1484 = vmatprep.subr.bf16.mxu0 0
        %1485 = vmatpush1.bf16.msra.mxu0 0
        %1486 = vmatprep.subr.bf16.mxu0 0
        %1487 = vmatpush1.bf16.msra.mxu0 0
        %1488 = vmatprep.subr.bf16.mxu0 0
        %1489 = vmatpush1.bf16.msra.mxu0 0
        %1490 = vmatprep.subr.bf16.mxu0 0
        %1491 = vmatpush1.bf16.msra.mxu0 0
        %1492 = vmatprep.subr.bf16.mxu0 0
        %1493 = vmatpush1.bf16.msra.mxu0 0
        %1494 = vmatprep.subr.bf16.mxu0 0
        %1495 = vmatpush1.bf16.msra.mxu0 0
        %1496 = vmatprep.mubr.bf16.mxu0 0
        %1497 = vmatmul.mubr.bf16.gmra.mrb[0].mxu0 %v1459
        %v1498 = vpop.f32.mrb[0].mxu0
        %v1499 = vadd.f32 0.0, %v1498
        %v1500 = vpop.f32.mrb[0].mxu0
        %v1501 = vpop.f32.mrb[0].mxu0
        %v1502 = vpop.f32.mrb[0].mxu0
        %1503 = vdwg.mxu0
        %1504 = vst.msk [vmem:[#allocation3] sm:$0xff] %vm1287, %v1451
        %1505 = vst.msk [vmem:[#allocation3 + $0x8] sm:$0xff] %vm1287, %v1499
        %1506 = vrot.lane.b32.xlu0 %v1270, 120
        %v1507 = vpop.permute.xlu0 %1506
        %1508 = vrot.lane.b32.xlu0 %v1270, 88
        %v1509 = vpop.permute.xlu0 %1508
        %v1511 = vsel %vm1287, %v1507, 0
        %v1514 = vsel %vm1287, %v1509, 0
        %1516 = vmatprep.subr.bf16.mxu0 0
        %1517 = vmatpush1.bf16.xpose.msra.mxu0 %v1514
        %1518 = vmatprep.subr.bf16.mxu0 0
        %1519 = vmatpush1.bf16.xpose.msra.mxu0 0
        %1520 = vmatprep.subr.bf16.mxu0 0
        %1521 = vmatpush1.bf16.xpose.msra.mxu0 0
        %1522 = vmatprep.subr.bf16.mxu0 0
        %1523 = vmatpush1.bf16.xpose.msra.mxu0 0
        %1524 = vmatprep.subr.bf16.mxu0 0
        %1525 = vmatpush1.bf16.xpose.msra.mxu0 0
        %1526 = vmatprep.subr.bf16.mxu0 0
        %1527 = vmatpush1.bf16.xpose.msra.mxu0 0
        %1528 = vmatprep.subr.bf16.mxu0 0
        %1529 = vmatpush1.bf16.xpose.msra.mxu0 0
        %1530 = vmatprep.subr.bf16.mxu0 0
        %1531 = vmatpush1.bf16.xpose.msra.mxu0 0
        %1532 = vmatprep.subr.bf16.mxu0 0
        %1533 = vmatpush1.bf16.xpose.msra.mxu0 0
        %1534 = vmatprep.subr.bf16.mxu0 0
        %1535 = vmatpush1.bf16.xpose.msra.mxu0 0
        %1536 = vmatprep.subr.bf16.mxu0 0
        %1537 = vmatpush1.bf16.xpose.msra.mxu0 0
        %1538 = vmatprep.subr.bf16.mxu0 0
        %1539 = vmatpush1.bf16.xpose.msra.mxu0 0
        %1540 = vmatprep.subr.bf16.mxu0 0
        %1541 = vmatpush1.bf16.xpose.msra.mxu0 0
        %1542 = vmatprep.subr.bf16.mxu0 0
        %1543 = vmatpush1.bf16.xpose.msra.mxu0 0
        %1544 = vmatprep.subr.bf16.mxu0 0
        %1545 = vmatpush1.bf16.xpose.msra.mxu0 0
        %1546 = vmatprep.subr.bf16.mxu0 0
        %1547 = vmatpush1.bf16.xpose.msra.mxu0 0
        %1548 = vmatprep.mubr.bf16.mxu0 0
        %1549 = vmatmul.mubr.bf16.gmra.mrb[0].mxu0 %v1511
        %v1550 = vpop.f32.mrb[0].mxu0
        %v1551 = vadd.f32 %v1277, %v1550
        %v1552 = vpop.f32.mrb[0].mxu0
        %v1553 = vpop.f32.mrb[0].mxu0
        %v1554 = vpop.f32.mrb[0].mxu0
        %1555 = vdwg.mxu0
        %1556 = vrot.lane.b32.xlu0 %v1271, 120
        %v1557 = vpop.permute.xlu0 %1556
        %1558 = vrot.lane.b32.xlu0 %v1271, 88
        %v1559 = vpop.permute.xlu0 %1558
        %v1561 = vsel %vm1287, %v1557, 0
        %v1564 = vsel %vm1287, %v1559, 0
        %1566 = vmatprep.subr.bf16.mxu0 0
        %1567 = vmatpush1.bf16.xpose.msra.mxu0 %v1564
        %1568 = vmatprep.subr.bf16.mxu0 0
        %1569 = vmatpush1.bf16.xpose.msra.mxu0 0
        %1570 = vmatprep.subr.bf16.mxu0 0
        %1571 = vmatpush1.bf16.xpose.msra.mxu0 0
        %1572 = vmatprep.subr.bf16.mxu0 0
        %1573 = vmatpush1.bf16.xpose.msra.mxu0 0
        %1574 = vmatprep.subr.bf16.mxu0 0
        %1575 = vmatpush1.bf16.xpose.msra.mxu0 0
        %1576 = vmatprep.subr.bf16.mxu0 0
        %1577 = vmatpush1.bf16.xpose.msra.mxu0 0
        %1578 = vmatprep.subr.bf16.mxu0 0
        %1579 = vmatpush1.bf16.xpose.msra.mxu0 0
        %1580 = vmatprep.subr.bf16.mxu0 0
        %1581 = vmatpush1.bf16.xpose.msra.mxu0 0
        %1582 = vmatprep.subr.bf16.mxu0 0
        %1583 = vmatpush1.bf16.xpose.msra.mxu0 0
        %1584 = vmatprep.subr.bf16.mxu0 0
        %1585 = vmatpush1.bf16.xpose.msra.mxu0 0
        %1586 = vmatprep.subr.bf16.mxu0 0
        %1587 = vmatpush1.bf16.xpose.msra.mxu0 0
        %1588 = vmatprep.subr.bf16.mxu0 0
        %1589 = vmatpush1.bf16.xpose.msra.mxu0 0
        %1590 = vmatprep.subr.bf16.mxu0 0
        %1591 = vmatpush1.bf16.xpose.msra.mxu0 0
        %1592 = vmatprep.subr.bf16.mxu0 0
        %1593 = vmatpush1.bf16.xpose.msra.mxu0 0
        %1594 = vmatprep.subr.bf16.mxu0 0
        %1595 = vmatpush1.bf16.xpose.msra.mxu0 0
        %1596 = vmatprep.subr.bf16.mxu0 0
        %1597 = vmatpush1.bf16.xpose.msra.mxu0 0
        %1598 = vmatprep.mubr.bf16.mxu0 0
        %1599 = vmatmul.mubr.bf16.gmra.mrb[0].mxu0 %v1561
        %v1600 = vpop.f32.mrb[0].mxu0
        %v1601 = vadd.f32 %v1281, %v1600
        %v1602 = vpop.f32.mrb[0].mxu0
        %v1603 = vpop.f32.mrb[0].mxu0
        %v1604 = vpop.f32.mrb[0].mxu0
        %1605 = vdwg.mxu0
        %v1606 = vsel %vm1287, %v1551, -inf
        %1607 = vmax.xlane.f32.xlu0 %v1606
        %v1608 = vpop.xlane.xlu0 %1607
        %v1609 = vsel %vm1287, %v1601, -inf
        %1610 = vmax.xlane.f32.xlu0 %v1609
        %v1611 = vpop.xlane.xlu0 %1610
        %v1612 = vsub.f32 %v1551, %v1608
        %v1613 = vsub.f32 %v1601, %v1611
        %v1614 = vmul.f32 %v1612, 1.442695
        %v1615 = vpow.pop %v1614
        %v1616 = vmul.f32 %v1613, 1.442695
        %v1617 = vpow.pop %v1616
        %v1618 = vsel %vm1287, %v1615, 0.0
        %1619 = vadd.xlane.f32.xlu0 %v1618
        %v1620 = vpop.xlane.xlu0 %1619
        %v1621 = vsel %vm1287, %v1617, 0.0
        %1622 = vadd.xlane.f32.xlu0 %v1621
        %v1623 = vpop.xlane.xlu0 %1622
        %v1624 = vrcp.pop %v1620
        %v1625 = vrcp.pop %v1623
        %v1626 = vmul.f32 %v1615, %v1624
        %v1627 = vmul.f32 %v1617, %v1625
        %v1628 = vpack.c.bf16 %v1626, %v1626
        %v1629 = vpack.c.bf16 %v1627, %v1627
        %1630 = vrot.lane.b32.xlu0 %v1270, 56
        %v1631 = vpop.permute.xlu0 %1630
        %v1633 = vsel %vm1287, %v1628, 0
        %v1636 = vsel %vm1412, %v1631, 0
        %1638 = vmatprep.subr.bf16.mxu0 0
        %1639 = vmatpush1.bf16.msra.mxu0 %v1636
        %1640 = vmatprep.subr.bf16.mxu0 0
        %1641 = vmatpush1.bf16.msra.mxu0 0
        %1642 = vmatprep.subr.bf16.mxu0 0
        %1643 = vmatpush1.bf16.msra.mxu0 0
        %1644 = vmatprep.subr.bf16.mxu0 0
        %1645 = vmatpush1.bf16.msra.mxu0 0
        %1646 = vmatprep.subr.bf16.mxu0 0
        %1647 = vmatpush1.bf16.msra.mxu0 0
        %1648 = vmatprep.subr.bf16.mxu0 0
        %1649 = vmatpush1.bf16.msra.mxu0 0
        %1650 = vmatprep.subr.bf16.mxu0 0
        %1651 = vmatpush1.bf16.msra.mxu0 0
        %1652 = vmatprep.subr.bf16.mxu0 0
        %1653 = vmatpush1.bf16.msra.mxu0 0
        %1654 = vmatprep.subr.bf16.mxu0 0
        %1655 = vmatpush1.bf16.msra.mxu0 0
        %1656 = vmatprep.subr.bf16.mxu0 0
        %1657 = vmatpush1.bf16.msra.mxu0 0
        %1658 = vmatprep.subr.bf16.mxu0 0
        %1659 = vmatpush1.bf16.msra.mxu0 0
        %1660 = vmatprep.subr.bf16.mxu0 0
        %1661 = vmatpush1.bf16.msra.mxu0 0
        %1662 = vmatprep.subr.bf16.mxu0 0
        %1663 = vmatpush1.bf16.msra.mxu0 0
        %1664 = vmatprep.subr.bf16.mxu0 0
        %1665 = vmatpush1.bf16.msra.mxu0 0
        %1666 = vmatprep.subr.bf16.mxu0 0
        %1667 = vmatpush1.bf16.msra.mxu0 0
        %1668 = vmatprep.subr.bf16.mxu0 0
        %1669 = vmatpush1.bf16.msra.mxu0 0
        %1670 = vmatprep.mubr.bf16.mxu0 0
        %1671 = vmatmul.mubr.bf16.gmra.mrb[0].mxu0 %v1633
        %v1672 = vpop.f32.mrb[0].mxu0
        %v1673 = vadd.f32 0.0, %v1672
        %v1674 = vpop.f32.mrb[0].mxu0
        %v1675 = vpop.f32.mrb[0].mxu0
        %v1676 = vpop.f32.mrb[0].mxu0
        %1677 = vdwg.mxu0
        %1678 = vrot.lane.b32.xlu0 %v1271, 56
        %v1679 = vpop.permute.xlu0 %1678
        %v1681 = vsel %vm1287, %v1629, 0
        %v1684 = vsel %vm1412, %v1679, 0
        %1686 = vmatprep.subr.bf16.mxu0 0
        %1687 = vmatpush1.bf16.msra.mxu0 %v1684
        %1688 = vmatprep.subr.bf16.mxu0 0
        %1689 = vmatpush1.bf16.msra.mxu0 0
        %1690 = vmatprep.subr.bf16.mxu0 0
        %1691 = vmatpush1.bf16.msra.mxu0 0
        %1692 = vmatprep.subr.bf16.mxu0 0
        %1693 = vmatpush1.bf16.msra.mxu0 0
        %1694 = vmatprep.subr.bf16.mxu0 0
        %1695 = vmatpush1.bf16.msra.mxu0 0
        %1696 = vmatprep.subr.bf16.mxu0 0
        %1697 = vmatpush1.bf16.msra.mxu0 0
        %1698 = vmatprep.subr.bf16.mxu0 0
        %1699 = vmatpush1.bf16.msra.mxu0 0
        %1700 = vmatprep.subr.bf16.mxu0 0
        %1701 = vmatpush1.bf16.msra.mxu0 0
        %1702 = vmatprep.subr.bf16.mxu0 0
        %1703 = vmatpush1.bf16.msra.mxu0 0
        %1704 = vmatprep.subr.bf16.mxu0 0
        %1705 = vmatpush1.bf16.msra.mxu0 0
        %1706 = vmatprep.subr.bf16.mxu0 0
        %1707 = vmatpush1.bf16.msra.mxu0 0
        %1708 = vmatprep.subr.bf16.mxu0 0
        %1709 = vmatpush1.bf16.msra.mxu0 0
        %1710 = vmatprep.subr.bf16.mxu0 0
        %1711 = vmatpush1.bf16.msra.mxu0 0
        %1712 = vmatprep.subr.bf16.mxu0 0
        %1713 = vmatpush1.bf16.msra.mxu0 0
        %1714 = vmatprep.subr.bf16.mxu0 0
        %1715 = vmatpush1.bf16.msra.mxu0 0
        %1716 = vmatprep.subr.bf16.mxu0 0
        %1717 = vmatpush1.bf16.msra.mxu0 0
        %1718 = vmatprep.mubr.bf16.mxu0 0
        %1719 = vmatmul.mubr.bf16.gmra.mrb[0].mxu0 %v1681
        %v1720 = vpop.f32.mrb[0].mxu0
        %v1721 = vadd.f32 0.0, %v1720
        %v1722 = vpop.f32.mrb[0].mxu0
        %v1723 = vpop.f32.mrb[0].mxu0
        %v1724 = vpop.f32.mrb[0].mxu0
        %1725 = vdwg.mxu0
        %1728 = vrot.lane.b32.xlu0 %v1673, 8
        %v1729 = vpop.permute.xlu0 %1728
        %1730 = vrot.lane.b32.xlu0 %v1721, 8
        %v1731 = vpop.permute.xlu0 %1730
        %vm1734 = vcmask 130112
        %1735 = vst.msk [vmem:[#allocation3] sm:$0xff] %vm1734, %v1729
        %1736 = vst.msk [vmem:[#allocation3 + $0x8] sm:$0xff] %vm1734, %v1731
        %1737 = vrot.lane.b32.xlu0 %v1270, 112
        %v1738 = vpop.permute.xlu0 %1737
        %1739 = vrot.lane.b32.xlu0 %v1270, 80
        %v1740 = vpop.permute.xlu0 %1739
        %v1742 = vsel %vm1287, %v1738, 0
        %v1745 = vsel %vm1287, %v1740, 0
        %1747 = vmatprep.subr.bf16.mxu0 0
        %1748 = vmatpush1.bf16.xpose.msra.mxu0 %v1745
        %1749 = vmatprep.subr.bf16.mxu0 0
        %1750 = vmatpush1.bf16.xpose.msra.mxu0 0
        %1751 = vmatprep.subr.bf16.mxu0 0
        %1752 = vmatpush1.bf16.xpose.msra.mxu0 0
        %1753 = vmatprep.subr.bf16.mxu0 0
        %1754 = vmatpush1.bf16.xpose.msra.mxu0 0
        %1755 = vmatprep.subr.bf16.mxu0 0
        %1756 = vmatpush1.bf16.xpose.msra.mxu0 0
        %1757 = vmatprep.subr.bf16.mxu0 0
        %1758 = vmatpush1.bf16.xpose.msra.mxu0 0
        %1759 = vmatprep.subr.bf16.mxu0 0
        %1760 = vmatpush1.bf16.xpose.msra.mxu0 0
        %1761 = vmatprep.subr.bf16.mxu0 0
        %1762 = vmatpush1.bf16.xpose.msra.mxu0 0
        %1763 = vmatprep.subr.bf16.mxu0 0
        %1764 = vmatpush1.bf16.xpose.msra.mxu0 0
        %1765 = vmatprep.subr.bf16.mxu0 0
        %1766 = vmatpush1.bf16.xpose.msra.mxu0 0
        %1767 = vmatprep.subr.bf16.mxu0 0
        %1768 = vmatpush1.bf16.xpose.msra.mxu0 0
        %1769 = vmatprep.subr.bf16.mxu0 0
        %1770 = vmatpush1.bf16.xpose.msra.mxu0 0
        %1771 = vmatprep.subr.bf16.mxu0 0
        %1772 = vmatpush1.bf16.xpose.msra.mxu0 0
        %1773 = vmatprep.subr.bf16.mxu0 0
        %1774 = vmatpush1.bf16.xpose.msra.mxu0 0
        %1775 = vmatprep.subr.bf16.mxu0 0
        %1776 = vmatpush1.bf16.xpose.msra.mxu0 0
        %1777 = vmatprep.subr.bf16.mxu0 0
        %1778 = vmatpush1.bf16.xpose.msra.mxu0 0
        %1779 = vmatprep.mubr.bf16.mxu0 0
        %1780 = vmatmul.mubr.bf16.gmra.mrb[0].mxu0 %v1742
        %v1781 = vpop.f32.mrb[0].mxu0
        %v1782 = vadd.f32 %v1277, %v1781
        %v1783 = vpop.f32.mrb[0].mxu0
        %v1784 = vpop.f32.mrb[0].mxu0
        %v1785 = vpop.f32.mrb[0].mxu0
        %1786 = vdwg.mxu0
        %1787 = vrot.lane.b32.xlu0 %v1271, 112
        %v1788 = vpop.permute.xlu0 %1787
        %1789 = vrot.lane.b32.xlu0 %v1271, 80
        %v1790 = vpop.permute.xlu0 %1789
        %v1792 = vsel %vm1287, %v1788, 0
        %v1795 = vsel %vm1287, %v1790, 0
        %1797 = vmatprep.subr.bf16.mxu0 0
        %1798 = vmatpush1.bf16.xpose.msra.mxu0 %v1795
        %1799 = vmatprep.subr.bf16.mxu0 0
        %1800 = vmatpush1.bf16.xpose.msra.mxu0 0
        %1801 = vmatprep.subr.bf16.mxu0 0
        %1802 = vmatpush1.bf16.xpose.msra.mxu0 0
        %1803 = vmatprep.subr.bf16.mxu0 0
        %1804 = vmatpush1.bf16.xpose.msra.mxu0 0
        %1805 = vmatprep.subr.bf16.mxu0 0
        %1806 = vmatpush1.bf16.xpose.msra.mxu0 0
        %1807 = vmatprep.subr.bf16.mxu0 0
        %1808 = vmatpush1.bf16.xpose.msra.mxu0 0
        %1809 = vmatprep.subr.bf16.mxu0 0
        %1810 = vmatpush1.bf16.xpose.msra.mxu0 0
        %1811 = vmatprep.subr.bf16.mxu0 0
        %1812 = vmatpush1.bf16.xpose.msra.mxu0 0
        %1813 = vmatprep.subr.bf16.mxu0 0
        %1814 = vmatpush1.bf16.xpose.msra.mxu0 0
        %1815 = vmatprep.subr.bf16.mxu0 0
        %1816 = vmatpush1.bf16.xpose.msra.mxu0 0
        %1817 = vmatprep.subr.bf16.mxu0 0
        %1818 = vmatpush1.bf16.xpose.msra.mxu0 0
        %1819 = vmatprep.subr.bf16.mxu0 0
        %1820 = vmatpush1.bf16.xpose.msra.mxu0 0
        %1821 = vmatprep.subr.bf16.mxu0 0
        %1822 = vmatpush1.bf16.xpose.msra.mxu0 0
        %1823 = vmatprep.subr.bf16.mxu0 0
        %1824 = vmatpush1.bf16.xpose.msra.mxu0 0
        %1825 = vmatprep.subr.bf16.mxu0 0
        %1826 = vmatpush1.bf16.xpose.msra.mxu0 0
        %1827 = vmatprep.subr.bf16.mxu0 0
        %1828 = vmatpush1.bf16.xpose.msra.mxu0 0
        %1829 = vmatprep.mubr.bf16.mxu0 0
        %1830 = vmatmul.mubr.bf16.gmra.mrb[0].mxu0 %v1792
        %v1831 = vpop.f32.mrb[0].mxu0
        %v1832 = vadd.f32 %v1281, %v1831
        %v1833 = vpop.f32.mrb[0].mxu0
        %v1834 = vpop.f32.mrb[0].mxu0
        %v1835 = vpop.f32.mrb[0].mxu0
        %1836 = vdwg.mxu0
        %v1837 = vsel %vm1287, %v1782, -inf
        %1838 = vmax.xlane.f32.xlu0 %v1837
        %v1839 = vpop.xlane.xlu0 %1838
        %v1840 = vsel %vm1287, %v1832, -inf
        %1841 = vmax.xlane.f32.xlu0 %v1840
        %v1842 = vpop.xlane.xlu0 %1841
        %v1843 = vsub.f32 %v1782, %v1839
        %v1844 = vsub.f32 %v1832, %v1842
        %v1845 = vmul.f32 %v1843, 1.442695
        %v1846 = vpow.pop %v1845
        %v1847 = vmul.f32 %v1844, 1.442695
        %v1848 = vpow.pop %v1847
        %v1849 = vsel %vm1287, %v1846, 0.0
        %1850 = vadd.xlane.f32.xlu0 %v1849
        %v1851 = vpop.xlane.xlu0 %1850
        %v1852 = vsel %vm1287, %v1848, 0.0
        %1853 = vadd.xlane.f32.xlu0 %v1852
        %v1854 = vpop.xlane.xlu0 %1853
        %v1855 = vrcp.pop %v1851
        %v1856 = vrcp.pop %v1854
        %v1857 = vmul.f32 %v1846, %v1855
        %v1858 = vmul.f32 %v1848, %v1856
        %v1859 = vpack.c.bf16 %v1857, %v1857
        %v1860 = vpack.c.bf16 %v1858, %v1858
        %1861 = vrot.lane.b32.xlu0 %v1270, 48
        %v1862 = vpop.permute.xlu0 %1861
        %v1864 = vsel %vm1287, %v1859, 0
        %v1867 = vsel %vm1412, %v1862, 0
        %1869 = vmatprep.subr.bf16.mxu0 0
        %1870 = vmatpush1.bf16.msra.mxu0 %v1867
        %1871 = vmatprep.subr.bf16.mxu0 0
        %1872 = vmatpush1.bf16.msra.mxu0 0
        %1873 = vmatprep.subr.bf16.mxu0 0
        %1874 = vmatpush1.bf16.msra.mxu0 0
        %1875 = vmatprep.subr.bf16.mxu0 0
        %1876 = vmatpush1.bf16.msra.mxu0 0
        %1877 = vmatprep.subr.bf16.mxu0 0
        %1878 = vmatpush1.bf16.msra.mxu0 0
        %1879 = vmatprep.subr.bf16.mxu0 0
        %1880 = vmatpush1.bf16.msra.mxu0 0
        %1881 = vmatprep.subr.bf16.mxu0 0
        %1882 = vmatpush1.bf16.msra.mxu0 0
        %1883 = vmatprep.subr.bf16.mxu0 0
        %1884 = vmatpush1.bf16.msra.mxu0 0
        %1885 = vmatprep.subr.bf16.mxu0 0
        %1886 = vmatpush1.bf16.msra.mxu0 0
        %1887 = vmatprep.subr.bf16.mxu0 0
        %1888 = vmatpush1.bf16.msra.mxu0 0
        %1889 = vmatprep.subr.bf16.mxu0 0
        %1890 = vmatpush1.bf16.msra.mxu0 0
        %1891 = vmatprep.subr.bf16.mxu0 0
        %1892 = vmatpush1.bf16.msra.mxu0 0
        %1893 = vmatprep.subr.bf16.mxu0 0
        %1894 = vmatpush1.bf16.msra.mxu0 0
        %1895 = vmatprep.subr.bf16.mxu0 0
        %1896 = vmatpush1.bf16.msra.mxu0 0
        %1897 = vmatprep.subr.bf16.mxu0 0
        %1898 = vmatpush1.bf16.msra.mxu0 0
        %1899 = vmatprep.subr.bf16.mxu0 0
        %1900 = vmatpush1.bf16.msra.mxu0 0
        %1901 = vmatprep.mubr.bf16.mxu0 0
        %1902 = vmatmul.mubr.bf16.gmra.mrb[0].mxu0 %v1864
        %v1903 = vpop.f32.mrb[0].mxu0
        %v1904 = vadd.f32 0.0, %v1903
        %v1905 = vpop.f32.mrb[0].mxu0
        %v1906 = vpop.f32.mrb[0].mxu0
        %v1907 = vpop.f32.mrb[0].mxu0
        %1908 = vdwg.mxu0
        %1909 = vrot.lane.b32.xlu0 %v1271, 48
        %v1910 = vpop.permute.xlu0 %1909
        %v1912 = vsel %vm1287, %v1860, 0
        %v1915 = vsel %vm1412, %v1910, 0
        %1917 = vmatprep.subr.bf16.mxu0 0
        %1918 = vmatpush1.bf16.msra.mxu0 %v1915
        %1919 = vmatprep.subr.bf16.mxu0 0
        %1920 = vmatpush1.bf16.msra.mxu0 0
        %1921 = vmatprep.subr.bf16.mxu0 0
        %1922 = vmatpush1.bf16.msra.mxu0 0
        %1923 = vmatprep.subr.bf16.mxu0 0
        %1924 = vmatpush1.bf16.msra.mxu0 0
        %1925 = vmatprep.subr.bf16.mxu0 0
        %1926 = vmatpush1.bf16.msra.mxu0 0
        %1927 = vmatprep.subr.bf16.mxu0 0
        %1928 = vmatpush1.bf16.msra.mxu0 0
        %1929 = vmatprep.subr.bf16.mxu0 0
        %1930 = vmatpush1.bf16.msra.mxu0 0
        %1931 = vmatprep.subr.bf16.mxu0 0
        %1932 = vmatpush1.bf16.msra.mxu0 0
        %1933 = vmatprep.subr.bf16.mxu0 0
        %1934 = vmatpush1.bf16.msra.mxu0 0
        %1935 = vmatprep.subr.bf16.mxu0 0
        %1936 = vmatpush1.bf16.msra.mxu0 0
        %1937 = vmatprep.subr.bf16.mxu0 0
        %1938 = vmatpush1.bf16.msra.mxu0 0
        %1939 = vmatprep.subr.bf16.mxu0 0
        %1940 = vmatpush1.bf16.msra.mxu0 0
        %1941 = vmatprep.subr.bf16.mxu0 0
        %1942 = vmatpush1.bf16.msra.mxu0 0
        %1943 = vmatprep.subr.bf16.mxu0 0
        %1944 = vmatpush1.bf16.msra.mxu0 0
        %1945 = vmatprep.subr.bf16.mxu0 0
        %1946 = vmatpush1.bf16.msra.mxu0 0
        %1947 = vmatprep.subr.bf16.mxu0 0
        %1948 = vmatpush1.bf16.msra.mxu0 0
        %1949 = vmatprep.mubr.bf16.mxu0 0
        %1950 = vmatmul.mubr.bf16.gmra.mrb[0].mxu0 %v1912
        %v1951 = vpop.f32.mrb[0].mxu0
        %v1952 = vadd.f32 0.0, %v1951
        %v1953 = vpop.f32.mrb[0].mxu0
        %v1954 = vpop.f32.mrb[0].mxu0
        %v1955 = vpop.f32.mrb[0].mxu0
        %1956 = vdwg.mxu0
        %1959 = vrot.lane.b32.xlu0 %v1904, 16
        %v1960 = vpop.permute.xlu0 %1959
        %1961 = vrot.lane.b32.xlu0 %v1952, 16
        %v1962 = vpop.permute.xlu0 %1961
        %vm1965 = vcmask 195712
        %1966 = vst.msk [vmem:[#allocation3] sm:$0xff] %vm1965, %v1960
        %1967 = vst.msk [vmem:[#allocation3 + $0x8] sm:$0xff] %vm1965, %v1962
        %1968 = vrot.lane.b32.xlu0 %v1270, 104
        %v1969 = vpop.permute.xlu0 %1968
        %1970 = vrot.lane.b32.xlu0 %v1270, 72
        %v1971 = vpop.permute.xlu0 %1970
        %v1973 = vsel %vm1287, %v1969, 0
        %v1976 = vsel %vm1287, %v1971, 0
        %1978 = vmatprep.subr.bf16.mxu0 0
        %1979 = vmatpush1.bf16.xpose.msra.mxu0 %v1976
        %1980 = vmatprep.subr.bf16.mxu0 0
        %1981 = vmatpush1.bf16.xpose.msra.mxu0 0
        %1982 = vmatprep.subr.bf16.mxu0 0
        %1983 = vmatpush1.bf16.xpose.msra.mxu0 0
        %1984 = vmatprep.subr.bf16.mxu0 0
        %1985 = vmatpush1.bf16.xpose.msra.mxu0 0
        %1986 = vmatprep.subr.bf16.mxu0 0
        %1987 = vmatpush1.bf16.xpose.msra.mxu0 0
        %1988 = vmatprep.subr.bf16.mxu0 0
        %1989 = vmatpush1.bf16.xpose.msra.mxu0 0
        %1990 = vmatprep.subr.bf16.mxu0 0
        %1991 = vmatpush1.bf16.xpose.msra.mxu0 0
        %1992 = vmatprep.subr.bf16.mxu0 0
        %1993 = vmatpush1.bf16.xpose.msra.mxu0 0
        %1994 = vmatprep.subr.bf16.mxu0 0
        %1995 = vmatpush1.bf16.xpose.msra.mxu0 0
        %1996 = vmatprep.subr.bf16.mxu0 0
        %1997 = vmatpush1.bf16.xpose.msra.mxu0 0
        %1998 = vmatprep.subr.bf16.mxu0 0
        %1999 = vmatpush1.bf16.xpose.msra.mxu0 0
        %2000 = vmatprep.subr.bf16.mxu0 0
        %2001 = vmatpush1.bf16.xpose.msra.mxu0 0
        %2002 = vmatprep.subr.bf16.mxu0 0
        %2003 = vmatpush1.bf16.xpose.msra.mxu0 0
        %2004 = vmatprep.subr.bf16.mxu0 0
        %2005 = vmatpush1.bf16.xpose.msra.mxu0 0
        %2006 = vmatprep.subr.bf16.mxu0 0
        %2007 = vmatpush1.bf16.xpose.msra.mxu0 0
        %2008 = vmatprep.subr.bf16.mxu0 0
        %2009 = vmatpush1.bf16.xpose.msra.mxu0 0
        %2010 = vmatprep.mubr.bf16.mxu0 0
        %2011 = vmatmul.mubr.bf16.gmra.mrb[0].mxu0 %v1973
        %v2012 = vpop.f32.mrb[0].mxu0
        %v2013 = vadd.f32 %v1277, %v2012
        %v2014 = vpop.f32.mrb[0].mxu0
        %v2015 = vpop.f32.mrb[0].mxu0
        %v2016 = vpop.f32.mrb[0].mxu0
        %2017 = vdwg.mxu0
        %2018 = vrot.lane.b32.xlu0 %v1271, 104
        %v2019 = vpop.permute.xlu0 %2018
        %2020 = vrot.lane.b32.xlu0 %v1271, 72
        %v2021 = vpop.permute.xlu0 %2020
        %v2023 = vsel %vm1287, %v2019, 0
        %v2026 = vsel %vm1287, %v2021, 0
        %2028 = vmatprep.subr.bf16.mxu0 0
        %2029 = vmatpush1.bf16.xpose.msra.mxu0 %v2026
        %2030 = vmatprep.subr.bf16.mxu0 0
        %2031 = vmatpush1.bf16.xpose.msra.mxu0 0
        %2032 = vmatprep.subr.bf16.mxu0 0
        %2033 = vmatpush1.bf16.xpose.msra.mxu0 0
        %2034 = vmatprep.subr.bf16.mxu0 0
        %2035 = vmatpush1.bf16.xpose.msra.mxu0 0
        %2036 = vmatprep.subr.bf16.mxu0 0
        %2037 = vmatpush1.bf16.xpose.msra.mxu0 0
        %2038 = vmatprep.subr.bf16.mxu0 0
        %2039 = vmatpush1.bf16.xpose.msra.mxu0 0
        %2040 = vmatprep.subr.bf16.mxu0 0
        %2041 = vmatpush1.bf16.xpose.msra.mxu0 0
        %2042 = vmatprep.subr.bf16.mxu0 0
        %2043 = vmatpush1.bf16.xpose.msra.mxu0 0
        %2044 = vmatprep.subr.bf16.mxu0 0
        %2045 = vmatpush1.bf16.xpose.msra.mxu0 0
        %2046 = vmatprep.subr.bf16.mxu0 0
        %2047 = vmatpush1.bf16.xpose.msra.mxu0 0
        %2048 = vmatprep.subr.bf16.mxu0 0
        %2049 = vmatpush1.bf16.xpose.msra.mxu0 0
        %2050 = vmatprep.subr.bf16.mxu0 0
        %2051 = vmatpush1.bf16.xpose.msra.mxu0 0
        %2052 = vmatprep.subr.bf16.mxu0 0
        %2053 = vmatpush1.bf16.xpose.msra.mxu0 0
        %2054 = vmatprep.subr.bf16.mxu0 0
        %2055 = vmatpush1.bf16.xpose.msra.mxu0 0
        %2056 = vmatprep.subr.bf16.mxu0 0
        %2057 = vmatpush1.bf16.xpose.msra.mxu0 0
        %2058 = vmatprep.subr.bf16.mxu0 0
        %2059 = vmatpush1.bf16.xpose.msra.mxu0 0
        %2060 = vmatprep.mubr.bf16.mxu0 0
        %2061 = vmatmul.mubr.bf16.gmra.mrb[0].mxu0 %v2023
        %v2062 = vpop.f32.mrb[0].mxu0
        %v2063 = vadd.f32 %v1281, %v2062
        %v2064 = vpop.f32.mrb[0].mxu0
        %v2065 = vpop.f32.mrb[0].mxu0
        %v2066 = vpop.f32.mrb[0].mxu0
        %2067 = vdwg.mxu0
        %v2068 = vsel %vm1287, %v2013, -inf
        %2069 = vmax.xlane.f32.xlu0 %v2068
        %v2070 = vpop.xlane.xlu0 %2069
        %v2071 = vsel %vm1287, %v2063, -inf
        %2072 = vmax.xlane.f32.xlu0 %v2071
        %v2073 = vpop.xlane.xlu0 %2072
        %v2074 = vsub.f32 %v2013, %v2070
        %v2075 = vsub.f32 %v2063, %v2073
        %v2076 = vmul.f32 %v2074, 1.442695
        %v2077 = vpow.pop %v2076
        %v2078 = vmul.f32 %v2075, 1.442695
        %v2079 = vpow.pop %v2078
        %v2080 = vsel %vm1287, %v2077, 0.0
        %2081 = vadd.xlane.f32.xlu0 %v2080
        %v2082 = vpop.xlane.xlu0 %2081
        %v2083 = vsel %vm1287, %v2079, 0.0
        %2084 = vadd.xlane.f32.xlu0 %v2083
        %v2085 = vpop.xlane.xlu0 %2084
        %v2086 = vrcp.pop %v2082
        %v2087 = vrcp.pop %v2085
        %v2088 = vmul.f32 %v2077, %v2086
        %v2089 = vmul.f32 %v2079, %v2087
        %v2090 = vpack.c.bf16 %v2088, %v2088
        %v2091 = vpack.c.bf16 %v2089, %v2089
        %2092 = vrot.lane.b32.xlu0 %v1270, 40
        %v2093 = vpop.permute.xlu0 %2092
        %v2095 = vsel %vm1287, %v2090, 0
        %v2098 = vsel %vm1412, %v2093, 0
        %2100 = vmatprep.subr.bf16.mxu0 0
        %2101 = vmatpush1.bf16.msra.mxu0 %v2098
        %2102 = vmatprep.subr.bf16.mxu0 0
        %2103 = vmatpush1.bf16.msra.mxu0 0
        %2104 = vmatprep.subr.bf16.mxu0 0
        %2105 = vmatpush1.bf16.msra.mxu0 0
        %2106 = vmatprep.subr.bf16.mxu0 0
        %2107 = vmatpush1.bf16.msra.mxu0 0
        %2108 = vmatprep.subr.bf16.mxu0 0
        %2109 = vmatpush1.bf16.msra.mxu0 0
        %2110 = vmatprep.subr.bf16.mxu0 0
        %2111 = vmatpush1.bf16.msra.mxu0 0
        %2112 = vmatprep.subr.bf16.mxu0 0
        %2113 = vmatpush1.bf16.msra.mxu0 0
        %2114 = vmatprep.subr.bf16.mxu0 0
        %2115 = vmatpush1.bf16.msra.mxu0 0
        %2116 = vmatprep.subr.bf16.mxu0 0
        %2117 = vmatpush1.bf16.msra.mxu0 0
        %2118 = vmatprep.subr.bf16.mxu0 0
        %2119 = vmatpush1.bf16.msra.mxu0 0
        %2120 = vmatprep.subr.bf16.mxu0 0
        %2121 = vmatpush1.bf16.msra.mxu0 0
        %2122 = vmatprep.subr.bf16.mxu0 0
        %2123 = vmatpush1.bf16.msra.mxu0 0
        %2124 = vmatprep.subr.bf16.mxu0 0
        %2125 = vmatpush1.bf16.msra.mxu0 0
        %2126 = vmatprep.subr.bf16.mxu0 0
        %2127 = vmatpush1.bf16.msra.mxu0 0
        %2128 = vmatprep.subr.bf16.mxu0 0
        %2129 = vmatpush1.bf16.msra.mxu0 0
        %2130 = vmatprep.subr.bf16.mxu0 0
        %2131 = vmatpush1.bf16.msra.mxu0 0
        %2132 = vmatprep.mubr.bf16.mxu0 0
        %2133 = vmatmul.mubr.bf16.gmra.mrb[0].mxu0 %v2095
        %v2134 = vpop.f32.mrb[0].mxu0
        %v2135 = vadd.f32 0.0, %v2134
        %v2136 = vpop.f32.mrb[0].mxu0
        %v2137 = vpop.f32.mrb[0].mxu0
        %v2138 = vpop.f32.mrb[0].mxu0
        %2139 = vdwg.mxu0
        %2140 = vrot.lane.b32.xlu0 %v1271, 40
        %v2141 = vpop.permute.xlu0 %2140
        %v2143 = vsel %vm1287, %v2091, 0
        %v2146 = vsel %vm1412, %v2141, 0
        %2148 = vmatprep.subr.bf16.mxu0 0
        %2149 = vmatpush1.bf16.msra.mxu0 %v2146
        %2150 = vmatprep.subr.bf16.mxu0 0
        %2151 = vmatpush1.bf16.msra.mxu0 0
        %2152 = vmatprep.subr.bf16.mxu0 0
        %2153 = vmatpush1.bf16.msra.mxu0 0
        %2154 = vmatprep.subr.bf16.mxu0 0
        %2155 = vmatpush1.bf16.msra.mxu0 0
        %2156 = vmatprep.subr.bf16.mxu0 0
        %2157 = vmatpush1.bf16.msra.mxu0 0
        %2158 = vmatprep.subr.bf16.mxu0 0
        %2159 = vmatpush1.bf16.msra.mxu0 0
        %2160 = vmatprep.subr.bf16.mxu0 0
        %2161 = vmatpush1.bf16.msra.mxu0 0
        %2162 = vmatprep.subr.bf16.mxu0 0
        %2163 = vmatpush1.bf16.msra.mxu0 0
        %2164 = vmatprep.subr.bf16.mxu0 0
        %2165 = vmatpush1.bf16.msra.mxu0 0
        %2166 = vmatprep.subr.bf16.mxu0 0
        %2167 = vmatpush1.bf16.msra.mxu0 0
        %2168 = vmatprep.subr.bf16.mxu0 0
        %2169 = vmatpush1.bf16.msra.mxu0 0
        %2170 = vmatprep.subr.bf16.mxu0 0
        %2171 = vmatpush1.bf16.msra.mxu0 0
        %2172 = vmatprep.subr.bf16.mxu0 0
        %2173 = vmatpush1.bf16.msra.mxu0 0
        %2174 = vmatprep.subr.bf16.mxu0 0
        %2175 = vmatpush1.bf16.msra.mxu0 0
        %2176 = vmatprep.subr.bf16.mxu0 0
        %2177 = vmatpush1.bf16.msra.mxu0 0
        %2178 = vmatprep.subr.bf16.mxu0 0
        %2179 = vmatpush1.bf16.msra.mxu0 0
        %2180 = vmatprep.mubr.bf16.mxu0 0
        %2181 = vmatmul.mubr.bf16.gmra.mrb[0].mxu0 %v2143
        %v2182 = vpop.f32.mrb[0].mxu0
        %v2183 = vadd.f32 0.0, %v2182
        %v2184 = vpop.f32.mrb[0].mxu0
        %v2185 = vpop.f32.mrb[0].mxu0
        %v2186 = vpop.f32.mrb[0].mxu0
        %2187 = vdwg.mxu0
        %2190 = vrot.lane.b32.xlu0 %v2135, 24
        %v2191 = vpop.permute.xlu0 %2190
        %2192 = vrot.lane.b32.xlu0 %v2183, 24
        %v2193 = vpop.permute.xlu0 %2192
        %vm2196 = vcmask 261312
        %2197 = vst.msk [vmem:[#allocation3] sm:$0xff] %vm2196, %v2191
        %2198 = vst.msk [vmem:[#allocation3 + $0x8] sm:$0xff] %vm2196, %v2193
        %v2199 = vld [vmem:[#allocation3] sm:$0xff]
        %v2200 = vld [vmem:[#allocation3 + $0x8] sm:$0xff]
        %v2201 = vpack.c.bf16 %v2200, %v2199
        %v2202 = vld [vmem:[%s944] sm:$0xf]
        %v2203 = vld [vmem:[%s944 + $0x4] sm:$0xf]
        %v2204 = vld [vmem:[%s944 + $0x8] sm:$0xf]
        %v2205 = vld [vmem:[%s944 + $0xc] sm:$0xf]
        %v2206 = vld [vmem:[%s952] sm:$0x1]
        %v2208 = vlaneseq
        %v2209 = vshrl.u32 %v2208, 7
        %v2210 = vsub.s32 0, %v2209
        %v2211 = vrot.slane %v2206, %v2210
        %v2217 = vunpack.c.l.b16 %v2202
        %v2218 = vunpack.c.l.b16 %v2203
        %v2219 = vunpack.c.l.b16 %v2204
        %v2220 = vunpack.c.l.b16 %v2205
        %v2221 = vpack.c.b16 %v2218, %v2217
        %v2222 = vpack.c.b16 %v2220, %v2219
        %v2226 = vsel %vm1223, %v2201, 0
        %2228 = vmatprep.subr.bf16.mxu0 0
        %2229 = vmatpush1.bf16.msra.mxu0 %v2221
        %2230 = vmatprep.subr.bf16.mxu0 0
        %2231 = vmatpush1.bf16.msra.mxu0 %v2222
        %2232 = vmatprep.subr.bf16.mxu0 0
        %2233 = vmatpush1.bf16.msra.mxu0 0
        %2234 = vmatprep.subr.bf16.mxu0 0
        %2235 = vmatpush1.bf16.msra.mxu0 0
        %2236 = vmatprep.subr.bf16.mxu0 0
        %2237 = vmatpush1.bf16.msra.mxu0 0
        %2238 = vmatprep.subr.bf16.mxu0 0
        %2239 = vmatpush1.bf16.msra.mxu0 0
        %2240 = vmatprep.subr.bf16.mxu0 0
        %2241 = vmatpush1.bf16.msra.mxu0 0
        %2242 = vmatprep.subr.bf16.mxu0 0
        %2243 = vmatpush1.bf16.msra.mxu0 0
        %2244 = vmatprep.subr.bf16.mxu0 0
        %2245 = vmatpush1.bf16.msra.mxu0 0
        %2246 = vmatprep.subr.bf16.mxu0 0
        %2247 = vmatpush1.bf16.msra.mxu0 0
        %2248 = vmatprep.subr.bf16.mxu0 0
        %2249 = vmatpush1.bf16.msra.mxu0 0
        %2250 = vmatprep.subr.bf16.mxu0 0
        %2251 = vmatpush1.bf16.msra.mxu0 0
        %2252 = vmatprep.subr.bf16.mxu0 0
        %2253 = vmatpush1.bf16.msra.mxu0 0
        %2254 = vmatprep.subr.bf16.mxu0 0
        %2255 = vmatpush1.bf16.msra.mxu0 0
        %2256 = vmatprep.subr.bf16.mxu0 0
        %2257 = vmatpush1.bf16.msra.mxu0 0
        %2258 = vmatprep.subr.bf16.mxu0 0
        %2259 = vmatpush1.bf16.msra.mxu0 0
        %2260 = vmatprep.mubr.bf16.mxu0 0
        %2261 = vmatmul.mubr.bf16.gmra.mrb[0].mxu0 %v2226
        %v2262 = vpop.f32.mrb[0].mxu0
        %v2263 = vadd.f32 %v2211, %v2262
        %v2264 = vpop.f32.mrb[0].mxu0
        %v2265 = vpop.f32.mrb[0].mxu0
        %v2266 = vadd.f32 %v2211, %v2265
        %v2267 = vpop.f32.mrb[0].mxu0
        %2268 = vdwg.mxu0
        %v2269 = vadd.f32 %v2263, %v1197
        %v2270 = vadd.f32 %v2266, %v1198
        %v2271 = vld [vmem:[%s960] sm:$0x1]
        %v2272 = vld [vmem:[%s968] sm:$0x1]
        %v2273 = vsel %vm1223, %v2269, 0.0
        %2274 = vadd.xlane.f32.xlu0 %v2273
        %v2275 = vpop.xlane.xlu0 %2274
        %v2276 = vsel %vm1223, %v2270, 0.0
        %2277 = vadd.xlane.f32.xlu0 %v2276
        %v2278 = vpop.xlane.xlu0 %2277
        %v2279 = vrcp.pop 32.0
        %v2280 = vmul.f32 %v2275, %v2279
        %v2281 = vmul.f32 %v2278, %v2279
        %v2282 = vmul.f32 %v2269, %v2269
        %v2283 = vmul.f32 %v2270, %v2270
        %v2284 = vsel %vm1223, %v2282, 0.0
        %2285 = vadd.xlane.f32.xlu0 %v2284
        %v2286 = vpop.xlane.xlu0 %2285
        %v2287 = vsel %vm1223, %v2283, 0.0
        %2288 = vadd.xlane.f32.xlu0 %v2287
        %v2289 = vpop.xlane.xlu0 %2288
        %v2290 = vmul.f32 %v2286, %v2279
        %v2291 = vmul.f32 %v2289, %v2279
        %v2292 = vmul.f32 %v2280, %v2280
        %v2293 = vmul.f32 %v2281, %v2281
        %v2294 = vsub.f32 %v2290, %v2292
        %v2295 = vsub.f32 %v2291, %v2293
        %v2296 = vadd.f32 %v2294, 1e-05
        %v2297 = vadd.f32 %v2295, 1e-05
        %v2298 = vrsqrt.pop %v2296
        %v2299 = vrsqrt.pop %v2297
        %v2301 = vlaneseq
        %v2302 = vshrl.u32 %v2301, 7
        %v2303 = vsub.s32 0, %v2302
        %v2304 = vrot.slane %v2271, %v2303
        %v2306 = vmul.f32 %v2298, %v2304
        %v2307 = vmul.f32 %v2299, %v2304
        %v2308 = vmul.f32 %v2269, %v2306
        %v2309 = vmul.f32 %v2270, %v2307
        %v2310 = vmul.f32 %v2280, %v2306
        %v2311 = vmul.f32 %v2281, %v2307
        %v2313 = vlaneseq
        %v2314 = vshrl.u32 %v2313, 7
        %v2315 = vsub.s32 0, %v2314
        %v2316 = vrot.slane %v2272, %v2315
        %v2318 = vsub.f32 %v2316, %v2310
        %v2319 = vsub.f32 %v2316, %v2311
        %v2320 = vadd.f32 %v2308, %v2318
        %v2321 = vadd.f32 %v2309, %v2319
        %v2322 = vpack.c.bf16 %v2321, %v2320
        %v2323 = vld [vmem:[%s977] sm:$0xf]
        %v2324 = vld [vmem:[%s977 + $0x4] sm:$0xf]
        %v2325 = vld [vmem:[%s977 + $0x8] sm:$0xf]
        %v2326 = vld [vmem:[%s977 + $0xc] sm:$0xf]
        %v2327 = vld [vmem:[%s985] sm:$0x1]
        %v2329 = vlaneseq
        %v2330 = vshrl.u32 %v2329, 7
        %v2331 = vsub.s32 0, %v2330
        %v2332 = vrot.slane %v2327, %v2331
        %v2338 = vunpack.c.l.b16 %v2323
        %v2339 = vunpack.c.l.b16 %v2324
        %v2340 = vunpack.c.l.b16 %v2325
        %v2341 = vunpack.c.l.b16 %v2326
        %v2342 = vpack.c.b16 %v2339, %v2338
        %v2343 = vpack.c.b16 %v2341, %v2340
        %v2347 = vsel %vm1223, %v2322, 0
        %2349 = vmatprep.subr.bf16.mxu0 0
        %2350 = vmatpush1.bf16.msra.mxu0 %v2342
        %2351 = vmatprep.subr.bf16.mxu0 0
        %2352 = vmatpush1.bf16.msra.mxu0 %v2343
        %2353 = vmatprep.subr.bf16.mxu0 0
        %2354 = vmatpush1.bf16.msra.mxu0 0
        %2355 = vmatprep.subr.bf16.mxu0 0
        %2356 = vmatpush1.bf16.msra.mxu0 0
        %2357 = vmatprep.subr.bf16.mxu0 0
        %2358 = vmatpush1.bf16.msra.mxu0 0
        %2359 = vmatprep.subr.bf16.mxu0 0
        %2360 = vmatpush1.bf16.msra.mxu0 0
        %2361 = vmatprep.subr.bf16.mxu0 0
        %2362 = vmatpush1.bf16.msra.mxu0 0
        %2363 = vmatprep.subr.bf16.mxu0 0
        %2364 = vmatpush1.bf16.msra.mxu0 0
        %2365 = vmatprep.subr.bf16.mxu0 0
        %2366 = vmatpush1.bf16.msra.mxu0 0
        %2367 = vmatprep.subr.bf16.mxu0 0
        %2368 = vmatpush1.bf16.msra.mxu0 0
        %2369 = vmatprep.subr.bf16.mxu0 0
        %2370 = vmatpush1.bf16.msra.mxu0 0
        %2371 = vmatprep.subr.bf16.mxu0 0
        %2372 = vmatpush1.bf16.msra.mxu0 0
        %2373 = vmatprep.subr.bf16.mxu0 0
        %2374 = vmatpush1.bf16.msra.mxu0 0
        %2375 = vmatprep.subr.bf16.mxu0 0
        %2376 = vmatpush1.bf16.msra.mxu0 0
        %2377 = vmatprep.subr.bf16.mxu0 0
        %2378 = vmatpush1.bf16.msra.mxu0 0
        %2379 = vmatprep.subr.bf16.mxu0 0
        %2380 = vmatpush1.bf16.msra.mxu0 0
        %2381 = vmatprep.mubr.bf16.mxu0 0
        %2382 = vmatmul.mubr.bf16.gmra.mrb[0].mxu0 %v2347
        %v2383 = vpop.f32.mrb[0].mxu0
        %v2384 = vadd.f32 %v2332, %v2383
        %v2385 = vpop.f32.mrb[0].mxu0
        %v2386 = vpop.f32.mrb[0].mxu0
        %v2387 = vadd.f32 %v2332, %v2386
        %v2388 = vpop.f32.mrb[0].mxu0
        %2389 = vdwg.mxu0
        %v2390 = vmul.f32 %v2384, 0.5
        %v2391 = vmul.f32 %v2387, 0.5
        %v2392 = vmul.f32 %v2384, 0.70710677
        %v2393 = vmul.f32 %v2387, 0.70710677
        %v2394 = verf.f32.pop %v2392
        %v2395 = verf.f32.pop %v2393
        %v2396 = vadd.f32 %v2394, 1.0
        %v2397 = vadd.f32 %v2395, 1.0
        %v2398 = vmul.f32 %v2390, %v2396
        %v2399 = vmul.f32 %v2391, %v2397
        %v2400 = vpack.c.bf16 %v2399, %v2398
        %v2401 = vld [vmem:[%s994] sm:$0xf]
        %v2402 = vld [vmem:[%s994 + $0x4] sm:$0xf]
        %v2403 = vld [vmem:[%s994 + $0x8] sm:$0xf]
        %v2404 = vld [vmem:[%s994 + $0xc] sm:$0xf]
        %v2405 = vld [vmem:[%s994 + $0x10] sm:$0xf]
        %v2406 = vld [vmem:[%s994 + $0x14] sm:$0xf]
        %v2407 = vld [vmem:[%s994 + $0x18] sm:$0xf]
        %v2408 = vld [vmem:[%s994 + $0x1c] sm:$0xf]
        %v2409 = vld [vmem:[%s1002] sm:$0x1]
        %v2411 = vlaneseq
        %v2412 = vshrl.u32 %v2411, 7
        %v2413 = vsub.s32 0, %v2412
        %v2414 = vrot.slane %v2409, %v2413
        %v2424 = vunpack.c.l.b16 %v2401
        %v2425 = vunpack.c.l.b16 %v2402
        %v2426 = vunpack.c.l.b16 %v2403
        %v2427 = vunpack.c.l.b16 %v2404
        %v2428 = vunpack.c.l.b16 %v2405
        %v2429 = vunpack.c.l.b16 %v2406
        %v2430 = vunpack.c.l.b16 %v2407
        %v2431 = vunpack.c.l.b16 %v2408
        %v2432 = vpack.c.b16 %v2425, %v2424
        %v2433 = vpack.c.b16 %v2427, %v2426
        %v2434 = vpack.c.b16 %v2429, %v2428
        %v2435 = vpack.c.b16 %v2431, %v2430
        %vm2440 = vcmask 523264
        %v2442 = vsel %vm2440, %v2400, 0
        %2444 = vmatprep.subr.bf16.mxu0 0
        %2445 = vmatpush1.bf16.msra.mxu0 %v2432
        %2446 = vmatprep.subr.bf16.mxu0 0
        %2447 = vmatpush1.bf16.msra.mxu0 %v2433
        %2448 = vmatprep.subr.bf16.mxu0 0
        %2449 = vmatpush1.bf16.msra.mxu0 %v2434
        %2450 = vmatprep.subr.bf16.mxu0 0
        %2451 = vmatpush1.bf16.msra.mxu0 %v2435
        %2452 = vmatprep.subr.bf16.mxu0 0
        %2453 = vmatpush1.bf16.msra.mxu0 0
        %2454 = vmatprep.subr.bf16.mxu0 0
        %2455 = vmatpush1.bf16.msra.mxu0 0
        %2456 = vmatprep.subr.bf16.mxu0 0
        %2457 = vmatpush1.bf16.msra.mxu0 0
        %2458 = vmatprep.subr.bf16.mxu0 0
        %2459 = vmatpush1.bf16.msra.mxu0 0
        %2460 = vmatprep.subr.bf16.mxu0 0
        %2461 = vmatpush1.bf16.msra.mxu0 0
        %2462 = vmatprep.subr.bf16.mxu0 0
        %2463 = vmatpush1.bf16.msra.mxu0 0
        %2464 = vmatprep.subr.bf16.mxu0 0
        %2465 = vmatpush1.bf16.msra.mxu0 0
        %2466 = vmatprep.subr.bf16.mxu0 0
        %2467 = vmatpush1.bf16.msra.mxu0 0
        %2468 = vmatprep.subr.bf16.mxu0 0
        %2469 = vmatpush1.bf16.msra.mxu0 0
        %2470 = vmatprep.subr.bf16.mxu0 0
        %2471 = vmatpush1.bf16.msra.mxu0 0
        %2472 = vmatprep.subr.bf16.mxu0 0
        %2473 = vmatpush1.bf16.msra.mxu0 0
        %2474 = vmatprep.subr.bf16.mxu0 0
        %2475 = vmatpush1.bf16.msra.mxu0 0
        %2476 = vmatprep.mubr.bf16.mxu0 0
        %2477 = vmatmul.mubr.bf16.gmra.mrb[0].mxu0 %v2442
        %v2478 = vpop.f32.mrb[0].mxu0
        %v2479 = vadd.f32 %v2414, %v2478
        %v2480 = vpop.f32.mrb[0].mxu0
        %v2481 = vpop.f32.mrb[0].mxu0
        %v2482 = vadd.f32 %v2414, %v2481
        %v2483 = vpop.f32.mrb[0].mxu0
        %2484 = vdwg.mxu0
        %v2485 = vadd.f32 %v2479, %v2320
        %v2486 = vadd.f32 %v2482, %v2321
        %v2487 = vld [vmem:[%s1010] sm:$0x1]
        %v2488 = vld [vmem:[%s1018] sm:$0x1]
        %v2489 = vsel %vm1223, %v2485, 0.0
        %2490 = vadd.xlane.f32.xlu0 %v2489
        %v2491 = vpop.xlane.xlu0 %2490
        %v2492 = vsel %vm1223, %v2486, 0.0
        %2493 = vadd.xlane.f32.xlu0 %v2492
        %v2494 = vpop.xlane.xlu0 %2493
        %v2495 = vmul.f32 %v2491, %v2279
        %v2496 = vmul.f32 %v2494, %v2279
        %v2497 = vmul.f32 %v2485, %v2485
        %v2498 = vmul.f32 %v2486, %v2486
        %v2499 = vsel %vm1223, %v2497, 0.0
        %2500 = vadd.xlane.f32.xlu0 %v2499
        %v2501 = vpop.xlane.xlu0 %2500
        %v2502 = vsel %vm1223, %v2498, 0.0
        %2503 = vadd.xlane.f32.xlu0 %v2502
        %v2504 = vpop.xlane.xlu0 %2503
        %v2505 = vmul.f32 %v2501, %v2279
        %v2506 = vmul.f32 %v2504, %v2279
        %v2507 = vmul.f32 %v2495, %v2495
        %v2508 = vmul.f32 %v2496, %v2496
        %v2509 = vsub.f32 %v2505, %v2507
        %v2510 = vsub.f32 %v2506, %v2508
        %v2511 = vadd.f32 %v2509, 1e-05
        %v2512 = vadd.f32 %v2510, 1e-05
        %v2513 = vrsqrt.pop %v2511
        %v2514 = vrsqrt.pop %v2512
        %v2516 = vlaneseq
        %v2517 = vshrl.u32 %v2516, 7
        %v2518 = vsub.s32 0, %v2517
        %v2519 = vrot.slane %v2487, %v2518
        %v2521 = vmul.f32 %v2513, %v2519
        %v2522 = vmul.f32 %v2514, %v2519
        %v2523 = vmul.f32 %v2485, %v2521
        %v2524 = vmul.f32 %v2486, %v2522
        %v2525 = vmul.f32 %v2495, %v2521
        %v2526 = vmul.f32 %v2496, %v2522
        %v2528 = vlaneseq
        %v2529 = vshrl.u32 %v2528, 7
        %v2530 = vsub.s32 0, %v2529
        %v2531 = vrot.slane %v2488, %v2530
        %v2533 = vsub.f32 %v2531, %v2525
        %v2534 = vsub.f32 %v2531, %v2526
        %v2535 = vadd.f32 %v2523, %v2533
        %v2536 = vadd.f32 %v2524, %v2534
        %2537 = vst.msk [vmem:[#allocation2] sm:$0xff] %vm1223, %v2535
        %2538 = vst.msk [vmem:[#allocation2 + $0x8] sm:$0xff] %vm1223, %v2536
        %p2539 = scmp.eq.s32.totalorder %s41, 1
        // Predicated region
        $region185: #{_lambda_.1} parent=99 // pred_check
          %p2540 = pneg %p2539
        $region186: #{_lambda_.1} parent=99 // pred_check_branch
          %2542 = sbr.rel (%p2540) target = $region188
        $region187: #{_lambda_.1} parent=99 // pred_region
          %v2543 = vpack.c.bf16 %v2536, %v2535
          %v2544 = vld [vmem:[#allocation24] sm:$0xf]
          %v2545 = vld [vmem:[#allocation24 + $0x4] sm:$0xf]
          %v2546 = vld [vmem:[#allocation24 + $0x8] sm:$0xf]
          %v2547 = vld [vmem:[#allocation24 + $0xc] sm:$0xf]
          %v2548 = vld [vmem:[#allocation25] sm:$0x1]
          %v2550 = vlaneseq
          %v2551 = vshrl.u32 %v2550, 7
          %v2552 = vsub.s32 0, %v2551
          %v2553 = vrot.slane %v2548, %v2552
          %v2559 = vunpack.c.l.b16 %v2544
          %v2560 = vunpack.c.l.b16 %v2545
          %v2561 = vunpack.c.l.b16 %v2546
          %v2562 = vunpack.c.l.b16 %v2547
          %v2563 = vpack.c.b16 %v2560, %v2559
          %v2564 = vpack.c.b16 %v2562, %v2561
          %v2568 = vsel %vm1223, %v2543, 0
          %2570 = vmatprep.subr.bf16.mxu0 0
          %2571 = vmatpush1.bf16.msra.mxu0 %v2563
          %2572 = vmatprep.subr.bf16.mxu0 0
          %2573 = vmatpush1.bf16.msra.mxu0 %v2564
          %2574 = vmatprep.subr.bf16.mxu0 0
          %2575 = vmatpush1.bf16.msra.mxu0 0
          %2576 = vmatprep.subr.bf16.mxu0 0
          %2577 = vmatpush1.bf16.msra.mxu0 0
          %2578 = vmatprep.subr.bf16.mxu0 0
          %2579 = vmatpush1.bf16.msra.mxu0 0
          %2580 = vmatprep.subr.bf16.mxu0 0
          %2581 = vmatpush1.bf16.msra.mxu0 0
          %2582 = vmatprep.subr.bf16.mxu0 0
          %2583 = vmatpush1.bf16.msra.mxu0 0
          %2584 = vmatprep.subr.bf16.mxu0 0
          %2585 = vmatpush1.bf16.msra.mxu0 0
          %2586 = vmatprep.subr.bf16.mxu0 0
          %2587 = vmatpush1.bf16.msra.mxu0 0
          %2588 = vmatprep.subr.bf16.mxu0 0
          %2589 = vmatpush1.bf16.msra.mxu0 0
          %2590 = vmatprep.subr.bf16.mxu0 0
          %2591 = vmatpush1.bf16.msra.mxu0 0
          %2592 = vmatprep.subr.bf16.mxu0 0
          %2593 = vmatpush1.bf16.msra.mxu0 0
          %2594 = vmatprep.subr.bf16.mxu0 0
          %2595 = vmatpush1.bf16.msra.mxu0 0
          %2596 = vmatprep.subr.bf16.mxu0 0
          %2597 = vmatpush1.bf16.msra.mxu0 0
          %2598 = vmatprep.subr.bf16.mxu0 0
          %2599 = vmatpush1.bf16.msra.mxu0 0
          %2600 = vmatprep.subr.bf16.mxu0 0
          %2601 = vmatpush1.bf16.msra.mxu0 0
          %2602 = vmatprep.mubr.bf16.mxu0 0
          %2603 = vmatmul.mubr.bf16.gmra.mrb[0].mxu0 %v2568
          %v2604 = vpop.f32.mrb[0].mxu0
          %v2605 = vadd.f32 %v2553, %v2604
          %v2606 = vpop.f32.mrb[0].mxu0
          %v2607 = vpop.f32.mrb[0].mxu0
          %v2608 = vadd.f32 %v2553, %v2607
          %v2609 = vpop.f32.mrb[0].mxu0
          %2610 = vdwg.mxu0
          %v2611 = vtanh.pop %v2605
          %v2612 = vtanh.pop %v2608
          %v2613 = vpack.c.bf16 %v2612, %v2611
          %v2614 = vld [vmem:[#allocation26] sm:$0xf]
          %v2615 = vld [vmem:[#allocation26 + $0x4] sm:$0xf]
          %v2616 = vld [vmem:[#allocation26 + $0x8] sm:$0xf]
          %v2617 = vld [vmem:[#allocation26 + $0xc] sm:$0xf]
          %v2618 = vld [vmem:[#allocation28] sm:$0x1]
          %v2620 = vlaneseq
          %v2621 = vshrl.u32 %v2620, 7
          %v2622 = vsub.s32 0, %v2621
          %v2623 = vrot.slane %v2618, %v2622
          %v2629 = vunpack.c.l.b16 %v2614
          %v2630 = vunpack.c.l.b16 %v2615
          %v2631 = vunpack.c.l.b16 %v2616
          %v2632 = vunpack.c.l.b16 %v2617
          %v2633 = vpack.c.b16 %v2630, %v2629
          %v2634 = vpack.c.b16 %v2632, %v2631
          %v2638 = vsel %vm1223, %v2613, 0
          %2640 = vmatprep.subr.bf16.mxu0 0
          %2641 = vmatpush1.bf16.msra.mxu0 %v2633
          %2642 = vmatprep.subr.bf16.mxu0 0
          %2643 = vmatpush1.bf16.msra.mxu0 %v2634
          %2644 = vmatprep.subr.bf16.mxu0 0
          %2645 = vmatpush1.bf16.msra.mxu0 0
          %2646 = vmatprep.subr.bf16.mxu0 0
          %2647 = vmatpush1.bf16.msra.mxu0 0
          %2648 = vmatprep.subr.bf16.mxu0 0
          %2649 = vmatpush1.bf16.msra.mxu0 0
          %2650 = vmatprep.subr.bf16.mxu0 0
          %2651 = vmatpush1.bf16.msra.mxu0 0
          %2652 = vmatprep.subr.bf16.mxu0 0
          %2653 = vmatpush1.bf16.msra.mxu0 0
          %2654 = vmatprep.subr.bf16.mxu0 0
          %2655 = vmatpush1.bf16.msra.mxu0 0
          %2656 = vmatprep.subr.bf16.mxu0 0
          %2657 = vmatpush1.bf16.msra.mxu0 0
          %2658 = vmatprep.subr.bf16.mxu0 0
          %2659 = vmatpush1.bf16.msra.mxu0 0
          %2660 = vmatprep.subr.bf16.mxu0 0
          %2661 = vmatpush1.bf16.msra.mxu0 0
          %2662 = vmatprep.subr.bf16.mxu0 0
          %2663 = vmatpush1.bf16.msra.mxu0 0
          %2664 = vmatprep.subr.bf16.mxu0 0
          %2665 = vmatpush1.bf16.msra.mxu0 0
          %2666 = vmatprep.subr.bf16.mxu0 0
          %2667 = vmatpush1.bf16.msra.mxu0 0
          %2668 = vmatprep.subr.bf16.mxu0 0
          %2669 = vmatpush1.bf16.msra.mxu0 0
          %2670 = vmatprep.subr.bf16.mxu0 0
          %2671 = vmatpush1.bf16.msra.mxu0 0
          %2672 = vmatprep.mubr.bf16.mxu0 0
          %2673 = vmatmul.mubr.bf16.gmra.mrb[0].mxu0 %v2638
          %v2674 = vpop.f32.mrb[0].mxu0
          %v2675 = vadd.f32 %v2623, %v2674
          %v2676 = vpop.f32.mrb[0].mxu0
          %v2677 = vpop.f32.mrb[0].mxu0
          %v2678 = vadd.f32 %v2623, %v2677
          %v2679 = vpop.f32.mrb[0].mxu0
          %2680 = vdwg.mxu0
          %2681 = vst [vmem:[#allocation29] sm:$0xff] %v2675
          %2682 = vst [vmem:[#allocation29 + $0x8] sm:$0xff] %v2678
        $region188: #{_lambda_.1} parent=99 // pred_fallthru
          _
        // Predicated region
        $region189: #{_lambda_.1} parent=99 // pred_check
          %p2683 = pneg %p556
        $region190: #{_lambda_.1} parent=99 // pred_check_branch
          %2685 = sbr.rel (%p2683) target = $region192
        $region191: #{_lambda_.1} parent=99 // pred_region
          %s2686 = smul.u32 2, %s40
          %s2688 = ssub.s32 256, 256
          %2689 = vsyncadd [#allocation6], %s2688
          %s2690 = smul.addr %s2686, 128
          %s2691 = scalar_lea.hbm %s20, %s2690
          %s2692 = sshll.u32 [#allocation29], 4
          %s2693 = int_to_ptr.vmem [resolvable:$true] %s2692
          %2698 = dma.vmem_to_hbm [thread:$0]  %s2693, 256, %s2691, [#allocation6], 128, 128, 8
        $region192: #{_lambda_.1} parent=99 // pred_fallthru
          _
        // Predicated region
        $region193: #{_lambda_.1} parent=99 // pred_check
          %p2699 = pneg %p556
        $region194: #{_lambda_.1} parent=99 // pred_check_branch
          %2701 = sbr.rel (%p2699) target = $region196
        $region195: #{_lambda_.1} parent=99 // pred_region
          %2702 = dma.done [#allocation6], 256
        $region196: #{_lambda_.1} parent=99 // pred_fallthru
          _
      $region100: #{_lambda_.1} parent=5 // pred_fallthru
        _
      %p2703 = scmp.le.s32.totalorder 2, %s31
      // Predicated region
      $region197: #{_lambda_.1} parent=5 // pred_check
        %p2704 = pneg %p2703
      $region198: #{_lambda_.1} parent=5 // pred_check_branch
        %2706 = sbr.rel (%p2704) target = $region200
      $region199: #{_lambda_.1} parent=5 // pred_region
        %s2707 = ssub.s32 %s31, 2
      $region200: #{_lambda_.1} parent=5 // pred_fallthru
        _
    $region6: #{_lambda_.1} parent=1 // loop_footer
      %s35 = sadd.s32 1, %s31
    $region7: #{_lambda_.1} parent=1 // loop_footer_branch
      %30 = sbr.rel target = $region3
    $region8: #{_lambda_.1} parent=1 // loop_exit
      _
    %2708 = vsyncpa [#allocation5], 1
    %s2709 = scalar_lea.sflag [#allocation5], 1
    %2710 = vsyncpa %s2709, 1
    %2711 = vsyncpa [#allocation8], 1
    %2712 = vsyncpa [#allocation11], 1
    %2713 = vsyncpa [#allocation27], 1
    %2714 = vsyncpa [#allocation6], 1
    %s2715 = scalar_lea.sflag [#allocation6], 1
    %2716 = vsyncpa %s2715, 1

</llo_original>
